<compile_context>
chip_gen: v5e
topology: v5e:2x2
jax: 0.10.0
libtpu: 0.0.40
codegen_flags: <defaults>
</compile_context>

<pallas_src>
import math
import functools

import jax
import jax.numpy as jnp
from jax.experimental import pallas as pl
from jax.experimental.pallas import tpu as pltpu

BN_EPS = 1e-5
NEG_INF = -1e30   # large finite negative: avoids NaN from exp(-inf - (-inf))


def encoder_layer_kernel(x_ref,
                         wqkv_ref, bqkv_ref, wo_ref, bo_ref,
                         a1_ref, c1_ref,
                         w1_ref, b1_ref, w2_ref, b2_ref,
                         a2_ref, c2_ref,
                         o_ref, ctx_ref, *, n_heads):
    Bt, S, D = x_ref.shape
    dk = D // n_heads
    mm_dtype = wqkv_ref.dtype            # bf16 weights => bf16 MXU operands

    # (Bt, S, D) -> (Bt*S, D): free relabel because S is a sublane multiple.
    x2 = x_ref[...].astype(jnp.float32).reshape(Bt * S, D)

    # ---- fused QKV projection: one (Bt*S, D) @ (D, 3D) MXU matmul --------------
    # (1/sqrt(dk) is pre-folded into the Q columns of wqkv / bqkv.)
    qkv = jnp.dot(x2.astype(mm_dtype), wqkv_ref[...],
                  preferred_element_type=jnp.float32) + bqkv_ref[...]

    # ---- causal multi-head attention, batched over Bt inside each einsum -------
    row = jax.lax.broadcasted_iota(jnp.int32, (S, S), 0)
    col = jax.lax.broadcasted_iota(jnp.int32, (S, S), 1)
    causal = col <= row                    # (S, S), True = visible

    # TODO(synk): if S grows large, tile over key blocks (flash-style online
    # softmax) instead of materializing the (Bt, S, S) score tensor per head.
    for h in range(n_heads):               # static unroll over heads
        q_h = qkv[:, 0 * D + h * dk: 0 * D + (h + 1) * dk] \
            .reshape(Bt, S, dk).astype(mm_dtype)
        k_h = qkv[:, 1 * D + h * dk: 1 * D + (h + 1) * dk] \
            .reshape(Bt, S, dk).astype(mm_dtype)
        v_h = qkv[:, 2 * D + h * dk: 2 * D + (h + 1) * dk] \
            .reshape(Bt, S, dk).astype(mm_dtype)

        s = jnp.einsum("bqd,bkd->bqk", q_h, k_h,
                       preferred_element_type=jnp.float32)
        s = jnp.where(causal, s, NEG_INF)
        s = s - jnp.max(s, axis=-1, keepdims=True)
        p = jnp.exp(s)
        p = p * pl.reciprocal(jnp.sum(p, axis=-1, keepdims=True), approx=True)

        ctx_h = jnp.einsum("bqk,bkd->bqd", p.astype(mm_dtype), v_h,
                           preferred_element_type=jnp.float32)
        # Write head context straight into the VMEM slab (no concat).
        ctx_ref[:, h * dk:(h + 1) * dk] = ctx_h.reshape(Bt * S, dk)

    # ---- output projection: one (Bt*S, D) @ (D, D) matmul ----------------------
    attn = jnp.dot(ctx_ref[...].astype(mm_dtype), wo_ref[...],
                   preferred_element_type=jnp.float32) + bo_ref[...]

    # ---- norm1 (pre-folded eval BatchNorm) + residual ---------------------------
    y = attn * a1_ref[...] + c1_ref[...] + x2

    # ---- MLP: Linear -> ReLU -> Linear ------------------------------------------
    h1 = jnp.maximum(
        jnp.dot(y.astype(mm_dtype), w1_ref[...],
                preferred_element_type=jnp.float32) + b1_ref[...], 0.0)
    ff = jnp.dot(h1.astype(mm_dtype), w2_ref[...],
                 preferred_element_type=jnp.float32) + b2_ref[...]

    # ---- norm2 + residual ---------------------------------------------------------
    z = ff * a2_ref[...] + c2_ref[...] + y

    o_ref[...] = z.reshape(Bt, S, D).astype(o_ref.dtype)


def _prepare_params(params, n_heads, matmul_dtype):
    """Fuse QKV (+fold softmax scale into Q), fold eval-BN, pad d_ff to 128-mult."""
    d_model = params["wq"].shape[0]
    scale = 1.0 / math.sqrt(d_model // n_heads)
    wqkv = jnp.concatenate([params["wq"] * scale, params["wk"], params["wv"]], axis=1)
    bqkv = jnp.concatenate([params["bq"] * scale, params["bk"], params["bv"]], axis=1)
    a1 = params["g1"] * jax.lax.rsqrt(params["v1"] + BN_EPS)
    c1 = params["be1"] - params["m1"] * a1
    a2 = params["g2"] * jax.lax.rsqrt(params["v2"] + BN_EPS)
    c2 = params["be2"] - params["m2"] * a2

    # Zero-pad d_ff to a lane-dense multiple of 128 (exact: relu(0)=0, zero w2 rows).
    w1, b1, w2 = params["w1"], params["b1"], params["w2"]
    F = w1.shape[1]
    F_pad = ((F + 127) // 128) * 128
    if F_pad != F:
        w1 = jnp.pad(w1, ((0, 0), (0, F_pad - F)))
        b1 = jnp.pad(b1, ((0, 0), (0, F_pad - F)))
        w2 = jnp.pad(w2, ((0, F_pad - F), (0, 0)))

    md = matmul_dtype
    return [wqkv.astype(md), bqkv,
            params["wo"].astype(md), params["bo"],
            a1, c1,
            w1.astype(md), b1, w2.astype(md), params["b2"],
            a2, c2], F_pad


def _device_vmem_budget():
    """Per-generation scoped-VMEM budget (bytes)."""
    try:
        kind = jax.devices()[0].device_kind.lower()
    except Exception:
        kind = ""
    if "v2" in kind or "v3" in kind:
        return 12 * (1 << 20)                    # 16 MiB physical
    if any(t in kind for t in ("v4", "v5", "v6", "trillium")):
        return 100 * (1 << 20)                   # 128 MiB physical
    return 48 * (1 << 20)                        # v7x / unknown: 64 MiB physical


def _vmem_block_cap(S, D, F, budget_bytes, x_bytes, w_bytes):
    """Rough upper bound on bt (sequences/step) that fits the VMEM budget."""
    per_seq = S * ((10 * D + F + 4 * S) * 4)     # live f32 intermediates
    per_seq += 4 * S * D * x_bytes               # double-buffered in/out blocks
    weights = 2 * (4 * D * D + 2 * D * F) * w_bytes
    avail = int(budget_bytes * 0.7) - weights
    return max(1, avail // max(per_seq, 1))


def _pick_bt(B, cap):
    """Pick sequences/step: >= ~4 grid steps for pipelining, prefer divisors of B."""
    target = min(4, B)
    bt = max(1, min(B, cap, -(-B // target)))
    for cand in range(bt, 0, -1):
        if B % cand == 0 and 2 * cand >= bt:     # divisor close to ideal -> no padding
            return cand
    return bt                                    # fall back to padding the batch


def encoder_layer_pallas(x, params, n_heads, *, block_b=None,
                         matmul_dtype=jnp.bfloat16, vmem_limit_bytes=None):
    batch, n_vars, S, D = x.shape
    B = batch * n_vars
    xb = x.reshape(B, S, D)

    # Pad S to a sublane multiple of 8 so in-kernel reshapes stay zero-cost.
    S_pad = ((S + 7) // 8) * 8
    if S_pad != S:
        xb = jnp.pad(xb, ((0, 0), (0, S_pad - S), (0, 0)))

    param_arrays, F_pad = _prepare_params(params, n_heads, matmul_dtype)

    if vmem_limit_bytes is None:
        vmem_limit_bytes = _device_vmem_budget()
    x_bytes = jnp.dtype(x.dtype).itemsize
    w_bytes = jnp.dtype(matmul_dtype).itemsize
    cap = _vmem_block_cap(S_pad, D, F_pad, vmem_limit_bytes, x_bytes, w_bytes)
    cap = min(cap, block_b if block_b is not None else 128)
    bt = _pick_bt(B, max(1, cap))
    n_blocks = pl.cdiv(B, bt)
    B_pad = n_blocks * bt
    if B_pad != B:
        xb = jnp.pad(xb, ((0, B_pad - B), (0, 0), (0, 0)))

    # TODO(synk): for d_model not a multiple of 128 (lane width), padding d_model
    # per-head would further improve lane density; left as-is for exactness/simplicity.

    def run(single_buffer_weights):
        def w_spec(shape):
            nd = len(shape)
            kw = {"pipeline_mode": pl.Buffered(1)} if single_buffer_weights else {}
            return pl.BlockSpec(shape, lambda b, _nd=nd: (0,) * _nd, **kw)

        grid_spec = pltpu.PrefetchScalarGridSpec(
            num_scalar_prefetch=0,
            grid=(n_blocks,),
            in_specs=[pl.BlockSpec((bt, S_pad, D), lambda b: (b, 0, 0))]
                     + [w_spec(p.shape) for p in param_arrays],
            out_specs=pl.BlockSpec((bt, S_pad, D), lambda b: (b, 0, 0)),
            scratch_shapes=[pltpu.VMEM((bt * S_pad, D), jnp.float32)],
        )
        return pl.pallas_call(
            functools.partial(encoder_layer_kernel, n_heads=n_heads),
            out_shape=jax.ShapeDtypeStruct((B_pad, S_pad, D), x.dtype),
            grid_spec=grid_spec,
            compiler_params=pltpu.CompilerParams(
                dimension_semantics=("parallel",),
                vmem_limit_bytes=int(vmem_limit_bytes)),
        )(xb, *param_arrays)

    try:
        out = run(True)
    except Exception:
        # Fallback if pipeline_mode=pl.Buffered(1) is unsupported in this JAX version.
        out = run(False)

    return out[:B, :S].reshape(batch, n_vars, S, D)


def encoder_layer_ref(x, params, n_heads):
    """Pure-JAX reference of the same forward pass (eval mode)."""
    batch, n_vars, S, D = x.shape
    xb = x.reshape(batch * n_vars, S, D)
    dk = D // n_heads
    mask = jnp.triu(jnp.full((S, S), -jnp.inf, jnp.float32), k=1)

    q = xb @ params["wq"] + params["bq"]
    k = xb @ params["wk"] + params["bk"]
    v = xb @ params["wv"] + params["bv"]

    def split(t):  # (B, S, D) -> (B, H, S, dk)
        return t.reshape(t.shape[0], S, n_heads, dk).transpose(0, 2, 1, 3)

    qh, kh, vh = split(q), split(k), split(v)
    s = jnp.einsum("bhqd,bhkd->bhqk", qh, kh) / math.sqrt(dk) + mask
    p = jax.nn.softmax(s, axis=-1)
    oh = jnp.einsum("bhqk,bhkd->bhqd", p, vh)
    attn = oh.transpose(0, 2, 1, 3).reshape(-1, S, D) @ params["wo"] + params["bo"]

    def bn(t, g, b, m, var):
        return (t - m) * jax.lax.rsqrt(var + BN_EPS) * g + b

    y = bn(attn, params["g1"], params["be1"], params["m1"], params["v1"]) + xb
    h1 = jnp.maximum(y @ params["w1"] + params["b1"], 0.0)
    ff = h1 @ params["w2"] + params["b2"]
    z = bn(ff, params["g2"], params["be2"], params["m2"], params["v2"]) + y
    return z.reshape(batch, n_vars, S, D)


def init_params(key, d_model, n_heads, d_ff):
    ks = jax.random.split(key, 16)
    f32 = jnp.float32
    sc = 0.05
    p = {
        "wq": sc * jax.random.normal(ks[0], (d_model, d_model), f32),
        "bq": sc * jax.random.normal(ks[1], (1, d_model), f32),
        "wk": sc * jax.random.normal(ks[2], (d_model, d_model), f32),
        "bk": sc * jax.random.normal(ks[3], (1, d_model), f32),
        "wv": sc * jax.random.normal(ks[4], (d_model, d_model), f32),
        "bv": sc * jax.random.normal(ks[5], (1, d_model), f32),
        "wo": sc * jax.random.normal(ks[6], (d_model, d_model), f32),
        "bo": sc * jax.random.normal(ks[7], (1, d_model), f32),
        "w1": sc * jax.random.normal(ks[8], (d_model, d_ff), f32),
        "b1": sc * jax.random.normal(ks[9], (1, d_ff), f32),
        "w2": sc * jax.random.normal(ks[10], (d_ff, d_model), f32),
        "b2": sc * jax.random.normal(ks[11], (1, d_model), f32),
        # BatchNorm (eval-mode) parameters / running stats
        "g1": 1.0 + 0.1 * jax.random.normal(ks[12], (1, d_model), f32),
        "be1": 0.1 * jax.random.normal(ks[13], (1, d_model), f32),
        "m1": 0.1 * jax.random.normal(ks[14], (1, d_model), f32),
        "v1": 1.0 + 0.5 * jax.random.uniform(ks[15], (1, d_model), f32),
        "g2": 1.0 + 0.1 * jax.random.normal(ks[12], (1, d_model), f32) * 0.5,
        "be2": 0.1 * jax.random.normal(ks[13], (1, d_model), f32) * 0.5,
        "m2": 0.1 * jax.random.normal(ks[14], (1, d_model), f32) * 0.5,
        "v2": 1.0 + 0.5 * jax.random.uniform(ks[15], (1, d_model), f32),
    }
    return p


if __name__ == "__main__":
    # Small shapes consistent with the module's forward:
    batch, n_vars, num_patch, d_model = 2, 3, 8, 32
    n_heads, d_ff = 4, 64

    key = jax.random.PRNGKey(0)
    kx, kp = jax.random.split(key)
    x = jax.random.normal(kx, (batch, n_vars, num_patch, d_model), jnp.float32)
    params = init_params(kp, d_model, n_heads, d_ff)

    ref = encoder_layer_ref(x, params, n_heads)

    # f32-MXU run: tight correctness check (approx EUP reciprocal is the only approximation).
    out_f32 = jax.block_until_ready(
        encoder_layer_pallas(x, params, n_heads, matmul_dtype=jnp.float32))
    assert out_f32.shape == (batch, n_vars, num_patch, d_model)
    assert not bool(jnp.any(jnp.isnan(out_f32))), "NaN in f32 kernel output"
    assert bool(jnp.allclose(out_f32, ref, atol=2e-3, rtol=2e-3)), "f32 mismatch vs reference"

    # Default bf16-MXU run (~2x+ MXU throughput on v5e/v6e/v7x); standard mixed-precision tol.
    out_bf16 = jax.block_until_ready(encoder_layer_pallas(x, params, n_heads))
    assert not bool(jnp.any(jnp.isnan(out_bf16))), "NaN in bf16 kernel output"
    assert bool(jnp.allclose(out_bf16, ref, atol=3e-2, rtol=3e-2)), "bf16 mismatch vs reference"

    # TODO(synk): Dropout (p=0.5 / attn_dropout=0.2) is modeled in eval mode (no-op);
    # training-mode stochastic dropout has no deterministic equivalent here.
    print("KERNEL_OK")
</pallas_src>

<mosaic_0001>
module attributes {stable_mosaic.version = 11 : i64} {
  func.func @encoder_layer_kernel(%arg0: i32, %arg1: memref<2x8x32xf32, #tpu.memory_space<vmem>>, %arg2: memref<32x96xf32, #tpu.memory_space<vmem>>, %arg3: memref<1x96xf32, #tpu.memory_space<vmem>>, %arg4: memref<32x32xf32, #tpu.memory_space<vmem>>, %arg5: memref<1x32xf32, #tpu.memory_space<vmem>>, %arg6: memref<1x32xf32, #tpu.memory_space<vmem>>, %arg7: memref<1x32xf32, #tpu.memory_space<vmem>>, %arg8: memref<32x128xf32, #tpu.memory_space<vmem>>, %arg9: memref<1x128xf32, #tpu.memory_space<vmem>>, %arg10: memref<128x32xf32, #tpu.memory_space<vmem>>, %arg11: memref<1x32xf32, #tpu.memory_space<vmem>>, %arg12: memref<1x32xf32, #tpu.memory_space<vmem>>, %arg13: memref<1x32xf32, #tpu.memory_space<vmem>>, %arg14: memref<2x8x32xf32, #tpu.memory_space<vmem>>, %arg15: memref<16x32xf32, #tpu.memory_space<vmem>>) attributes {dimension_semantics = [#tpu.dimension_semantics<parallel>], iteration_bounds = array<i64: 3>, scalar_prefetch = 0 : i64, scratch_operands = 1 : i64, tpu.core_type = #tpu.core_type<tc>, window_params = [{transform_indices = @transform_0, window_bounds = array<i64: 2, 8, 32>}, {pipeline_mode = #tpu.pipeline_mode<synchronous>, transform_indices = @transform_1, window_bounds = array<i64: 32, 96>}, {pipeline_mode = #tpu.pipeline_mode<synchronous>, transform_indices = @transform_2, window_bounds = array<i64: 1, 96>}, {pipeline_mode = #tpu.pipeline_mode<synchronous>, transform_indices = @transform_3, window_bounds = array<i64: 32, 32>}, {pipeline_mode = #tpu.pipeline_mode<synchronous>, transform_indices = @transform_4, window_bounds = array<i64: 1, 32>}, {pipeline_mode = #tpu.pipeline_mode<synchronous>, transform_indices = @transform_5, window_bounds = array<i64: 1, 32>}, {pipeline_mode = #tpu.pipeline_mode<synchronous>, transform_indices = @transform_6, window_bounds = array<i64: 1, 32>}, {pipeline_mode = #tpu.pipeline_mode<synchronous>, transform_indices = @transform_7, window_bounds = array<i64: 32, 128>}, {pipeline_mode = #tpu.pipeline_mode<synchronous>, transform_indices = @transform_8, window_bounds = array<i64: 1, 128>}, {pipeline_mode = #tpu.pipeline_mode<synchronous>, transform_indices = @transform_9, window_bounds = array<i64: 128, 32>}, {pipeline_mode = #tpu.pipeline_mode<synchronous>, transform_indices = @transform_10, window_bounds = array<i64: 1, 32>}, {pipeline_mode = #tpu.pipeline_mode<synchronous>, transform_indices = @transform_11, window_bounds = array<i64: 1, 32>}, {pipeline_mode = #tpu.pipeline_mode<synchronous>, transform_indices = @transform_12, window_bounds = array<i64: 1, 32>}, {transform_indices = @transform_13, window_bounds = array<i64: 2, 8, 32>}]} {
    %c0 = arith.constant 0 : index
    %c0_0 = arith.constant 0 : index
    %c0_1 = arith.constant 0 : index
    %0 = vector.load %arg1[%c0, %c0_0, %c0_1] : memref<2x8x32xf32, #tpu.memory_space<vmem>>, vector<2x8x32xf32>
    %1 = vector.shape_cast %0 : vector<2x8x32xf32> to vector<16x32xf32>
    %c0_2 = arith.constant 0 : index
    %c0_3 = arith.constant 0 : index
    %2 = vector.load %arg2[%c0_2, %c0_3] : memref<32x96xf32, #tpu.memory_space<vmem>>, vector<32x96xf32>
    %cst = arith.constant dense<0.000000e+00> : vector<16x96xf32>
    %3 = tpu.matmul %1, %2, %cst {dimension_numbers = #tpu.dot_dimension_numbers<[1], [0], [0], [1], [0, 0, 1, 1], [], []>} : vector<16x32xf32>, vector<32x96xf32>, vector<16x96xf32> -> vector<16x96xf32>
    %c0_4 = arith.constant 0 : index
    %c0_5 = arith.constant 0 : index
    %4 = vector.load %arg3[%c0_4, %c0_5] : memref<1x96xf32, #tpu.memory_space<vmem>>, vector<1x96xf32>
    %5 = vector.broadcast %4 : vector<1x96xf32> to vector<16x96xf32>
    %6 = arith.addf %3, %5 : vector<16x96xf32>
    %7 = tpu.iota {dimensions = array<i32: 0>} : vector<8x8xi32>
    %8 = tpu.iota {dimensions = array<i32: 1>} : vector<8x8xi32>
    %9 = arith.cmpi sle, %8, %7 : vector<8x8xi32>
    %10 = vector.extract_strided_slice %6 {offsets = [0, 0], sizes = [16, 8], strides = [1, 1]} : vector<16x96xf32> to vector<16x8xf32>
    %11 = vector.shape_cast %10 : vector<16x8xf32> to vector<2x8x8xf32>
    %12 = vector.extract_strided_slice %6 {offsets = [0, 32], sizes = [16, 8], strides = [1, 1]} : vector<16x96xf32> to vector<16x8xf32>
    %13 = vector.shape_cast %12 : vector<16x8xf32> to vector<2x8x8xf32>
    %14 = vector.extract_strided_slice %6 {offsets = [0, 64], sizes = [16, 8], strides = [1, 1]} : vector<16x96xf32> to vector<16x8xf32>
    %15 = vector.shape_cast %14 : vector<16x8xf32> to vector<2x8x8xf32>
    "tpu.trace_start"() <{level = 10 : i32, message = "bqd,bkd->bqk"}> : () -> ()
    %cst_6 = arith.constant dense<0.000000e+00> : vector<2x8x8xf32>
    %16 = tpu.matmul %11, %13, %cst_6 {dimension_numbers = #tpu.dot_dimension_numbers<[2], [2], [1], [1], [0, 0, 0, 1, 1, 1], [0], [0]>} : vector<2x8x8xf32>, vector<2x8x8xf32>, vector<2x8x8xf32> -> vector<2x8x8xf32>
    %cst_7 = arith.constant -1.000000e+30 : f32
    "tpu.trace_stop"() : () -> ()
    %17 = vector.shape_cast %9 : vector<8x8xi1> to vector<1x8x8xi1>
    %18 = vector.broadcast %17 : vector<1x8x8xi1> to vector<2x8x8xi1>
    %19 = vector.broadcast %cst_7 : f32 to vector<2x8x8xf32>
    %20 = arith.select %18, %16, %19 : vector<2x8x8xi1>, vector<2x8x8xf32>
    %cst_8 = arith.constant dense<0xFF800000> : vector<2x8xf32>
    %21 = vector.multi_reduction <maximumf>, %20, %cst_8 [2] : vector<2x8x8xf32> to vector<2x8xf32>
    %22 = vector.shape_cast %21 : vector<2x8xf32> to vector<2x8x1xf32>
    %23 = vector.broadcast %22 : vector<2x8x1xf32> to vector<2x8x8xf32>
    %24 = arith.subf %20, %23 : vector<2x8x8xf32>
    %25 = math.exp %24 : vector<2x8x8xf32>
    %cst_9 = arith.constant dense<0.000000e+00> : vector<2x8xf32>
    %26 = vector.multi_reduction <add>, %25, %cst_9 [2] : vector<2x8x8xf32> to vector<2x8xf32>
    %27 = vector.shape_cast %26 : vector<2x8xf32> to vector<2x8x1xf32>
    %28 = tpu.reciprocal %27 {approx = true} : vector<2x8x1xf32> -> vector<2x8x1xf32>
    %29 = vector.broadcast %28 : vector<2x8x1xf32> to vector<2x8x8xf32>
    %30 = arith.mulf %25, %29 : vector<2x8x8xf32>
    "tpu.trace_start"() <{level = 10 : i32, message = "bqk,bkd->bqd"}> : () -> ()
    %cst_10 = arith.constant dense<0.000000e+00> : vector<2x8x8xf32>
    %31 = tpu.matmul %30, %15, %cst_10 {dimension_numbers = #tpu.dot_dimension_numbers<[2], [1], [1], [2], [0, 0, 0, 1, 1, 2], [0], [0]>} : vector<2x8x8xf32>, vector<2x8x8xf32>, vector<2x8x8xf32> -> vector<2x8x8xf32>
    "tpu.trace_stop"() : () -> ()
    %32 = vector.shape_cast %31 : vector<2x8x8xf32> to vector<16x8xf32>
    %c0_11 = arith.constant 0 : index
    %c0_12 = arith.constant 0 : index
    %33 = vector.load %arg15[%c0_11, %c0_12] : memref<16x32xf32, #tpu.memory_space<vmem>>, vector<16x8xf32>
    tpu.vector_store %arg15[%c0_11, %c0_12], %32 {strides = array<i32>} : memref<16x32xf32, #tpu.memory_space<vmem>>, vector<16x8xf32>,
    %34 = vector.extract_strided_slice %6 {offsets = [0, 8], sizes = [16, 8], strides = [1, 1]} : vector<16x96xf32> to vector<16x8xf32>
    %35 = vector.shape_cast %34 : vector<16x8xf32> to vector<2x8x8xf32>
    %36 = vector.extract_strided_slice %6 {offsets = [0, 40], sizes = [16, 8], strides = [1, 1]} : vector<16x96xf32> to vector<16x8xf32>
    %37 = vector.shape_cast %36 : vector<16x8xf32> to vector<2x8x8xf32>
    %38 = vector.extract_strided_slice %6 {offsets = [0, 72], sizes = [16, 8], strides = [1, 1]} : vector<16x96xf32> to vector<16x8xf32>
    %39 = vector.shape_cast %38 : vector<16x8xf32> to vector<2x8x8xf32>
    "tpu.trace_start"() <{level = 10 : i32, message = "bqd,bkd->bqk"}> : () -> ()
    %cst_13 = arith.constant dense<0.000000e+00> : vector<2x8x8xf32>
    %40 = tpu.matmul %35, %37, %cst_13 {dimension_numbers = #tpu.dot_dimension_numbers<[2], [2], [1], [1], [0, 0, 0, 1, 1, 1], [0], [0]>} : vector<2x8x8xf32>, vector<2x8x8xf32>, vector<2x8x8xf32> -> vector<2x8x8xf32>
    %cst_14 = arith.constant -1.000000e+30 : f32
    "tpu.trace_stop"() : () -> ()
    %41 = vector.shape_cast %9 : vector<8x8xi1> to vector<1x8x8xi1>
    %42 = vector.broadcast %41 : vector<1x8x8xi1> to vector<2x8x8xi1>
    %43 = vector.broadcast %cst_14 : f32 to vector<2x8x8xf32>
    %44 = arith.select %42, %40, %43 : vector<2x8x8xi1>, vector<2x8x8xf32>
    %cst_15 = arith.constant dense<0xFF800000> : vector<2x8xf32>
    %45 = vector.multi_reduction <maximumf>, %44, %cst_15 [2] : vector<2x8x8xf32> to vector<2x8xf32>
    %46 = vector.shape_cast %45 : vector<2x8xf32> to vector<2x8x1xf32>
    %47 = vector.broadcast %46 : vector<2x8x1xf32> to vector<2x8x8xf32>
    %48 = arith.subf %44, %47 : vector<2x8x8xf32>
    %49 = math.exp %48 : vector<2x8x8xf32>
    %cst_16 = arith.constant dense<0.000000e+00> : vector<2x8xf32>
    %50 = vector.multi_reduction <add>, %49, %cst_16 [2] : vector<2x8x8xf32> to vector<2x8xf32>
    %51 = vector.shape_cast %50 : vector<2x8xf32> to vector<2x8x1xf32>
    %52 = tpu.reciprocal %51 {approx = true} : vector<2x8x1xf32> -> vector<2x8x1xf32>
    %53 = vector.broadcast %52 : vector<2x8x1xf32> to vector<2x8x8xf32>
    %54 = arith.mulf %49, %53 : vector<2x8x8xf32>
    "tpu.trace_start"() <{level = 10 : i32, message = "bqk,bkd->bqd"}> : () -> ()
    %cst_17 = arith.constant dense<0.000000e+00> : vector<2x8x8xf32>
    %55 = tpu.matmul %54, %39, %cst_17 {dimension_numbers = #tpu.dot_dimension_numbers<[2], [1], [1], [2], [0, 0, 0, 1, 1, 2], [0], [0]>} : vector<2x8x8xf32>, vector<2x8x8xf32>, vector<2x8x8xf32> -> vector<2x8x8xf32>
    "tpu.trace_stop"() : () -> ()
    %56 = vector.shape_cast %55 : vector<2x8x8xf32> to vector<16x8xf32>
    %c0_18 = arith.constant 0 : index
    %c8 = arith.constant 8 : index
    %57 = vector.load %arg15[%c0_18, %c8] : memref<16x32xf32, #tpu.memory_space<vmem>>, vector<16x8xf32>
    tpu.vector_store %arg15[%c0_18, %c8], %56 {strides = array<i32>} : memref<16x32xf32, #tpu.memory_space<vmem>>, vector<16x8xf32>,
    %58 = vector.extract_strided_slice %6 {offsets = [0, 16], sizes = [16, 8], strides = [1, 1]} : vector<16x96xf32> to vector<16x8xf32>
    %59 = vector.shape_cast %58 : vector<16x8xf32> to vector<2x8x8xf32>
    %60 = vector.extract_strided_slice %6 {offsets = [0, 48], sizes = [16, 8], strides = [1, 1]} : vector<16x96xf32> to vector<16x8xf32>
    %61 = vector.shape_cast %60 : vector<16x8xf32> to vector<2x8x8xf32>
    %62 = vector.extract_strided_slice %6 {offsets = [0, 80], sizes = [16, 8], strides = [1, 1]} : vector<16x96xf32> to vector<16x8xf32>
    %63 = vector.shape_cast %62 : vector<16x8xf32> to vector<2x8x8xf32>
    "tpu.trace_start"() <{level = 10 : i32, message = "bqd,bkd->bqk"}> : () -> ()
    %cst_19 = arith.constant dense<0.000000e+00> : vector<2x8x8xf32>
    %64 = tpu.matmul %59, %61, %cst_19 {dimension_numbers = #tpu.dot_dimension_numbers<[2], [2], [1], [1], [0, 0, 0, 1, 1, 1], [0], [0]>} : vector<2x8x8xf32>, vector<2x8x8xf32>, vector<2x8x8xf32> -> vector<2x8x8xf32>
    %cst_20 = arith.constant -1.000000e+30 : f32
    "tpu.trace_stop"() : () -> ()
    %65 = vector.shape_cast %9 : vector<8x8xi1> to vector<1x8x8xi1>
    %66 = vector.broadcast %65 : vector<1x8x8xi1> to vector<2x8x8xi1>
    %67 = vector.broadcast %cst_20 : f32 to vector<2x8x8xf32>
    %68 = arith.select %66, %64, %67 : vector<2x8x8xi1>, vector<2x8x8xf32>
    %cst_21 = arith.constant dense<0xFF800000> : vector<2x8xf32>
    %69 = vector.multi_reduction <maximumf>, %68, %cst_21 [2] : vector<2x8x8xf32> to vector<2x8xf32>
    %70 = vector.shape_cast %69 : vector<2x8xf32> to vector<2x8x1xf32>
    %71 = vector.broadcast %70 : vector<2x8x1xf32> to vector<2x8x8xf32>
    %72 = arith.subf %68, %71 : vector<2x8x8xf32>
    %73 = math.exp %72 : vector<2x8x8xf32>
    %cst_22 = arith.constant dense<0.000000e+00> : vector<2x8xf32>
    %74 = vector.multi_reduction <add>, %73, %cst_22 [2] : vector<2x8x8xf32> to vector<2x8xf32>
    %75 = vector.shape_cast %74 : vector<2x8xf32> to vector<2x8x1xf32>
    %76 = tpu.reciprocal %75 {approx = true} : vector<2x8x1xf32> -> vector<2x8x1xf32>
    %77 = vector.broadcast %76 : vector<2x8x1xf32> to vector<2x8x8xf32>
    %78 = arith.mulf %73, %77 : vector<2x8x8xf32>
    "tpu.trace_start"() <{level = 10 : i32, message = "bqk,bkd->bqd"}> : () -> ()
    %cst_23 = arith.constant dense<0.000000e+00> : vector<2x8x8xf32>
    %79 = tpu.matmul %78, %63, %cst_23 {dimension_numbers = #tpu.dot_dimension_numbers<[2], [1], [1], [2], [0, 0, 0, 1, 1, 2], [0], [0]>} : vector<2x8x8xf32>, vector<2x8x8xf32>, vector<2x8x8xf32> -> vector<2x8x8xf32>
    "tpu.trace_stop"() : () -> ()
    %80 = vector.shape_cast %79 : vector<2x8x8xf32> to vector<16x8xf32>
    %c0_24 = arith.constant 0 : index
    %c16 = arith.constant 16 : index
    %81 = vector.load %arg15[%c0_24, %c16] : memref<16x32xf32, #tpu.memory_space<vmem>>, vector<16x8xf32>
    tpu.vector_store %arg15[%c0_24, %c16], %80 {strides = array<i32>} : memref<16x32xf32, #tpu.memory_space<vmem>>, vector<16x8xf32>,
    %82 = vector.extract_strided_slice %6 {offsets = [0, 24], sizes = [16, 8], strides = [1, 1]} : vector<16x96xf32> to vector<16x8xf32>
    %83 = vector.shape_cast %82 : vector<16x8xf32> to vector<2x8x8xf32>
    %84 = vector.extract_strided_slice %6 {offsets = [0, 56], sizes = [16, 8], strides = [1, 1]} : vector<16x96xf32> to vector<16x8xf32>
    %85 = vector.shape_cast %84 : vector<16x8xf32> to vector<2x8x8xf32>
    %86 = vector.extract_strided_slice %6 {offsets = [0, 88], sizes = [16, 8], strides = [1, 1]} : vector<16x96xf32> to vector<16x8xf32>
    %87 = vector.shape_cast %86 : vector<16x8xf32> to vector<2x8x8xf32>
    "tpu.trace_start"() <{level = 10 : i32, message = "bqd,bkd->bqk"}> : () -> ()
    %cst_25 = arith.constant dense<0.000000e+00> : vector<2x8x8xf32>
    %88 = tpu.matmul %83, %85, %cst_25 {dimension_numbers = #tpu.dot_dimension_numbers<[2], [2], [1], [1], [0, 0, 0, 1, 1, 1], [0], [0]>} : vector<2x8x8xf32>, vector<2x8x8xf32>, vector<2x8x8xf32> -> vector<2x8x8xf32>
    %cst_26 = arith.constant -1.000000e+30 : f32
    "tpu.trace_stop"() : () -> ()
    %89 = vector.shape_cast %9 : vector<8x8xi1> to vector<1x8x8xi1>
    %90 = vector.broadcast %89 : vector<1x8x8xi1> to vector<2x8x8xi1>
    %91 = vector.broadcast %cst_26 : f32 to vector<2x8x8xf32>
    %92 = arith.select %90, %88, %91 : vector<2x8x8xi1>, vector<2x8x8xf32>
    %cst_27 = arith.constant dense<0xFF800000> : vector<2x8xf32>
    %93 = vector.multi_reduction <maximumf>, %92, %cst_27 [2] : vector<2x8x8xf32> to vector<2x8xf32>
    %94 = vector.shape_cast %93 : vector<2x8xf32> to vector<2x8x1xf32>
    %95 = vector.broadcast %94 : vector<2x8x1xf32> to vector<2x8x8xf32>
    %96 = arith.subf %92, %95 : vector<2x8x8xf32>
    %97 = math.exp %96 : vector<2x8x8xf32>
    %cst_28 = arith.constant dense<0.000000e+00> : vector<2x8xf32>
    %98 = vector.multi_reduction <add>, %97, %cst_28 [2] : vector<2x8x8xf32> to vector<2x8xf32>
    %99 = vector.shape_cast %98 : vector<2x8xf32> to vector<2x8x1xf32>
    %100 = tpu.reciprocal %99 {approx = true} : vector<2x8x1xf32> -> vector<2x8x1xf32>
    %101 = vector.broadcast %100 : vector<2x8x1xf32> to vector<2x8x8xf32>
    %102 = arith.mulf %97, %101 : vector<2x8x8xf32>
    "tpu.trace_start"() <{level = 10 : i32, message = "bqk,bkd->bqd"}> : () -> ()
    %cst_29 = arith.constant dense<0.000000e+00> : vector<2x8x8xf32>
    %103 = tpu.matmul %102, %87, %cst_29 {dimension_numbers = #tpu.dot_dimension_numbers<[2], [1], [1], [2], [0, 0, 0, 1, 1, 2], [0], [0]>} : vector<2x8x8xf32>, vector<2x8x8xf32>, vector<2x8x8xf32> -> vector<2x8x8xf32>
    "tpu.trace_stop"() : () -> ()
    %104 = vector.shape_cast %103 : vector<2x8x8xf32> to vector<16x8xf32>
    %c0_30 = arith.constant 0 : index
    %c24 = arith.constant 24 : index
    %105 = vector.load %arg15[%c0_30, %c24] : memref<16x32xf32, #tpu.memory_space<vmem>>, vector<16x8xf32>
    tpu.vector_store %arg15[%c0_30, %c24], %104 {strides = array<i32>} : memref<16x32xf32, #tpu.memory_space<vmem>>, vector<16x8xf32>,
    %c0_31 = arith.constant 0 : index
    %c0_32 = arith.constant 0 : index
    %106 = vector.load %arg15[%c0_31, %c0_32] : memref<16x32xf32, #tpu.memory_space<vmem>>, vector<16x32xf32>
    %c0_33 = arith.constant 0 : index
    %c0_34 = arith.constant 0 : index
    %107 = vector.load %arg4[%c0_33, %c0_34] : memref<32x32xf32, #tpu.memory_space<vmem>>, vector<32x32xf32>
    %cst_35 = arith.constant dense<0.000000e+00> : vector<16x32xf32>
    %108 = tpu.matmul %106, %107, %cst_35 {dimension_numbers = #tpu.dot_dimension_numbers<[1], [0], [0], [1], [0, 0, 1, 1], [], []>} : vector<16x32xf32>, vector<32x32xf32>, vector<16x32xf32> -> vector<16x32xf32>
    %c0_36 = arith.constant 0 : index
    %c0_37 = arith.constant 0 : index
    %109 = vector.load %arg5[%c0_36, %c0_37] : memref<1x32xf32, #tpu.memory_space<vmem>>, vector<1x32xf32>
    %110 = vector.broadcast %109 : vector<1x32xf32> to vector<16x32xf32>
    %111 = arith.addf %108, %110 : vector<16x32xf32>
    %c0_38 = arith.constant 0 : index
    %c0_39 = arith.constant 0 : index
    %112 = vector.load %arg6[%c0_38, %c0_39] : memref<1x32xf32, #tpu.memory_space<vmem>>, vector<1x32xf32>
    %113 = vector.broadcast %112 : vector<1x32xf32> to vector<16x32xf32>
    %114 = arith.mulf %111, %113 : vector<16x32xf32>
    %c0_40 = arith.constant 0 : index
    %c0_41 = arith.constant 0 : index
    %115 = vector.load %arg7[%c0_40, %c0_41] : memref<1x32xf32, #tpu.memory_space<vmem>>, vector<1x32xf32>
    %116 = vector.broadcast %115 : vector<1x32xf32> to vector<16x32xf32>
    %117 = arith.addf %114, %116 : vector<16x32xf32>
    %118 = arith.addf %117, %1 : vector<16x32xf32>
    %c0_42 = arith.constant 0 : index
    %c0_43 = arith.constant 0 : index
    %119 = vector.load %arg8[%c0_42, %c0_43] : memref<32x128xf32, #tpu.memory_space<vmem>>, vector<32x128xf32>
    %cst_44 = arith.constant dense<0.000000e+00> : vector<16x128xf32>
    %120 = tpu.matmul %118, %119, %cst_44 {dimension_numbers = #tpu.dot_dimension_numbers<[1], [0], [0], [1], [0, 0, 1, 1], [], []>} : vector<16x32xf32>, vector<32x128xf32>, vector<16x128xf32> -> vector<16x128xf32>
    %c0_45 = arith.constant 0 : index
    %c0_46 = arith.constant 0 : index
    %121 = vector.load %arg9[%c0_45, %c0_46] : memref<1x128xf32, #tpu.memory_space<vmem>>, vector<1x128xf32>
    %122 = vector.broadcast %121 : vector<1x128xf32> to vector<16x128xf32>
    %123 = arith.addf %120, %122 : vector<16x128xf32>
    %cst_47 = arith.constant 0.000000e+00 : f32
    %124 = vector.broadcast %cst_47 : f32 to vector<16x128xf32>
    %125 = arith.maximumf %123, %124 : vector<16x128xf32>
    %c0_48 = arith.constant 0 : index
    %c0_49 = arith.constant 0 : index
    %126 = vector.load %arg10[%c0_48, %c0_49] : memref<128x32xf32, #tpu.memory_space<vmem>>, vector<128x32xf32>
    %cst_50 = arith.constant dense<0.000000e+00> : vector<16x32xf32>
    %127 = tpu.matmul %125, %126, %cst_50 {dimension_numbers = #tpu.dot_dimension_numbers<[1], [0], [0], [1], [0, 0, 1, 1], [], []>} : vector<16x128xf32>, vector<128x32xf32>, vector<16x32xf32> -> vector<16x32xf32>
    %c0_51 = arith.constant 0 : index
    %c0_52 = arith.constant 0 : index
    %128 = vector.load %arg11[%c0_51, %c0_52] : memref<1x32xf32, #tpu.memory_space<vmem>>, vector<1x32xf32>
    %129 = vector.broadcast %128 : vector<1x32xf32> to vector<16x32xf32>
    %130 = arith.addf %127, %129 : vector<16x32xf32>
    %c0_53 = arith.constant 0 : index
    %c0_54 = arith.constant 0 : index
    %131 = vector.load %arg12[%c0_53, %c0_54] : memref<1x32xf32, #tpu.memory_space<vmem>>, vector<1x32xf32>
    %132 = vector.broadcast %131 : vector<1x32xf32> to vector<16x32xf32>
    %133 = arith.mulf %130, %132 : vector<16x32xf32>
    %c0_55 = arith.constant 0 : index
    %c0_56 = arith.constant 0 : index
    %134 = vector.load %arg13[%c0_55, %c0_56] : memref<1x32xf32, #tpu.memory_space<vmem>>, vector<1x32xf32>
    %135 = vector.broadcast %134 : vector<1x32xf32> to vector<16x32xf32>
    %136 = arith.addf %133, %135 : vector<16x32xf32>
    %137 = arith.addf %136, %118 : vector<16x32xf32>
    %138 = vector.shape_cast %137 : vector<16x32xf32> to vector<2x8x32xf32>
    %c0_57 = arith.constant 0 : index
    %c0_58 = arith.constant 0 : index
    %c0_59 = arith.constant 0 : index
    %139 = vector.load %arg14[%c0_57, %c0_58, %c0_59] : memref<2x8x32xf32, #tpu.memory_space<vmem>>, vector<2x8x32xf32>
    tpu.vector_store %arg14[%c0_57, %c0_58, %c0_59], %138 {strides = array<i32>} : memref<2x8x32xf32, #tpu.memory_space<vmem>>, vector<2x8x32xf32>,
    return
  }
  func.func @transform_0(%arg0: i32) -> (i32, i32, i32) {
    %c0_i32 = arith.constant 0 : i32
    %c0_i32_0 = arith.constant 0 : i32
    %c0_i32_1 = arith.constant 0 : i32
    return %arg0, %c0_i32, %c0_i32_0 : i32, i32, i32
  }
  func.func @transform_1(%arg0: i32) -> (i32, i32) {
    %c0_i32 = arith.constant 0 : i32
    %c0_i32_0 = arith.constant 0 : i32
    %c0_i32_1 = arith.constant 0 : i32
    return %c0_i32, %c0_i32_0 : i32, i32
  }
  func.func @transform_2(%arg0: i32) -> (i32, i32) {
    %c0_i32 = arith.constant 0 : i32
    %c0_i32_0 = arith.constant 0 : i32
    %c0_i32_1 = arith.constant 0 : i32
    return %c0_i32, %c0_i32_0 : i32, i32
  }
  func.func @transform_3(%arg0: i32) -> (i32, i32) {
    %c0_i32 = arith.constant 0 : i32
    %c0_i32_0 = arith.constant 0 : i32
    %c0_i32_1 = arith.constant 0 : i32
    return %c0_i32, %c0_i32_0 : i32, i32
  }
  func.func @transform_4(%arg0: i32) -> (i32, i32) {
    %c0_i32 = arith.constant 0 : i32
    %c0_i32_0 = arith.constant 0 : i32
    %c0_i32_1 = arith.constant 0 : i32
    return %c0_i32, %c0_i32_0 : i32, i32
  }
  func.func @transform_5(%arg0: i32) -> (i32, i32) {
    %c0_i32 = arith.constant 0 : i32
    %c0_i32_0 = arith.constant 0 : i32
    %c0_i32_1 = arith.constant 0 : i32
    return %c0_i32, %c0_i32_0 : i32, i32
  }
  func.func @transform_6(%arg0: i32) -> (i32, i32) {
    %c0_i32 = arith.constant 0 : i32
    %c0_i32_0 = arith.constant 0 : i32
    %c0_i32_1 = arith.constant 0 : i32
    return %c0_i32, %c0_i32_0 : i32, i32
  }
  func.func @transform_7(%arg0: i32) -> (i32, i32) {
    %c0_i32 = arith.constant 0 : i32
    %c0_i32_0 = arith.constant 0 : i32
    %c0_i32_1 = arith.constant 0 : i32
    return %c0_i32, %c0_i32_0 : i32, i32
  }
  func.func @transform_8(%arg0: i32) -> (i32, i32) {
    %c0_i32 = arith.constant 0 : i32
    %c0_i32_0 = arith.constant 0 : i32
    %c0_i32_1 = arith.constant 0 : i32
    return %c0_i32, %c0_i32_0 : i32, i32
  }
  func.func @transform_9(%arg0: i32) -> (i32, i32) {
    %c0_i32 = arith.constant 0 : i32
    %c0_i32_0 = arith.constant 0 : i32
    %c0_i32_1 = arith.constant 0 : i32
    return %c0_i32, %c0_i32_0 : i32, i32
  }
  func.func @transform_10(%arg0: i32) -> (i32, i32) {
    %c0_i32 = arith.constant 0 : i32
    %c0_i32_0 = arith.constant 0 : i32
    %c0_i32_1 = arith.constant 0 : i32
    return %c0_i32, %c0_i32_0 : i32, i32
  }
  func.func @transform_11(%arg0: i32) -> (i32, i32) {
    %c0_i32 = arith.constant 0 : i32
    %c0_i32_0 = arith.constant 0 : i32
    %c0_i32_1 = arith.constant 0 : i32
    return %c0_i32, %c0_i32_0 : i32, i32
  }
  func.func @transform_12(%arg0: i32) -> (i32, i32) {
    %c0_i32 = arith.constant 0 : i32
    %c0_i32_0 = arith.constant 0 : i32
    %c0_i32_1 = arith.constant 0 : i32
    return %c0_i32, %c0_i32_0 : i32, i32
  }
  func.func @transform_13(%arg0: i32) -> (i32, i32, i32) {
    %c0_i32 = arith.constant 0 : i32
    %c0_i32_0 = arith.constant 0 : i32
    %c0_i32_1 = arith.constant 0 : i32
    return %arg0, %c0_i32, %c0_i32_0 : i32, i32, i32
  }
}

module attributes {stable_mosaic.version = 11 : i64} {
  func.func @encoder_layer_kernel(%arg0: i32, %arg1: memref<2x8x32xf32, #tpu.memory_space<vmem>>, %arg2: memref<32x96xf32, #tpu.memory_space<vmem>>, %arg3: memref<1x96xf32, #tpu.memory_space<vmem>>, %arg4: memref<32x32xf32, #tpu.memory_space<vmem>>, %arg5: memref<1x32xf32, #tpu.memory_space<vmem>>, %arg6: memref<1x32xf32, #tpu.memory_space<vmem>>, %arg7: memref<1x32xf32, #tpu.memory_space<vmem>>, %arg8: memref<32x128xf32, #tpu.memory_space<vmem>>, %arg9: memref<1x128xf32, #tpu.memory_space<vmem>>, %arg10: memref<128x32xf32, #tpu.memory_space<vmem>>, %arg11: memref<1x32xf32, #tpu.memory_space<vmem>>, %arg12: memref<1x32xf32, #tpu.memory_space<vmem>>, %arg13: memref<1x32xf32, #tpu.memory_space<vmem>>, %arg14: memref<2x8x32xf32, #tpu.memory_space<vmem>>, %arg15: memref<16x32xf32, #tpu.memory_space<vmem>>) attributes {dimension_semantics = [#tpu.dimension_semantics<parallel>], iteration_bounds = array<i64: 3>, scalar_prefetch = 0 : i64, scratch_operands = 1 : i64, tpu.core_type = #tpu.core_type<tc>, window_params = [{transform_indices = @transform_0, window_bounds = array<i64: 2, 8, 32>}, {pipeline_mode = #tpu.pipeline_mode<synchronous>, transform_indices = @transform_1, window_bounds = array<i64: 32, 96>}, {pipeline_mode = #tpu.pipeline_mode<synchronous>, transform_indices = @transform_2, window_bounds = array<i64: 1, 96>}, {pipeline_mode = #tpu.pipeline_mode<synchronous>, transform_indices = @transform_3, window_bounds = array<i64: 32, 32>}, {pipeline_mode = #tpu.pipeline_mode<synchronous>, transform_indices = @transform_4, window_bounds = array<i64: 1, 32>}, {pipeline_mode = #tpu.pipeline_mode<synchronous>, transform_indices = @transform_5, window_bounds = array<i64: 1, 32>}, {pipeline_mode = #tpu.pipeline_mode<synchronous>, transform_indices = @transform_6, window_bounds = array<i64: 1, 32>}, {pipeline_mode = #tpu.pipeline_mode<synchronous>, transform_indices = @transform_7, window_bounds = array<i64: 32, 128>}, {pipeline_mode = #tpu.pipeline_mode<synchronous>, transform_indices = @transform_8, window_bounds = array<i64: 1, 128>}, {pipeline_mode = #tpu.pipeline_mode<synchronous>, transform_indices = @transform_9, window_bounds = array<i64: 128, 32>}, {pipeline_mode = #tpu.pipeline_mode<synchronous>, transform_indices = @transform_10, window_bounds = array<i64: 1, 32>}, {pipeline_mode = #tpu.pipeline_mode<synchronous>, transform_indices = @transform_11, window_bounds = array<i64: 1, 32>}, {pipeline_mode = #tpu.pipeline_mode<synchronous>, transform_indices = @transform_12, window_bounds = array<i64: 1, 32>}, {transform_indices = @transform_13, window_bounds = array<i64: 2, 8, 32>}]} {
    %c0 = arith.constant 0 : index
    %c0_0 = arith.constant 0 : index
    %c0_1 = arith.constant 0 : index
    %0 = vector.load %arg1[%c0, %c0_0, %c0_1] : memref<2x8x32xf32, #tpu.memory_space<vmem>>, vector<2x8x32xf32>
    %1 = vector.shape_cast %0 : vector<2x8x32xf32> to vector<16x32xf32>
    %c0_2 = arith.constant 0 : index
    %c0_3 = arith.constant 0 : index
    %2 = vector.load %arg2[%c0_2, %c0_3] : memref<32x96xf32, #tpu.memory_space<vmem>>, vector<32x96xf32>
    %cst = arith.constant dense<0.000000e+00> : vector<16x96xf32>
    %3 = tpu.matmul %1, %2, %cst {dimension_numbers = #tpu.dot_dimension_numbers<[1], [0], [0], [1], [0, 0, 1, 1], [], []>} : vector<16x32xf32>, vector<32x96xf32>, vector<16x96xf32> -> vector<16x96xf32>
    %c0_4 = arith.constant 0 : index
    %c0_5 = arith.constant 0 : index
    %4 = vector.load %arg3[%c0_4, %c0_5] : memref<1x96xf32, #tpu.memory_space<vmem>>, vector<1x96xf32>
    %5 = vector.broadcast %4 : vector<1x96xf32> to vector<16x96xf32>
    %6 = arith.addf %3, %5 : vector<16x96xf32>
    %7 = tpu.iota {dimensions = array<i32: 0>} : vector<8x8xi32>
    %8 = tpu.iota {dimensions = array<i32: 1>} : vector<8x8xi32>
    %9 = arith.cmpi sle, %8, %7 : vector<8x8xi32>
    %10 = vector.extract_strided_slice %6 {offsets = [0, 0], sizes = [16, 8], strides = [1, 1]} : vector<16x96xf32> to vector<16x8xf32>
    %11 = vector.shape_cast %10 : vector<16x8xf32> to vector<2x8x8xf32>
    %12 = vector.extract_strided_slice %6 {offsets = [0, 32], sizes = [16, 8], strides = [1, 1]} : vector<16x96xf32> to vector<16x8xf32>
    %13 = vector.shape_cast %12 : vector<16x8xf32> to vector<2x8x8xf32>
    %14 = vector.extract_strided_slice %6 {offsets = [0, 64], sizes = [16, 8], strides = [1, 1]} : vector<16x96xf32> to vector<16x8xf32>
    %15 = vector.shape_cast %14 : vector<16x8xf32> to vector<2x8x8xf32>
    "tpu.trace_start"() <{level = 10 : i32, message = "bqd,bkd->bqk"}> : () -> ()
    %cst_6 = arith.constant dense<0.000000e+00> : vector<2x8x8xf32>
    %16 = tpu.matmul %11, %13, %cst_6 {dimension_numbers = #tpu.dot_dimension_numbers<[2], [2], [1], [1], [0, 0, 0, 1, 1, 1], [0], [0]>} : vector<2x8x8xf32>, vector<2x8x8xf32>, vector<2x8x8xf32> -> vector<2x8x8xf32>
    %cst_7 = arith.constant -1.000000e+30 : f32
    "tpu.trace_stop"() : () -> ()
    %17 = vector.shape_cast %9 : vector<8x8xi1> to vector<1x8x8xi1>
    %18 = vector.broadcast %17 : vector<1x8x8xi1> to vector<2x8x8xi1>
    %19 = vector.broadcast %cst_7 : f32 to vector<2x8x8xf32>
    %20 = arith.select %18, %16, %19 : vector<2x8x8xi1>, vector<2x8x8xf32>
    %cst_8 = arith.constant dense<0xFF800000> : vector<2x8xf32>
    %21 = vector.multi_reduction <maximumf>, %20, %cst_8 [2] : vector<2x8x8xf32> to vector<2x8xf32>
    %22 = vector.shape_cast %21 : vector<2x8xf32> to vector<2x8x1xf32>
    %23 = vector.broadcast %22 : vector<2x8x1xf32> to vector<2x8x8xf32>
    %24 = arith.subf %20, %23 : vector<2x8x8xf32>
    %25 = math.exp %24 : vector<2x8x8xf32>
    %cst_9 = arith.constant dense<0.000000e+00> : vector<2x8xf32>
    %26 = vector.multi_reduction <add>, %25, %cst_9 [2] : vector<2x8x8xf32> to vector<2x8xf32>
    %27 = vector.shape_cast %26 : vector<2x8xf32> to vector<2x8x1xf32>
    %28 = tpu.reciprocal %27 {approx = true} : vector<2x8x1xf32> -> vector<2x8x1xf32>
    %29 = vector.broadcast %28 : vector<2x8x1xf32> to vector<2x8x8xf32>
    %30 = arith.mulf %25, %29 : vector<2x8x8xf32>
    "tpu.trace_start"() <{level = 10 : i32, message = "bqk,bkd->bqd"}> : () -> ()
    %cst_10 = arith.constant dense<0.000000e+00> : vector<2x8x8xf32>
    %31 = tpu.matmul %30, %15, %cst_10 {dimension_numbers = #tpu.dot_dimension_numbers<[2], [1], [1], [2], [0, 0, 0, 1, 1, 2], [0], [0]>} : vector<2x8x8xf32>, vector<2x8x8xf32>, vector<2x8x8xf32> -> vector<2x8x8xf32>
    "tpu.trace_stop"() : () -> ()
    %32 = vector.shape_cast %31 : vector<2x8x8xf32> to vector<16x8xf32>
    %c0_11 = arith.constant 0 : index
    %c0_12 = arith.constant 0 : index
    %33 = vector.load %arg15[%c0_11, %c0_12] : memref<16x32xf32, #tpu.memory_space<vmem>>, vector<16x8xf32>
    tpu.vector_store %arg15[%c0_11, %c0_12], %32 {strides = array<i32>} : memref<16x32xf32, #tpu.memory_space<vmem>>, vector<16x8xf32>,
    %34 = vector.extract_strided_slice %6 {offsets = [0, 8], sizes = [16, 8], strides = [1, 1]} : vector<16x96xf32> to vector<16x8xf32>
    %35 = vector.shape_cast %34 : vector<16x8xf32> to vector<2x8x8xf32>
    %36 = vector.extract_strided_slice %6 {offsets = [0, 40], sizes = [16, 8], strides = [1, 1]} : vector<16x96xf32> to vector<16x8xf32>
    %37 = vector.shape_cast %36 : vector<16x8xf32> to vector<2x8x8xf32>
    %38 = vector.extract_strided_slice %6 {offsets = [0, 72], sizes = [16, 8], strides = [1, 1]} : vector<16x96xf32> to vector<16x8xf32>
    %39 = vector.shape_cast %38 : vector<16x8xf32> to vector<2x8x8xf32>
    "tpu.trace_start"() <{level = 10 : i32, message = "bqd,bkd->bqk"}> : () -> ()
    %cst_13 = arith.constant dense<0.000000e+00> : vector<2x8x8xf32>
    %40 = tpu.matmul %35, %37, %cst_13 {dimension_numbers = #tpu.dot_dimension_numbers<[2], [2], [1], [1], [0, 0, 0, 1, 1, 1], [0], [0]>} : vector<2x8x8xf32>, vector<2x8x8xf32>, vector<2x8x8xf32> -> vector<2x8x8xf32>
    %cst_14 = arith.constant -1.000000e+30 : f32
    "tpu.trace_stop"() : () -> ()
    %41 = vector.shape_cast %9 : vector<8x8xi1> to vector<1x8x8xi1>
    %42 = vector.broadcast %41 : vector<1x8x8xi1> to vector<2x8x8xi1>
    %43 = vector.broadcast %cst_14 : f32 to vector<2x8x8xf32>
    %44 = arith.select %42, %40, %43 : vector<2x8x8xi1>, vector<2x8x8xf32>
    %cst_15 = arith.constant dense<0xFF800000> : vector<2x8xf32>
    %45 = vector.multi_reduction <maximumf>, %44, %cst_15 [2] : vector<2x8x8xf32> to vector<2x8xf32>
    %46 = vector.shape_cast %45 : vector<2x8xf32> to vector<2x8x1xf32>
    %47 = vector.broadcast %46 : vector<2x8x1xf32> to vector<2x8x8xf32>
    %48 = arith.subf %44, %47 : vector<2x8x8xf32>
    %49 = math.exp %48 : vector<2x8x8xf32>
    %cst_16 = arith.constant dense<0.000000e+00> : vector<2x8xf32>
    %50 = vector.multi_reduction <add>, %49, %cst_16 [2] : vector<2x8x8xf32> to vector<2x8xf32>
    %51 = vector.shape_cast %50 : vector<2x8xf32> to vector<2x8x1xf32>
    %52 = tpu.reciprocal %51 {approx = true} : vector<2x8x1xf32> -> vector<2x8x1xf32>
    %53 = vector.broadcast %52 : vector<2x8x1xf32> to vector<2x8x8xf32>
    %54 = arith.mulf %49, %53 : vector<2x8x8xf32>
    "tpu.trace_start"() <{level = 10 : i32, message = "bqk,bkd->bqd"}> : () -> ()
    %cst_17 = arith.constant dense<0.000000e+00> : vector<2x8x8xf32>
    %55 = tpu.matmul %54, %39, %cst_17 {dimension_numbers = #tpu.dot_dimension_numbers<[2], [1], [1], [2], [0, 0, 0, 1, 1, 2], [0], [0]>} : vector<2x8x8xf32>, vector<2x8x8xf32>, vector<2x8x8xf32> -> vector<2x8x8xf32>
    "tpu.trace_stop"() : () -> ()
    %56 = vector.shape_cast %55 : vector<2x8x8xf32> to vector<16x8xf32>
    %c0_18 = arith.constant 0 : index
    %c8 = arith.constant 8 : index
    %57 = vector.load %arg15[%c0_18, %c8] : memref<16x32xf32, #tpu.memory_space<vmem>>, vector<16x8xf32>
    tpu.vector_store %arg15[%c0_18, %c8], %56 {strides = array<i32>} : memref<16x32xf32, #tpu.memory_space<vmem>>, vector<16x8xf32>,
    %58 = vector.extract_strided_slice %6 {offsets = [0, 16], sizes = [16, 8], strides = [1, 1]} : vector<16x96xf32> to vector<16x8xf32>
    %59 = vector.shape_cast %58 : vector<16x8xf32> to vector<2x8x8xf32>
    %60 = vector.extract_strided_slice %6 {offsets = [0, 48], sizes = [16, 8], strides = [1, 1]} : vector<16x96xf32> to vector<16x8xf32>
    %61 = vector.shape_cast %60 : vector<16x8xf32> to vector<2x8x8xf32>
    %62 = vector.extract_strided_slice %6 {offsets = [0, 80], sizes = [16, 8], strides = [1, 1]} : vector<16x96xf32> to vector<16x8xf32>
    %63 = vector.shape_cast %62 : vector<16x8xf32> to vector<2x8x8xf32>
    "tpu.trace_start"() <{level = 10 : i32, message = "bqd,bkd->bqk"}> : () -> ()
    %cst_19 = arith.constant dense<0.000000e+00> : vector<2x8x8xf32>
    %64 = tpu.matmul %59, %61, %cst_19 {dimension_numbers = #tpu.dot_dimension_numbers<[2], [2], [1], [1], [0, 0, 0, 1, 1, 1], [0], [0]>} : vector<2x8x8xf32>, vector<2x8x8xf32>, vector<2x8x8xf32> -> vector<2x8x8xf32>
    %cst_20 = arith.constant -1.000000e+30 : f32
    "tpu.trace_stop"() : () -> ()
    %65 = vector.shape_cast %9 : vector<8x8xi1> to vector<1x8x8xi1>
    %66 = vector.broadcast %65 : vector<1x8x8xi1> to vector<2x8x8xi1>
    %67 = vector.broadcast %cst_20 : f32 to vector<2x8x8xf32>
    %68 = arith.select %66, %64, %67 : vector<2x8x8xi1>, vector<2x8x8xf32>
    %cst_21 = arith.constant dense<0xFF800000> : vector<2x8xf32>
    %69 = vector.multi_reduction <maximumf>, %68, %cst_21 [2] : vector<2x8x8xf32> to vector<2x8xf32>
    %70 = vector.shape_cast %69 : vector<2x8xf32> to vector<2x8x1xf32>
    %71 = vector.broadcast %70 : vector<2x8x1xf32> to vector<2x8x8xf32>
    %72 = arith.subf %68, %71 : vector<2x8x8xf32>
    %73 = math.exp %72 : vector<2x8x8xf32>
    %cst_22 = arith.constant dense<0.000000e+00> : vector<2x8xf32>
    %74 = vector.multi_reduction <add>, %73, %cst_22 [2] : vector<2x8x8xf32> to vector<2x8xf32>
    %75 = vector.shape_cast %74 : vector<2x8xf32> to vector<2x8x1xf32>
    %76 = tpu.reciprocal %75 {approx = true} : vector<2x8x1xf32> -> vector<2x8x1xf32>
    %77 = vector.broadcast %76 : vector<2x8x1xf32> to vector<2x8x8xf32>
    %78 = arith.mulf %73, %77 : vector<2x8x8xf32>
    "tpu.trace_start"() <{level = 10 : i32, message = "bqk,bkd->bqd"}> : () -> ()
    %cst_23 = arith.constant dense<0.000000e+00> : vector<2x8x8xf32>
    %79 = tpu.matmul %78, %63, %cst_23 {dimension_numbers = #tpu.dot_dimension_numbers<[2], [1], [1], [2], [0, 0, 0, 1, 1, 2], [0], [0]>} : vector<2x8x8xf32>, vector<2x8x8xf32>, vector<2x8x8xf32> -> vector<2x8x8xf32>
    "tpu.trace_stop"() : () -> ()
    %80 = vector.shape_cast %79 : vector<2x8x8xf32> to vector<16x8xf32>
    %c0_24 = arith.constant 0 : index
    %c16 = arith.constant 16 : index
    %81 = vector.load %arg15[%c0_24, %c16] : memref<16x32xf32, #tpu.memory_space<vmem>>, vector<16x8xf32>
    tpu.vector_store %arg15[%c0_24, %c16], %80 {strides = array<i32>} : memref<16x32xf32, #tpu.memory_space<vmem>>, vector<16x8xf32>,
    %82 = vector.extract_strided_slice %6 {offsets = [0, 24], sizes = [16, 8], strides = [1, 1]} : vector<16x96xf32> to vector<16x8xf32>
    %83 = vector.shape_cast %82 : vector<16x8xf32> to vector<2x8x8xf32>
    %84 = vector.extract_strided_slice %6 {offsets = [0, 56], sizes = [16, 8], strides = [1, 1]} : vector<16x96xf32> to vector<16x8xf32>
    %85 = vector.shape_cast %84 : vector<16x8xf32> to vector<2x8x8xf32>
    %86 = vector.extract_strided_slice %6 {offsets = [0, 88], sizes = [16, 8], strides = [1, 1]} : vector<16x96xf32> to vector<16x8xf32>
    %87 = vector.shape_cast %86 : vector<16x8xf32> to vector<2x8x8xf32>
    "tpu.trace_start"() <{level = 10 : i32, message = "bqd,bkd->bqk"}> : () -> ()
    %cst_25 = arith.constant dense<0.000000e+00> : vector<2x8x8xf32>
    %88 = tpu.matmul %83, %85, %cst_25 {dimension_numbers = #tpu.dot_dimension_numbers<[2], [2], [1], [1], [0, 0, 0, 1, 1, 1], [0], [0]>} : vector<2x8x8xf32>, vector<2x8x8xf32>, vector<2x8x8xf32> -> vector<2x8x8xf32>
    %cst_26 = arith.constant -1.000000e+30 : f32
    "tpu.trace_stop"() : () -> ()
    %89 = vector.shape_cast %9 : vector<8x8xi1> to vector<1x8x8xi1>
    %90 = vector.broadcast %89 : vector<1x8x8xi1> to vector<2x8x8xi1>
    %91 = vector.broadcast %cst_26 : f32 to vector<2x8x8xf32>
    %92 = arith.select %90, %88, %91 : vector<2x8x8xi1>, vector<2x8x8xf32>
    %cst_27 = arith.constant dense<0xFF800000> : vector<2x8xf32>
    %93 = vector.multi_reduction <maximumf>, %92, %cst_27 [2] : vector<2x8x8xf32> to vector<2x8xf32>
    %94 = vector.shape_cast %93 : vector<2x8xf32> to vector<2x8x1xf32>
    %95 = vector.broadcast %94 : vector<2x8x1xf32> to vector<2x8x8xf32>
    %96 = arith.subf %92, %95 : vector<2x8x8xf32>
    %97 = math.exp %96 : vector<2x8x8xf32>
    %cst_28 = arith.constant dense<0.000000e+00> : vector<2x8xf32>
    %98 = vector.multi_reduction <add>, %97, %cst_28 [2] : vector<2x8x8xf32> to vector<2x8xf32>
    %99 = vector.shape_cast %98 : vector<2x8xf32> to vector<2x8x1xf32>
    %100 = tpu.reciprocal %99 {approx = true} : vector<2x8x1xf32> -> vector<2x8x1xf32>
    %101 = vector.broadcast %100 : vector<2x8x1xf32> to vector<2x8x8xf32>
    %102 = arith.mulf %97, %101 : vector<2x8x8xf32>
    "tpu.trace_start"() <{level = 10 : i32, message = "bqk,bkd->bqd"}> : () -> ()
    %cst_29 = arith.constant dense<0.000000e+00> : vector<2x8x8xf32>
    %103 = tpu.matmul %102, %87, %cst_29 {dimension_numbers = #tpu.dot_dimension_numbers<[2], [1], [1], [2], [0, 0, 0, 1, 1, 2], [0], [0]>} : vector<2x8x8xf32>, vector<2x8x8xf32>, vector<2x8x8xf32> -> vector<2x8x8xf32>
    "tpu.trace_stop"() : () -> ()
    %104 = vector.shape_cast %103 : vector<2x8x8xf32> to vector<16x8xf32>
    %c0_30 = arith.constant 0 : index
    %c24 = arith.constant 24 : index
    %105 = vector.load %arg15[%c0_30, %c24] : memref<16x32xf32, #tpu.memory_space<vmem>>, vector<16x8xf32>
    tpu.vector_store %arg15[%c0_30, %c24], %104 {strides = array<i32>} : memref<16x32xf32, #tpu.memory_space<vmem>>, vector<16x8xf32>,
    %c0_31 = arith.constant 0 : index
    %c0_32 = arith.constant 0 : index
    %106 = vector.load %arg15[%c0_31, %c0_32] : memref<16x32xf32, #tpu.memory_space<vmem>>, vector<16x32xf32>
    %c0_33 = arith.constant 0 : index
    %c0_34 = arith.constant 0 : index
    %107 = vector.load %arg4[%c0_33, %c0_34] : memref<32x32xf32, #tpu.memory_space<vmem>>, vector<32x32xf32>
    %cst_35 = arith.constant dense<0.000000e+00> : vector<16x32xf32>
    %108 = tpu.matmul %106, %107, %cst_35 {dimension_numbers = #tpu.dot_dimension_numbers<[1], [0], [0], [1], [0, 0, 1, 1], [], []>} : vector<16x32xf32>, vector<32x32xf32>, vector<16x32xf32> -> vector<16x32xf32>
    %c0_36 = arith.constant 0 : index
    %c0_37 = arith.constant 0 : index
    %109 = vector.load %arg5[%c0_36, %c0_37] : memref<1x32xf32, #tpu.memory_space<vmem>>, vector<1x32xf32>
    %110 = vector.broadcast %109 : vector<1x32xf32> to vector<16x32xf32>
    %111 = arith.addf %108, %110 : vector<16x32xf32>
    %c0_38 = arith.constant 0 : index
    %c0_39 = arith.constant 0 : index
    %112 = vector.load %arg6[%c0_38, %c0_39] : memref<1x32xf32, #tpu.memory_space<vmem>>, vector<1x32xf32>
    %113 = vector.broadcast %112 : vector<1x32xf32> to vector<16x32xf32>
    %114 = arith.mulf %111, %113 : vector<16x32xf32>
    %c0_40 = arith.constant 0 : index
    %c0_41 = arith.constant 0 : index
    %115 = vector.load %arg7[%c0_40, %c0_41] : memref<1x32xf32, #tpu.memory_space<vmem>>, vector<1x32xf32>
    %116 = vector.broadcast %115 : vector<1x32xf32> to vector<16x32xf32>
    %117 = arith.addf %114, %116 : vector<16x32xf32>
    %118 = arith.addf %117, %1 : vector<16x32xf32>
    %c0_42 = arith.constant 0 : index
    %c0_43 = arith.constant 0 : index
    %119 = vector.load %arg8[%c0_42, %c0_43] : memref<32x128xf32, #tpu.memory_space<vmem>>, vector<32x128xf32>
    %cst_44 = arith.constant dense<0.000000e+00> : vector<16x128xf32>
    %120 = tpu.matmul %118, %119, %cst_44 {dimension_numbers = #tpu.dot_dimension_numbers<[1], [0], [0], [1], [0, 0, 1, 1], [], []>} : vector<16x32xf32>, vector<32x128xf32>, vector<16x128xf32> -> vector<16x128xf32>
    %c0_45 = arith.constant 0 : index
    %c0_46 = arith.constant 0 : index
    %121 = vector.load %arg9[%c0_45, %c0_46] : memref<1x128xf32, #tpu.memory_space<vmem>>, vector<1x128xf32>
    %122 = vector.broadcast %121 : vector<1x128xf32> to vector<16x128xf32>
    %123 = arith.addf %120, %122 : vector<16x128xf32>
    %cst_47 = arith.constant 0.000000e+00 : f32
    %124 = vector.broadcast %cst_47 : f32 to vector<16x128xf32>
    %125 = arith.maximumf %123, %124 : vector<16x128xf32>
    %c0_48 = arith.constant 0 : index
    %c0_49 = arith.constant 0 : index
    %126 = vector.load %arg10[%c0_48, %c0_49] : memref<128x32xf32, #tpu.memory_space<vmem>>, vector<128x32xf32>
    %cst_50 = arith.constant dense<0.000000e+00> : vector<16x32xf32>
    %127 = tpu.matmul %125, %126, %cst_50 {dimension_numbers = #tpu.dot_dimension_numbers<[1], [0], [0], [1], [0, 0, 1, 1], [], []>} : vector<16x128xf32>, vector<128x32xf32>, vector<16x32xf32> -> vector<16x32xf32>
    %c0_51 = arith.constant 0 : index
    %c0_52 = arith.constant 0 : index
    %128 = vector.load %arg11[%c0_51, %c0_52] : memref<1x32xf32, #tpu.memory_space<vmem>>, vector<1x32xf32>
    %129 = vector.broadcast %128 : vector<1x32xf32> to vector<16x32xf32>
    %130 = arith.addf %127, %129 : vector<16x32xf32>
    %c0_53 = arith.constant 0 : index
    %c0_54 = arith.constant 0 : index
    %131 = vector.load %arg12[%c0_53, %c0_54] : memref<1x32xf32, #tpu.memory_space<vmem>>, vector<1x32xf32>
    %132 = vector.broadcast %131 : vector<1x32xf32> to vector<16x32xf32>
    %133 = arith.mulf %130, %132 : vector<16x32xf32>
    %c0_55 = arith.constant 0 : index
    %c0_56 = arith.constant 0 : index
    %134 = vector.load %arg13[%c0_55, %c0_56] : memref<1x32xf32, #tpu.memory_space<vmem>>, vector<1x32xf32>
    %135 = vector.broadcast %134 : vector<1x32xf32> to vector<16x32xf32>
    %136 = arith.addf %133, %135 : vector<16x32xf32>
    %137 = arith.addf %136, %118 : vector<16x32xf32>
    %138 = vector.shape_cast %137 : vector<16x32xf32> to vector<2x8x32xf32>
    %c0_57 = arith.constant 0 : index
    %c0_58 = arith.constant 0 : index
    %c0_59 = arith.constant 0 : index
    %139 = vector.load %arg14[%c0_57, %c0_58, %c0_59] : memref<2x8x32xf32, #tpu.memory_space<vmem>>, vector<2x8x32xf32>
    tpu.vector_store %arg14[%c0_57, %c0_58, %c0_59], %138 {strides = array<i32>} : memref<2x8x32xf32, #tpu.memory_space<vmem>>, vector<2x8x32xf32>,
    return
  }
  func.func @transform_0(%arg0: i32) -> (i32, i32, i32) {
    %c0_i32 = arith.constant 0 : i32
    %c0_i32_0 = arith.constant 0 : i32
    %c0_i32_1 = arith.constant 0 : i32
    return %arg0, %c0_i32, %c0_i32_0 : i32, i32, i32
  }
  func.func @transform_1(%arg0: i32) -> (i32, i32) {
    %c0_i32 = arith.constant 0 : i32
    %c0_i32_0 = arith.constant 0 : i32
    %c0_i32_1 = arith.constant 0 : i32
    return %c0_i32, %c0_i32_0 : i32, i32
  }
  func.func @transform_2(%arg0: i32) -> (i32, i32) {
    %c0_i32 = arith.constant 0 : i32
    %c0_i32_0 = arith.constant 0 : i32
    %c0_i32_1 = arith.constant 0 : i32
    return %c0_i32, %c0_i32_0 : i32, i32
  }
  func.func @transform_3(%arg0: i32) -> (i32, i32) {
    %c0_i32 = arith.constant 0 : i32
    %c0_i32_0 = arith.constant 0 : i32
    %c0_i32_1 = arith.constant 0 : i32
    return %c0_i32, %c0_i32_0 : i32, i32
  }
  func.func @transform_4(%arg0: i32) -> (i32, i32) {
    %c0_i32 = arith.constant 0 : i32
    %c0_i32_0 = arith.constant 0 : i32
    %c0_i32_1 = arith.constant 0 : i32
    return %c0_i32, %c0_i32_0 : i32, i32
  }
  func.func @transform_5(%arg0: i32) -> (i32, i32) {
    %c0_i32 = arith.constant 0 : i32
    %c0_i32_0 = arith.constant 0 : i32
    %c0_i32_1 = arith.constant 0 : i32
    return %c0_i32, %c0_i32_0 : i32, i32
  }
  func.func @transform_6(%arg0: i32) -> (i32, i32) {
    %c0_i32 = arith.constant 0 : i32
    %c0_i32_0 = arith.constant 0 : i32
    %c0_i32_1 = arith.constant 0 : i32
    return %c0_i32, %c0_i32_0 : i32, i32
  }
  func.func @transform_7(%arg0: i32) -> (i32, i32) {
    %c0_i32 = arith.constant 0 : i32
    %c0_i32_0 = arith.constant 0 : i32
    %c0_i32_1 = arith.constant 0 : i32
    return %c0_i32, %c0_i32_0 : i32, i32
  }
  func.func @transform_8(%arg0: i32) -> (i32, i32) {
    %c0_i32 = arith.constant 0 : i32
    %c0_i32_0 = arith.constant 0 : i32
    %c0_i32_1 = arith.constant 0 : i32
    return %c0_i32, %c0_i32_0 : i32, i32
  }
  func.func @transform_9(%arg0: i32) -> (i32, i32) {
    %c0_i32 = arith.constant 0 : i32
    %c0_i32_0 = arith.constant 0 : i32
    %c0_i32_1 = arith.constant 0 : i32
    return %c0_i32, %c0_i32_0 : i32, i32
  }
  func.func @transform_10(%arg0: i32) -> (i32, i32) {
    %c0_i32 = arith.constant 0 : i32
    %c0_i32_0 = arith.constant 0 : i32
    %c0_i32_1 = arith.constant 0 : i32
    return %c0_i32, %c0_i32_0 : i32, i32
  }
  func.func @transform_11(%arg0: i32) -> (i32, i32) {
    %c0_i32 = arith.constant 0 : i32
    %c0_i32_0 = arith.constant 0 : i32
    %c0_i32_1 = arith.constant 0 : i32
    return %c0_i32, %c0_i32_0 : i32, i32
  }
  func.func @transform_12(%arg0: i32) -> (i32, i32) {
    %c0_i32 = arith.constant 0 : i32
    %c0_i32_0 = arith.constant 0 : i32
    %c0_i32_1 = arith.constant 0 : i32
    return %c0_i32, %c0_i32_0 : i32, i32
  }
  func.func @transform_13(%arg0: i32) -> (i32, i32, i32) {
    %c0_i32 = arith.constant 0 : i32
    %c0_i32_0 = arith.constant 0 : i32
    %c0_i32_1 = arith.constant 0 : i32
    return %arg0, %c0_i32, %c0_i32_0 : i32, i32, i32
  }
}

</mosaic_0001>

<llo_original>
// kernel: tpu_custom_call.1
$region0: #{tpu_custom_call.1}
  #allocation0 [shape = 'u32[]', space=smem, size = 0x4, offset = 0x4, fixed_abs, tag = 'smem constant byte address 0x4 - core index']
  #allocation1 [shape = 'u32[72,128]{1,0:T(1,128)}', space=vmem, size = 0x9000, scoped, tag = 'internal scratch']
  #allocation2 [shape = 'f32[16,32]{1,0:T(8,128)}', space=vmem, size = 0x2000, scoped, tag = 'scratch operand']
  %s0 = inlined_call_operand.vmem [shape: f32[6,8,32], index: 0, kind: input, shape index: {}]
  %s1 = inlined_call_operand.vmem [shape: f32[32,96], index: 1, kind: input, shape index: {}]
  %s2 = inlined_call_operand.vmem [shape: f32[1,96], index: 2, kind: input, shape index: {}]
  %s3 = inlined_call_operand.vmem [shape: f32[32,32], index: 3, kind: input, shape index: {}]
  %s4 = inlined_call_operand.vmem [shape: f32[1,32], index: 4, kind: input, shape index: {}]
  %s5 = inlined_call_operand.vmem [shape: f32[1,32], index: 5, kind: input, shape index: {}]
  %s6 = inlined_call_operand.vmem [shape: f32[1,32], index: 6, kind: input, shape index: {}]
  %s7 = inlined_call_operand.vmem [shape: f32[32,128], index: 7, kind: input, shape index: {}]
  %s8 = inlined_call_operand.vmem [shape: f32[1,128], index: 8, kind: input, shape index: {}]
  %s9 = inlined_call_operand.vmem [shape: f32[128,32], index: 9, kind: input, shape index: {}]
  %s10 = inlined_call_operand.vmem [shape: f32[1,32], index: 10, kind: input, shape index: {}]
  %s11 = inlined_call_operand.vmem [shape: f32[1,32], index: 11, kind: input, shape index: {}]
  %s12 = inlined_call_operand.vmem [shape: f32[1,32], index: 12, kind: input, shape index: {}]
  %s13 = inlined_call_operand.hbm [shape: f32[6,8,32], index: 13, kind: output, shape index: {}]
  %s14 = sld [smem:[#allocation0]]
  $region85: #{tpu_custom_call.1} parent=0
    _
  %s16 = ssub.s32 1, %s14
  %s17 = scalar_select 0, %s16, %s14
  $region1: #{tpu_custom_call.1} parent=0
    #allocation3 [shape = 'u8[16384]{0}', space=vmem, size = 0x4000, scoped, tag = 'output window, operand 0']
    #allocation4 [shape = 's32[2]{0}', space=sflag, size = 0x8, scoped, tag = 'scoped memory for tpu_custom_call.1']
    %18 = vsyncpa [#allocation4], 0
    %s19 = scalar_lea.sflag [#allocation4], 1
    %20 = vsyncpa %s19, 0
    loop: start=0, step=1, limit=5
    $region2: #{tpu_custom_call.1} parent=1 // loop_pre_header
      _
    $region3: #{tpu_custom_call.1} parent=1 // loop_header
      %s22 = sphi 0, %s26
      %p23 = scmp.ge.s32.totalorder %s22, 5
      %s32 = sphi 0, %s34
      %s35 = sphi 0, %s32
      %s36 = sphi 0, %s35
      %s52 = sphi 0, %s36
      %s56 = sphi 0, %s56
      %s58 = sphi 0, %s56
      %s59 = sphi 0, %s58
      %s73 = sphi 0, %s59
      %s77 = sphi 0, %s77
      %s79 = sphi 0, %s77
      %s80 = sphi 0, %s79
      %s94 = sphi 0, %s80
      %s98 = sphi 0, %s98
      %s100 = sphi 0, %s98
      %s101 = sphi 0, %s100
      %s115 = sphi 0, %s101
      %s119 = sphi 0, %s119
      %s121 = sphi 0, %s119
      %s122 = sphi 0, %s121
      %s136 = sphi 0, %s122
      %s140 = sphi 0, %s140
      %s142 = sphi 0, %s140
      %s143 = sphi 0, %s142
      %s157 = sphi 0, %s143
      %s161 = sphi 0, %s161
      %s163 = sphi 0, %s161
      %s164 = sphi 0, %s163
      %s178 = sphi 0, %s164
      %s182 = sphi 0, %s182
      %s184 = sphi 0, %s182
      %s185 = sphi 0, %s184
      %s199 = sphi 0, %s185
      %s203 = sphi 0, %s203
      %s205 = sphi 0, %s203
      %s206 = sphi 0, %s205
      %s220 = sphi 0, %s206
      %s224 = sphi 0, %s224
      %s226 = sphi 0, %s224
      %s227 = sphi 0, %s226
      %s241 = sphi 0, %s227
      %s245 = sphi 0, %s245
      %s247 = sphi 0, %s245
      %s248 = sphi 0, %s247
      %s262 = sphi 0, %s248
      %s266 = sphi 0, %s266
      %s268 = sphi 0, %s266
      %s269 = sphi 0, %s268
      %s283 = sphi 0, %s269
      %s287 = sphi 0, %s287
      %s289 = sphi 0, %s287
      %s290 = sphi 0, %s289
      %s304 = sphi 0, %s290
      %s310 = sphi 0, %s312
      %s313 = sphi 0, %s310
      %s314 = sphi 0, %s313
      %s330 = sphi 0, %s314
    $region4: #{tpu_custom_call.1} parent=1 // loop_header_branch
      %25 = sbr.rel (%p23) target = $region8
    $region5: #{tpu_custom_call.1} parent=1 // loop_body
      %s27 = ssub.s32 %s22, 1
      %s28 = ssub.s32 %s22, 2
      %s29 = sadd.s32 %s22, 1
      %s30 = ssub.s32 %s22, %s29
      %p31 = scmp.eq.s32.totalorder %s30, 0
      %s33 = sadd.s32 %s32, 1
      %s34 = scalar_select %p31, %s32, %s33
      %p37 = pneg %p31
      %p38 = scmp.eq.s32.totalorder %s22, 2
      %p39 = por %p37, %p38
      %p40 = scmp.ne.s32.totalorder %s32, %s35
      %p41 = scmp.eq.s32.totalorder %s22, 0
      %p42 = por %p40, %p41
      %p43 = scmp.ne.s32.totalorder %s32, %s35
      %p44 = scmp.eq.s32.totalorder %s27, 2
      %p45 = por %p43, %p44
      %p46 = scmp.ne.s32.totalorder %s35, %s36
      %p47 = scmp.eq.s32.totalorder %s27, 0
      %p48 = por %p46, %p47
      %p49 = scmp.ne.s32.totalorder %s35, %s36
      %p50 = scmp.eq.s32.totalorder %s28, 2
      %p51 = por %p49, %p50
      %p53 = scmp.ne.s32.totalorder %s36, %s52
      %p54 = scmp.eq.s32.totalorder %s28, 0
      %p55 = por %p53, %p54
      %s57 = sadd.s32 %s56, 1
      %p60 = scmp.eq.s32.totalorder %s22, 2
      %p61 = scmp.ne.s32.totalorder %s56, %s58
      %p62 = scmp.eq.s32.totalorder %s22, 0
      %p63 = por %p61, %p62
      %p64 = scmp.ne.s32.totalorder %s56, %s58
      %p65 = scmp.eq.s32.totalorder %s27, 2
      %p66 = por %p64, %p65
      %p67 = scmp.ne.s32.totalorder %s58, %s59
      %p68 = scmp.eq.s32.totalorder %s27, 0
      %p69 = por %p67, %p68
      %p70 = scmp.ne.s32.totalorder %s58, %s59
      %p71 = scmp.eq.s32.totalorder %s28, 2
      %p72 = por %p70, %p71
      %p74 = scmp.ne.s32.totalorder %s59, %s73
      %p75 = scmp.eq.s32.totalorder %s28, 0
      %p76 = por %p74, %p75
      %s78 = sadd.s32 %s77, 1
      %p81 = scmp.eq.s32.totalorder %s22, 2
      %p82 = scmp.ne.s32.totalorder %s77, %s79
      %p83 = scmp.eq.s32.totalorder %s22, 0
      %p84 = por %p82, %p83
      %p85 = scmp.ne.s32.totalorder %s77, %s79
      %p86 = scmp.eq.s32.totalorder %s27, 2
      %p87 = por %p85, %p86
      %p88 = scmp.ne.s32.totalorder %s79, %s80
      %p89 = scmp.eq.s32.totalorder %s27, 0
      %p90 = por %p88, %p89
      %p91 = scmp.ne.s32.totalorder %s79, %s80
      %p92 = scmp.eq.s32.totalorder %s28, 2
      %p93 = por %p91, %p92
      %p95 = scmp.ne.s32.totalorder %s80, %s94
      %p96 = scmp.eq.s32.totalorder %s28, 0
      %p97 = por %p95, %p96
      %s99 = sadd.s32 %s98, 1
      %p102 = scmp.eq.s32.totalorder %s22, 2
      %p103 = scmp.ne.s32.totalorder %s98, %s100
      %p104 = scmp.eq.s32.totalorder %s22, 0
      %p105 = por %p103, %p104
      %p106 = scmp.ne.s32.totalorder %s98, %s100
      %p107 = scmp.eq.s32.totalorder %s27, 2
      %p108 = por %p106, %p107
      %p109 = scmp.ne.s32.totalorder %s100, %s101
      %p110 = scmp.eq.s32.totalorder %s27, 0
      %p111 = por %p109, %p110
      %p112 = scmp.ne.s32.totalorder %s100, %s101
      %p113 = scmp.eq.s32.totalorder %s28, 2
      %p114 = por %p112, %p113
      %p116 = scmp.ne.s32.totalorder %s101, %s115
      %p117 = scmp.eq.s32.totalorder %s28, 0
      %p118 = por %p116, %p117
      %s120 = sadd.s32 %s119, 1
      %p123 = scmp.eq.s32.totalorder %s22, 2
      %p124 = scmp.ne.s32.totalorder %s119, %s121
      %p125 = scmp.eq.s32.totalorder %s22, 0
      %p126 = por %p124, %p125
      %p127 = scmp.ne.s32.totalorder %s119, %s121
      %p128 = scmp.eq.s32.totalorder %s27, 2
      %p129 = por %p127, %p128
      %p130 = scmp.ne.s32.totalorder %s121, %s122
      %p131 = scmp.eq.s32.totalorder %s27, 0
      %p132 = por %p130, %p131
      %p133 = scmp.ne.s32.totalorder %s121, %s122
      %p134 = scmp.eq.s32.totalorder %s28, 2
      %p135 = por %p133, %p134
      %p137 = scmp.ne.s32.totalorder %s122, %s136
      %p138 = scmp.eq.s32.totalorder %s28, 0
      %p139 = por %p137, %p138
      %s141 = sadd.s32 %s140, 1
      %p144 = scmp.eq.s32.totalorder %s22, 2
      %p145 = scmp.ne.s32.totalorder %s140, %s142
      %p146 = scmp.eq.s32.totalorder %s22, 0
      %p147 = por %p145, %p146
      %p148 = scmp.ne.s32.totalorder %s140, %s142
      %p149 = scmp.eq.s32.totalorder %s27, 2
      %p150 = por %p148, %p149
      %p151 = scmp.ne.s32.totalorder %s142, %s143
      %p152 = scmp.eq.s32.totalorder %s27, 0
      %p153 = por %p151, %p152
      %p154 = scmp.ne.s32.totalorder %s142, %s143
      %p155 = scmp.eq.s32.totalorder %s28, 2
      %p156 = por %p154, %p155
      %p158 = scmp.ne.s32.totalorder %s143, %s157
      %p159 = scmp.eq.s32.totalorder %s28, 0
      %p160 = por %p158, %p159
      %s162 = sadd.s32 %s161, 1
      %p165 = scmp.eq.s32.totalorder %s22, 2
      %p166 = scmp.ne.s32.totalorder %s161, %s163
      %p167 = scmp.eq.s32.totalorder %s22, 0
      %p168 = por %p166, %p167
      %p169 = scmp.ne.s32.totalorder %s161, %s163
      %p170 = scmp.eq.s32.totalorder %s27, 2
      %p171 = por %p169, %p170
      %p172 = scmp.ne.s32.totalorder %s163, %s164
      %p173 = scmp.eq.s32.totalorder %s27, 0
      %p174 = por %p172, %p173
      %p175 = scmp.ne.s32.totalorder %s163, %s164
      %p176 = scmp.eq.s32.totalorder %s28, 2
      %p177 = por %p175, %p176
      %p179 = scmp.ne.s32.totalorder %s164, %s178
      %p180 = scmp.eq.s32.totalorder %s28, 0
      %p181 = por %p179, %p180
      %s183 = sadd.s32 %s182, 1
      %p186 = scmp.eq.s32.totalorder %s22, 2
      %p187 = scmp.ne.s32.totalorder %s182, %s184
      %p188 = scmp.eq.s32.totalorder %s22, 0
      %p189 = por %p187, %p188
      %p190 = scmp.ne.s32.totalorder %s182, %s184
      %p191 = scmp.eq.s32.totalorder %s27, 2
      %p192 = por %p190, %p191
      %p193 = scmp.ne.s32.totalorder %s184, %s185
      %p194 = scmp.eq.s32.totalorder %s27, 0
      %p195 = por %p193, %p194
      %p196 = scmp.ne.s32.totalorder %s184, %s185
      %p197 = scmp.eq.s32.totalorder %s28, 2
      %p198 = por %p196, %p197
      %p200 = scmp.ne.s32.totalorder %s185, %s199
      %p201 = scmp.eq.s32.totalorder %s28, 0
      %p202 = por %p200, %p201
      %s204 = sadd.s32 %s203, 1
      %p207 = scmp.eq.s32.totalorder %s22, 2
      %p208 = scmp.ne.s32.totalorder %s203, %s205
      %p209 = scmp.eq.s32.totalorder %s22, 0
      %p210 = por %p208, %p209
      %p211 = scmp.ne.s32.totalorder %s203, %s205
      %p212 = scmp.eq.s32.totalorder %s27, 2
      %p213 = por %p211, %p212
      %p214 = scmp.ne.s32.totalorder %s205, %s206
      %p215 = scmp.eq.s32.totalorder %s27, 0
      %p216 = por %p214, %p215
      %p217 = scmp.ne.s32.totalorder %s205, %s206
      %p218 = scmp.eq.s32.totalorder %s28, 2
      %p219 = por %p217, %p218
      %p221 = scmp.ne.s32.totalorder %s206, %s220
      %p222 = scmp.eq.s32.totalorder %s28, 0
      %p223 = por %p221, %p222
      %s225 = sadd.s32 %s224, 1
      %p228 = scmp.eq.s32.totalorder %s22, 2
      %p229 = scmp.ne.s32.totalorder %s224, %s226
      %p230 = scmp.eq.s32.totalorder %s22, 0
      %p231 = por %p229, %p230
      %p232 = scmp.ne.s32.totalorder %s224, %s226
      %p233 = scmp.eq.s32.totalorder %s27, 2
      %p234 = por %p232, %p233
      %p235 = scmp.ne.s32.totalorder %s226, %s227
      %p236 = scmp.eq.s32.totalorder %s27, 0
      %p237 = por %p235, %p236
      %p238 = scmp.ne.s32.totalorder %s226, %s227
      %p239 = scmp.eq.s32.totalorder %s28, 2
      %p240 = por %p238, %p239
      %p242 = scmp.ne.s32.totalorder %s227, %s241
      %p243 = scmp.eq.s32.totalorder %s28, 0
      %p244 = por %p242, %p243
      %s246 = sadd.s32 %s245, 1
      %p249 = scmp.eq.s32.totalorder %s22, 2
      %p250 = scmp.ne.s32.totalorder %s245, %s247
      %p251 = scmp.eq.s32.totalorder %s22, 0
      %p252 = por %p250, %p251
      %p253 = scmp.ne.s32.totalorder %s245, %s247
      %p254 = scmp.eq.s32.totalorder %s27, 2
      %p255 = por %p253, %p254
      %p256 = scmp.ne.s32.totalorder %s247, %s248
      %p257 = scmp.eq.s32.totalorder %s27, 0
      %p258 = por %p256, %p257
      %p259 = scmp.ne.s32.totalorder %s247, %s248
      %p260 = scmp.eq.s32.totalorder %s28, 2
      %p261 = por %p259, %p260
      %p263 = scmp.ne.s32.totalorder %s248, %s262
      %p264 = scmp.eq.s32.totalorder %s28, 0
      %p265 = por %p263, %p264
      %s267 = sadd.s32 %s266, 1
      %p270 = scmp.eq.s32.totalorder %s22, 2
      %p271 = scmp.ne.s32.totalorder %s266, %s268
      %p272 = scmp.eq.s32.totalorder %s22, 0
      %p273 = por %p271, %p272
      %p274 = scmp.ne.s32.totalorder %s266, %s268
      %p275 = scmp.eq.s32.totalorder %s27, 2
      %p276 = por %p274, %p275
      %p277 = scmp.ne.s32.totalorder %s268, %s269
      %p278 = scmp.eq.s32.totalorder %s27, 0
      %p279 = por %p277, %p278
      %p280 = scmp.ne.s32.totalorder %s268, %s269
      %p281 = scmp.eq.s32.totalorder %s28, 2
      %p282 = por %p280, %p281
      %p284 = scmp.ne.s32.totalorder %s269, %s283
      %p285 = scmp.eq.s32.totalorder %s28, 0
      %p286 = por %p284, %p285
      %s288 = sadd.s32 %s287, 1
      %p291 = scmp.eq.s32.totalorder %s22, 2
      %p292 = scmp.ne.s32.totalorder %s287, %s289
      %p293 = scmp.eq.s32.totalorder %s22, 0
      %p294 = por %p292, %p293
      %p295 = scmp.ne.s32.totalorder %s287, %s289
      %p296 = scmp.eq.s32.totalorder %s27, 2
      %p297 = por %p295, %p296
      %p298 = scmp.ne.s32.totalorder %s289, %s290
      %p299 = scmp.eq.s32.totalorder %s27, 0
      %p300 = por %p298, %p299
      %p301 = scmp.ne.s32.totalorder %s289, %s290
      %p302 = scmp.eq.s32.totalorder %s28, 2
      %p303 = por %p301, %p302
      %p305 = scmp.ne.s32.totalorder %s290, %s304
      %p306 = scmp.eq.s32.totalorder %s28, 0
      %p307 = por %p305, %p306
      %s308 = ssub.s32 %s22, %s29
      %p309 = scmp.eq.s32.totalorder %s308, 0
      %s311 = sadd.s32 %s310, 1
      %s312 = scalar_select %p309, %s310, %s311
      %p315 = pneg %p309
      %p316 = scmp.eq.s32.totalorder %s22, 2
      %p317 = por %p315, %p316
      %p318 = scmp.ne.s32.totalorder %s310, %s313
      %p319 = scmp.eq.s32.totalorder %s22, 0
      %p320 = por %p318, %p319
      %p321 = scmp.ne.s32.totalorder %s310, %s313
      %p322 = scmp.eq.s32.totalorder %s27, 2
      %p323 = por %p321, %p322
      %p324 = scmp.ne.s32.totalorder %s313, %s314
      %p325 = scmp.eq.s32.totalorder %s27, 0
      %p326 = por %p324, %p325
      %p327 = scmp.ne.s32.totalorder %s313, %s314
      %p328 = scmp.eq.s32.totalorder %s28, 2
      %p329 = por %p327, %p328
      %p331 = scmp.ne.s32.totalorder %s314, %s330
      %p332 = scmp.eq.s32.totalorder %s28, 0
      %p333 = por %p331, %p332
      %p334 = scmp.le.s32.totalorder 1, %s22
      %p335 = scmp.lt.s32.totalorder %s22, 4
      %p336 = pnand %p334, %p335
      %p337 = pneg %p336
      // Predicated region
      $region9: #{tpu_custom_call.1} parent=5 // pred_check
        _
      $region10: #{tpu_custom_call.1} parent=5 // pred_check_branch
        %339 = sbr.rel (%p336) target = $region12
      $region11: #{tpu_custom_call.1} parent=5 // pred_region
        %s340 = ssub.s32 %s22, 1
        // Predicated region
        $region13: #{tpu_custom_call.1} parent=11 // pred_check
          %p341 = pneg %p69
        $region14: #{tpu_custom_call.1} parent=11 // pred_check_branch
          %343 = sbr.rel (%p341) target = $region16
        $region15: #{tpu_custom_call.1} parent=11 // pred_region
          _
        $region16: #{tpu_custom_call.1} parent=11 // pred_fallthru
          _
        // Predicated region
        $region17: #{tpu_custom_call.1} parent=11 // pred_check
          %p344 = pneg %p90
        $region18: #{tpu_custom_call.1} parent=11 // pred_check_branch
          %346 = sbr.rel (%p344) target = $region20
        $region19: #{tpu_custom_call.1} parent=11 // pred_region
          _
        $region20: #{tpu_custom_call.1} parent=11 // pred_fallthru
          _
        // Predicated region
        $region21: #{tpu_custom_call.1} parent=11 // pred_check
          %p347 = pneg %p111
        $region22: #{tpu_custom_call.1} parent=11 // pred_check_branch
          %349 = sbr.rel (%p347) target = $region24
        $region23: #{tpu_custom_call.1} parent=11 // pred_region
          _
        $region24: #{tpu_custom_call.1} parent=11 // pred_fallthru
          _
        // Predicated region
        $region25: #{tpu_custom_call.1} parent=11 // pred_check
          %p350 = pneg %p132
        $region26: #{tpu_custom_call.1} parent=11 // pred_check_branch
          %352 = sbr.rel (%p350) target = $region28
        $region27: #{tpu_custom_call.1} parent=11 // pred_region
          _
        $region28: #{tpu_custom_call.1} parent=11 // pred_fallthru
          _
        // Predicated region
        $region29: #{tpu_custom_call.1} parent=11 // pred_check
          %p353 = pneg %p153
        $region30: #{tpu_custom_call.1} parent=11 // pred_check_branch
          %355 = sbr.rel (%p353) target = $region32
        $region31: #{tpu_custom_call.1} parent=11 // pred_region
          _
        $region32: #{tpu_custom_call.1} parent=11 // pred_fallthru
          _
        // Predicated region
        $region33: #{tpu_custom_call.1} parent=11 // pred_check
          %p356 = pneg %p174
        $region34: #{tpu_custom_call.1} parent=11 // pred_check_branch
          %358 = sbr.rel (%p356) target = $region36
        $region35: #{tpu_custom_call.1} parent=11 // pred_region
          _
        $region36: #{tpu_custom_call.1} parent=11 // pred_fallthru
          _
        // Predicated region
        $region37: #{tpu_custom_call.1} parent=11 // pred_check
          %p359 = pneg %p195
        $region38: #{tpu_custom_call.1} parent=11 // pred_check_branch
          %361 = sbr.rel (%p359) target = $region40
        $region39: #{tpu_custom_call.1} parent=11 // pred_region
          _
        $region40: #{tpu_custom_call.1} parent=11 // pred_fallthru
          _
        // Predicated region
        $region41: #{tpu_custom_call.1} parent=11 // pred_check
          %p362 = pneg %p216
        $region42: #{tpu_custom_call.1} parent=11 // pred_check_branch
          %364 = sbr.rel (%p362) target = $region44
        $region43: #{tpu_custom_call.1} parent=11 // pred_region
          _
        $region44: #{tpu_custom_call.1} parent=11 // pred_fallthru
          _
        // Predicated region
        $region45: #{tpu_custom_call.1} parent=11 // pred_check
          %p365 = pneg %p237
        $region46: #{tpu_custom_call.1} parent=11 // pred_check_branch
          %367 = sbr.rel (%p365) target = $region48
        $region47: #{tpu_custom_call.1} parent=11 // pred_region
          _
        $region48: #{tpu_custom_call.1} parent=11 // pred_fallthru
          _
        // Predicated region
        $region49: #{tpu_custom_call.1} parent=11 // pred_check
          %p368 = pneg %p258
        $region50: #{tpu_custom_call.1} parent=11 // pred_check_branch
          %370 = sbr.rel (%p368) target = $region52
        $region51: #{tpu_custom_call.1} parent=11 // pred_region
          _
        $region52: #{tpu_custom_call.1} parent=11 // pred_fallthru
          _
        // Predicated region
        $region53: #{tpu_custom_call.1} parent=11 // pred_check
          %p371 = pneg %p279
        $region54: #{tpu_custom_call.1} parent=11 // pred_check_branch
          %373 = sbr.rel (%p371) target = $region56
        $region55: #{tpu_custom_call.1} parent=11 // pred_region
          _
        $region56: #{tpu_custom_call.1} parent=11 // pred_fallthru
          _
        // Predicated region
        $region57: #{tpu_custom_call.1} parent=11 // pred_check
          %p374 = pneg %p300
        $region58: #{tpu_custom_call.1} parent=11 // pred_check_branch
          %376 = sbr.rel (%p374) target = $region60
        $region59: #{tpu_custom_call.1} parent=11 // pred_region
          _
        $region60: #{tpu_custom_call.1} parent=11 // pred_fallthru
          _
      $region12: #{tpu_custom_call.1} parent=5 // pred_fallthru
        _
      %p377 = scmp.lt.s32.totalorder %s22, 3
      // Predicated region
      $region61: #{tpu_custom_call.1} parent=5 // pred_check
        %p378 = pneg %p377
      $region62: #{tpu_custom_call.1} parent=5 // pred_check_branch
        %380 = sbr.rel (%p378) target = $region64
      $region63: #{tpu_custom_call.1} parent=5 // pred_region
        // Predicated region
        $region65: #{tpu_custom_call.1} parent=63 // pred_check
          %p381 = pneg %p42
        $region66: #{tpu_custom_call.1} parent=63 // pred_check_branch
          %383 = sbr.rel (%p381) target = $region68
        $region67: #{tpu_custom_call.1} parent=63 // pred_region
          %s384 = smul.u32 2, %s22
          %p385 = scmp.lt.s32.totalorder %s384, 5
          %s386 = scalar_select %p385, %s384, 5
          %s387 = smul.addr %s386, 8
          %s388 = scalar_lea.vmem %s0, %s387
          %s389 = smul.u32 2, %s22
        $region68: #{tpu_custom_call.1} parent=63 // pred_fallthru
          _
      $region64: #{tpu_custom_call.1} parent=5 // pred_fallthru
        _
      %p390 = scmp.le.s32.totalorder 1, %s22
      %p391 = scmp.lt.s32.totalorder %s22, 4
      %p392 = pnand %p390, %p391
      %p393 = pneg %p392
      // Predicated region
      $region69: #{tpu_custom_call.1} parent=5 // pred_check
        _
      $region70: #{tpu_custom_call.1} parent=5 // pred_check_branch
        %395 = sbr.rel (%p392) target = $region72
      $region71: #{tpu_custom_call.1} parent=5 // pred_region
        %s396 = ssub.s32 %s22, 1
        %s397 = smul.u32 2, %s27
        %p398 = scmp.lt.s32.totalorder %s397, 5
        %s399 = scalar_select %p398, %s397, 5
        %s400 = smul.addr %s399, 8
        %s401 = scalar_lea.vmem %s0, %s400
        %p402 = pneg %p48
        %p403 = pneg %p45
        %p404 = pneg %p69
        %p405 = pneg %p66
        %p406 = pneg %p90
        %p407 = pneg %p87
        %p408 = pneg %p111
        %p409 = pneg %p108
        %p410 = pneg %p132
        %p411 = pneg %p129
        %p412 = pneg %p153
        %p413 = pneg %p150
        %p414 = pneg %p174
        %p415 = pneg %p171
        %p416 = pneg %p195
        %p417 = pneg %p192
        %p418 = pneg %p216
        %p419 = pneg %p213
        %p420 = pneg %p237
        %p421 = pneg %p234
        %p422 = pneg %p258
        %p423 = pneg %p255
        %p424 = pneg %p279
        %p425 = pneg %p276
        %p426 = pneg %p300
        %p427 = pneg %p297
        %p428 = pneg %p326
        %p429 = pneg %p323
        %s430 = sand.u32 %s313, 1
        %s431 = scalar_lea.sflag [#allocation4], %s430
        %s432 = sand.u32 %s313, 1
        %s433 = smul.addr %s432, 16
        %s434 = scalar_lea.vmem [#allocation3], %s433
        %s435 = smul.u32 2, %s27
        %p436 = scmp.lt.s32.totalorder %s435, 5
        %s437 = scalar_select %p436, %s435, 5
        %s438 = smul.addr %s437, 8
        %s439 = scalar_lea.vmem %s0, %s438
        %s440 = smul.u32 2, %s27
        %s441 = smul.u32 2, %s27
        %v442 = vld [vmem:[%s439] sm:$0xff]
        %v443 = vld [vmem:[%s439 + $0x8] sm:$0xff]
        %v444 = vld [vmem:[%s1] sm:$0xff]
        %v445 = vld [vmem:[%s1 + $0x8] sm:$0xff]
        %v446 = vld [vmem:[%s1 + $0x10] sm:$0xff]
        %v447 = vld [vmem:[%s1 + $0x18] sm:$0xff]
        %v448 = vld [vmem:[%s2] sm:$0x1]
        %v450 = vperm.slane %v448, 0
        %vm452 = vcmask 261120
        %v454 = vsel %vm452, %v442, 0
        %v457 = vsel %vm452, %v443, 0
        %459 = vmatpush.msra.mxu0 0.0
        %460 = vmatpush.msra.mxu0 0.0
        %461 = vmatpush.msra.mxu0 0.0
        %462 = vmatpush.msra.mxu0 0.0
        %463 = vmatpush.msra.mxu0 0.0
        %464 = vmatpush.msra.mxu0 0.0
        %465 = vmatpush.msra.mxu0 0.0
        %466 = vmatpush.msra.mxu0 0.0
        %467 = vmatpush.msra.mxu0 0.0
        %468 = vmatpush.msra.mxu0 0.0
        %469 = vmatpush.msra.mxu0 0.0
        %470 = vmatpush.msra.mxu0 0.0
        %471 = vmatpush.msra.mxu0 %v447
        %472 = vmatpush.msra.mxu0 %v446
        %473 = vmatpush.msra.mxu0 %v445
        %474 = vmatpush.msra.mxu0 %v444
        %475 = vmatmul.f32.gmra.mxu0 %v454
        %v476 = vpop.f32.mrf.mxu0
        %v477 = vadd.f32 %v450, %v476
        %478 = vmatmul.f32.gmra.mxu0 %v457
        %v479 = vpop.f32.mrf.mxu0
        %v480 = vadd.f32 %v450, %v479
        %481 = vdwg.mxu0
        %v482 = vlaneseq
        %v483 = vshrl.u32 %v482, 7
        %v484 = vlaneseq
        %v485 = vand.u32 %v484, 127
        %vm486 = vcmp.le.s32.totalorder %v485, %v483
        %488 = vrot.lane.b32.xlu0 %v477, 96
        %v489 = vpop.permute.xlu0 %488
        %vm490 = vcmask 64512
        %v491 = vsel %vm490, %v477, 0
        %v493 = vsel %vm490, %v489, 0
        %495 = vmatpush.xpose.msra.mxu0 0.0
        %496 = vmatpush.xpose.msra.mxu0 0.0
        %497 = vmatpush.xpose.msra.mxu0 0.0
        %498 = vmatpush.xpose.msra.mxu0 0.0
        %499 = vmatpush.xpose.msra.mxu0 0.0
        %500 = vmatpush.xpose.msra.mxu0 0.0
        %501 = vmatpush.xpose.msra.mxu0 0.0
        %502 = vmatpush.xpose.msra.mxu0 0.0
        %503 = vmatpush.xpose.msra.mxu0 0.0
        %504 = vmatpush.xpose.msra.mxu0 0.0
        %505 = vmatpush.xpose.msra.mxu0 0.0
        %506 = vmatpush.xpose.msra.mxu0 0.0
        %507 = vmatpush.xpose.msra.mxu0 0.0
        %508 = vmatpush.xpose.msra.mxu0 0.0
        %509 = vmatpush.xpose.msra.mxu0 0.0
        %510 = vmatpush.xpose.msra.mxu0 %v493
        %511 = vmatmul.f32.gmra.mxu0 %v491
        %v512 = vpop.f32.mrf.mxu0
        %v513 = vadd.f32 0.0, %v512
        %514 = vdwg.mxu0
        %516 = vrot.lane.b32.xlu0 %v480, 96
        %v517 = vpop.permute.xlu0 %516
        %v518 = vsel %vm490, %v480, 0
        %v520 = vsel %vm490, %v517, 0
        %522 = vmatpush.xpose.msra.mxu0 0.0
        %523 = vmatpush.xpose.msra.mxu0 0.0
        %524 = vmatpush.xpose.msra.mxu0 0.0
        %525 = vmatpush.xpose.msra.mxu0 0.0
        %526 = vmatpush.xpose.msra.mxu0 0.0
        %527 = vmatpush.xpose.msra.mxu0 0.0
        %528 = vmatpush.xpose.msra.mxu0 0.0
        %529 = vmatpush.xpose.msra.mxu0 0.0
        %530 = vmatpush.xpose.msra.mxu0 0.0
        %531 = vmatpush.xpose.msra.mxu0 0.0
        %532 = vmatpush.xpose.msra.mxu0 0.0
        %533 = vmatpush.xpose.msra.mxu0 0.0
        %534 = vmatpush.xpose.msra.mxu0 0.0
        %535 = vmatpush.xpose.msra.mxu0 0.0
        %536 = vmatpush.xpose.msra.mxu0 0.0
        %537 = vmatpush.xpose.msra.mxu0 %v520
        %538 = vmatmul.f32.gmra.mxu0 %v518
        %v539 = vpop.f32.mrf.mxu0
        %v540 = vadd.f32 0.0, %v539
        %541 = vdwg.mxu0
        %v542 = vsel %vm486, 1, 0
        %vm543 = vcmp.eq.s32.totalorder %v542, 1
        %v544 = vsel %vm543, %v513, -1e+30
        %v545 = vsel %vm543, %v540, -1e+30
        %v546 = vsel %vm490, %v544, -inf
        %547 = vmax.xlane.f32.xlu0 %v546
        %v548 = vpop.xlane.xlu0 %547
        %v549 = vsel %vm490, %v545, -inf
        %550 = vmax.xlane.f32.xlu0 %v549
        %v551 = vpop.xlane.xlu0 %550
        %v552 = vsub.f32 %v544, %v548
        %v553 = vsub.f32 %v545, %v551
        %v554 = vmul.f32 %v552, 1.442695
        %v555 = vpow.pop %v554
        %v556 = vmul.f32 %v553, 1.442695
        %v557 = vpow.pop %v556
        %v558 = vsel %vm490, %v555, 0.0
        %559 = vadd.xlane.f32.xlu0 %v558
        %v560 = vpop.xlane.xlu0 %559
        %v561 = vsel %vm490, %v557, 0.0
        %562 = vadd.xlane.f32.xlu0 %v561
        %v563 = vpop.xlane.xlu0 %562
        %v564 = vrcp.pop %v560
        %v565 = vrcp.pop %v563
        %v566 = vmul.f32 %v555, %v564
        %v567 = vmul.f32 %v557, %v565
        %568 = vrot.lane.b32.xlu0 %v477, 64
        %v569 = vpop.permute.xlu0 %568
        %v572 = vsel %vm490, %v566, 0
        %574 = vmatpush.msra.mxu0 0.0
        %575 = vmatpush.msra.mxu0 0.0
        %576 = vmatpush.msra.mxu0 0.0
        %577 = vmatpush.msra.mxu0 0.0
        %578 = vmatpush.msra.mxu0 0.0
        %579 = vmatpush.msra.mxu0 0.0
        %580 = vmatpush.msra.mxu0 0.0
        %581 = vmatpush.msra.mxu0 0.0
        %582 = vmatpush.msra.mxu0 0.0
        %583 = vmatpush.msra.mxu0 0.0
        %584 = vmatpush.msra.mxu0 0.0
        %585 = vmatpush.msra.mxu0 0.0
        %586 = vmatpush.msra.mxu0 0.0
        %587 = vmatpush.msra.mxu0 0.0
        %588 = vmatpush.msra.mxu0 0.0
        %589 = vmatpush.msra.mxu0 %v569
        %590 = vmatmul.f32.gmra.mxu0 %v572
        %v591 = vpop.f32.mrf.mxu0
        %v592 = vadd.f32 0.0, %v591
        %593 = vdwg.mxu0
        %594 = vrot.lane.b32.xlu0 %v480, 64
        %v595 = vpop.permute.xlu0 %594
        %v598 = vsel %vm490, %v567, 0
        %600 = vmatpush.msra.mxu0 0.0
        %601 = vmatpush.msra.mxu0 0.0
        %602 = vmatpush.msra.mxu0 0.0
        %603 = vmatpush.msra.mxu0 0.0
        %604 = vmatpush.msra.mxu0 0.0
        %605 = vmatpush.msra.mxu0 0.0
        %606 = vmatpush.msra.mxu0 0.0
        %607 = vmatpush.msra.mxu0 0.0
        %608 = vmatpush.msra.mxu0 0.0
        %609 = vmatpush.msra.mxu0 0.0
        %610 = vmatpush.msra.mxu0 0.0
        %611 = vmatpush.msra.mxu0 0.0
        %612 = vmatpush.msra.mxu0 0.0
        %613 = vmatpush.msra.mxu0 0.0
        %614 = vmatpush.msra.mxu0 0.0
        %615 = vmatpush.msra.mxu0 %v595
        %616 = vmatmul.f32.gmra.mxu0 %v598
        %v617 = vpop.f32.mrf.mxu0
        %v618 = vadd.f32 0.0, %v617
        %619 = vdwg.mxu0
        %620 = vst.msk [vmem:[#allocation2] sm:$0xff] %vm490, %v592
        %621 = vst.msk [vmem:[#allocation2 + $0x8] sm:$0xff] %vm490, %v618
        %622 = vrot.lane.b32.xlu0 %v477, 120
        %v623 = vpop.permute.xlu0 %622
        %624 = vrot.lane.b32.xlu0 %v477, 88
        %v625 = vpop.permute.xlu0 %624
        %v626 = vsel %vm490, %v623, 0
        %v628 = vsel %vm490, %v625, 0
        %630 = vmatpush.xpose.msra.mxu0 0.0
        %631 = vmatpush.xpose.msra.mxu0 0.0
        %632 = vmatpush.xpose.msra.mxu0 0.0
        %633 = vmatpush.xpose.msra.mxu0 0.0
        %634 = vmatpush.xpose.msra.mxu0 0.0
        %635 = vmatpush.xpose.msra.mxu0 0.0
        %636 = vmatpush.xpose.msra.mxu0 0.0
        %637 = vmatpush.xpose.msra.mxu0 0.0
        %638 = vmatpush.xpose.msra.mxu0 0.0
        %639 = vmatpush.xpose.msra.mxu0 0.0
        %640 = vmatpush.xpose.msra.mxu0 0.0
        %641 = vmatpush.xpose.msra.mxu0 0.0
        %642 = vmatpush.xpose.msra.mxu0 0.0
        %643 = vmatpush.xpose.msra.mxu0 0.0
        %644 = vmatpush.xpose.msra.mxu0 0.0
        %645 = vmatpush.xpose.msra.mxu0 %v628
        %646 = vmatmul.f32.gmra.mxu0 %v626
        %v647 = vpop.f32.mrf.mxu0
        %v648 = vadd.f32 0.0, %v647
        %649 = vdwg.mxu0
        %650 = vrot.lane.b32.xlu0 %v480, 120
        %v651 = vpop.permute.xlu0 %650
        %652 = vrot.lane.b32.xlu0 %v480, 88
        %v653 = vpop.permute.xlu0 %652
        %v654 = vsel %vm490, %v651, 0
        %v656 = vsel %vm490, %v653, 0
        %658 = vmatpush.xpose.msra.mxu0 0.0
        %659 = vmatpush.xpose.msra.mxu0 0.0
        %660 = vmatpush.xpose.msra.mxu0 0.0
        %661 = vmatpush.xpose.msra.mxu0 0.0
        %662 = vmatpush.xpose.msra.mxu0 0.0
        %663 = vmatpush.xpose.msra.mxu0 0.0
        %664 = vmatpush.xpose.msra.mxu0 0.0
        %665 = vmatpush.xpose.msra.mxu0 0.0
        %666 = vmatpush.xpose.msra.mxu0 0.0
        %667 = vmatpush.xpose.msra.mxu0 0.0
        %668 = vmatpush.xpose.msra.mxu0 0.0
        %669 = vmatpush.xpose.msra.mxu0 0.0
        %670 = vmatpush.xpose.msra.mxu0 0.0
        %671 = vmatpush.xpose.msra.mxu0 0.0
        %672 = vmatpush.xpose.msra.mxu0 0.0
        %673 = vmatpush.xpose.msra.mxu0 %v656
        %674 = vmatmul.f32.gmra.mxu0 %v654
        %v675 = vpop.f32.mrf.mxu0
        %v676 = vadd.f32 0.0, %v675
        %677 = vdwg.mxu0
        %v678 = vsel %vm543, %v648, -1e+30
        %v679 = vsel %vm543, %v676, -1e+30
        %v680 = vsel %vm490, %v678, -inf
        %681 = vmax.xlane.f32.xlu0 %v680
        %v682 = vpop.xlane.xlu0 %681
        %v683 = vsel %vm490, %v679, -inf
        %684 = vmax.xlane.f32.xlu0 %v683
        %v685 = vpop.xlane.xlu0 %684
        %v686 = vsub.f32 %v678, %v682
        %v687 = vsub.f32 %v679, %v685
        %v688 = vmul.f32 %v686, 1.442695
        %v689 = vpow.pop %v688
        %v690 = vmul.f32 %v687, 1.442695
        %v691 = vpow.pop %v690
        %v692 = vsel %vm490, %v689, 0.0
        %693 = vadd.xlane.f32.xlu0 %v692
        %v694 = vpop.xlane.xlu0 %693
        %v695 = vsel %vm490, %v691, 0.0
        %696 = vadd.xlane.f32.xlu0 %v695
        %v697 = vpop.xlane.xlu0 %696
        %v698 = vrcp.pop %v694
        %v699 = vrcp.pop %v697
        %v700 = vmul.f32 %v689, %v698
        %v701 = vmul.f32 %v691, %v699
        %702 = vrot.lane.b32.xlu0 %v477, 56
        %v703 = vpop.permute.xlu0 %702
        %v706 = vsel %vm490, %v700, 0
        %708 = vmatpush.msra.mxu0 0.0
        %709 = vmatpush.msra.mxu0 0.0
        %710 = vmatpush.msra.mxu0 0.0
        %711 = vmatpush.msra.mxu0 0.0
        %712 = vmatpush.msra.mxu0 0.0
        %713 = vmatpush.msra.mxu0 0.0
        %714 = vmatpush.msra.mxu0 0.0
        %715 = vmatpush.msra.mxu0 0.0
        %716 = vmatpush.msra.mxu0 0.0
        %717 = vmatpush.msra.mxu0 0.0
        %718 = vmatpush.msra.mxu0 0.0
        %719 = vmatpush.msra.mxu0 0.0
        %720 = vmatpush.msra.mxu0 0.0
        %721 = vmatpush.msra.mxu0 0.0
        %722 = vmatpush.msra.mxu0 0.0
        %723 = vmatpush.msra.mxu0 %v703
        %724 = vmatmul.f32.gmra.mxu0 %v706
        %v725 = vpop.f32.mrf.mxu0
        %v726 = vadd.f32 0.0, %v725
        %727 = vdwg.mxu0
        %728 = vrot.lane.b32.xlu0 %v480, 56
        %v729 = vpop.permute.xlu0 %728
        %v732 = vsel %vm490, %v701, 0
        %734 = vmatpush.msra.mxu0 0.0
        %735 = vmatpush.msra.mxu0 0.0
        %736 = vmatpush.msra.mxu0 0.0
        %737 = vmatpush.msra.mxu0 0.0
        %738 = vmatpush.msra.mxu0 0.0
        %739 = vmatpush.msra.mxu0 0.0
        %740 = vmatpush.msra.mxu0 0.0
        %741 = vmatpush.msra.mxu0 0.0
        %742 = vmatpush.msra.mxu0 0.0
        %743 = vmatpush.msra.mxu0 0.0
        %744 = vmatpush.msra.mxu0 0.0
        %745 = vmatpush.msra.mxu0 0.0
        %746 = vmatpush.msra.mxu0 0.0
        %747 = vmatpush.msra.mxu0 0.0
        %748 = vmatpush.msra.mxu0 0.0
        %749 = vmatpush.msra.mxu0 %v729
        %750 = vmatmul.f32.gmra.mxu0 %v732
        %v751 = vpop.f32.mrf.mxu0
        %v752 = vadd.f32 0.0, %v751
        %753 = vdwg.mxu0
        %756 = vrot.lane.b32.xlu0 %v726, 8
        %v757 = vpop.permute.xlu0 %756
        %758 = vrot.lane.b32.xlu0 %v752, 8
        %v759 = vpop.permute.xlu0 %758
        %vm762 = vcmask 130112
        %763 = vst.msk [vmem:[#allocation2] sm:$0xff] %vm762, %v757
        %764 = vst.msk [vmem:[#allocation2 + $0x8] sm:$0xff] %vm762, %v759
        %765 = vrot.lane.b32.xlu0 %v477, 112
        %v766 = vpop.permute.xlu0 %765
        %767 = vrot.lane.b32.xlu0 %v477, 80
        %v768 = vpop.permute.xlu0 %767
        %v769 = vsel %vm490, %v766, 0
        %v771 = vsel %vm490, %v768, 0
        %773 = vmatpush.xpose.msra.mxu0 0.0
        %774 = vmatpush.xpose.msra.mxu0 0.0
        %775 = vmatpush.xpose.msra.mxu0 0.0
        %776 = vmatpush.xpose.msra.mxu0 0.0
        %777 = vmatpush.xpose.msra.mxu0 0.0
        %778 = vmatpush.xpose.msra.mxu0 0.0
        %779 = vmatpush.xpose.msra.mxu0 0.0
        %780 = vmatpush.xpose.msra.mxu0 0.0
        %781 = vmatpush.xpose.msra.mxu0 0.0
        %782 = vmatpush.xpose.msra.mxu0 0.0
        %783 = vmatpush.xpose.msra.mxu0 0.0
        %784 = vmatpush.xpose.msra.mxu0 0.0
        %785 = vmatpush.xpose.msra.mxu0 0.0
        %786 = vmatpush.xpose.msra.mxu0 0.0
        %787 = vmatpush.xpose.msra.mxu0 0.0
        %788 = vmatpush.xpose.msra.mxu0 %v771
        %789 = vmatmul.f32.gmra.mxu0 %v769
        %v790 = vpop.f32.mrf.mxu0
        %v791 = vadd.f32 0.0, %v790
        %792 = vdwg.mxu0
        %793 = vrot.lane.b32.xlu0 %v480, 112
        %v794 = vpop.permute.xlu0 %793
        %795 = vrot.lane.b32.xlu0 %v480, 80
        %v796 = vpop.permute.xlu0 %795
        %v797 = vsel %vm490, %v794, 0
        %v799 = vsel %vm490, %v796, 0
        %801 = vmatpush.xpose.msra.mxu0 0.0
        %802 = vmatpush.xpose.msra.mxu0 0.0
        %803 = vmatpush.xpose.msra.mxu0 0.0
        %804 = vmatpush.xpose.msra.mxu0 0.0
        %805 = vmatpush.xpose.msra.mxu0 0.0
        %806 = vmatpush.xpose.msra.mxu0 0.0
        %807 = vmatpush.xpose.msra.mxu0 0.0
        %808 = vmatpush.xpose.msra.mxu0 0.0
        %809 = vmatpush.xpose.msra.mxu0 0.0
        %810 = vmatpush.xpose.msra.mxu0 0.0
        %811 = vmatpush.xpose.msra.mxu0 0.0
        %812 = vmatpush.xpose.msra.mxu0 0.0
        %813 = vmatpush.xpose.msra.mxu0 0.0
        %814 = vmatpush.xpose.msra.mxu0 0.0
        %815 = vmatpush.xpose.msra.mxu0 0.0
        %816 = vmatpush.xpose.msra.mxu0 %v799
        %817 = vmatmul.f32.gmra.mxu0 %v797
        %v818 = vpop.f32.mrf.mxu0
        %v819 = vadd.f32 0.0, %v818
        %820 = vdwg.mxu0
        %v821 = vsel %vm543, %v791, -1e+30
        %v822 = vsel %vm543, %v819, -1e+30
        %v823 = vsel %vm490, %v821, -inf
        %824 = vmax.xlane.f32.xlu0 %v823
        %v825 = vpop.xlane.xlu0 %824
        %v826 = vsel %vm490, %v822, -inf
        %827 = vmax.xlane.f32.xlu0 %v826
        %v828 = vpop.xlane.xlu0 %827
        %v829 = vsub.f32 %v821, %v825
        %v830 = vsub.f32 %v822, %v828
        %v831 = vmul.f32 %v829, 1.442695
        %v832 = vpow.pop %v831
        %v833 = vmul.f32 %v830, 1.442695
        %v834 = vpow.pop %v833
        %v835 = vsel %vm490, %v832, 0.0
        %836 = vadd.xlane.f32.xlu0 %v835
        %v837 = vpop.xlane.xlu0 %836
        %v838 = vsel %vm490, %v834, 0.0
        %839 = vadd.xlane.f32.xlu0 %v838
        %v840 = vpop.xlane.xlu0 %839
        %v841 = vrcp.pop %v837
        %v842 = vrcp.pop %v840
        %v843 = vmul.f32 %v832, %v841
        %v844 = vmul.f32 %v834, %v842
        %845 = vrot.lane.b32.xlu0 %v477, 48
        %v846 = vpop.permute.xlu0 %845
        %v849 = vsel %vm490, %v843, 0
        %851 = vmatpush.msra.mxu0 0.0
        %852 = vmatpush.msra.mxu0 0.0
        %853 = vmatpush.msra.mxu0 0.0
        %854 = vmatpush.msra.mxu0 0.0
        %855 = vmatpush.msra.mxu0 0.0
        %856 = vmatpush.msra.mxu0 0.0
        %857 = vmatpush.msra.mxu0 0.0
        %858 = vmatpush.msra.mxu0 0.0
        %859 = vmatpush.msra.mxu0 0.0
        %860 = vmatpush.msra.mxu0 0.0
        %861 = vmatpush.msra.mxu0 0.0
        %862 = vmatpush.msra.mxu0 0.0
        %863 = vmatpush.msra.mxu0 0.0
        %864 = vmatpush.msra.mxu0 0.0
        %865 = vmatpush.msra.mxu0 0.0
        %866 = vmatpush.msra.mxu0 %v846
        %867 = vmatmul.f32.gmra.mxu0 %v849
        %v868 = vpop.f32.mrf.mxu0
        %v869 = vadd.f32 0.0, %v868
        %870 = vdwg.mxu0
        %871 = vrot.lane.b32.xlu0 %v480, 48
        %v872 = vpop.permute.xlu0 %871
        %v875 = vsel %vm490, %v844, 0
        %877 = vmatpush.msra.mxu0 0.0
        %878 = vmatpush.msra.mxu0 0.0
        %879 = vmatpush.msra.mxu0 0.0
        %880 = vmatpush.msra.mxu0 0.0
        %881 = vmatpush.msra.mxu0 0.0
        %882 = vmatpush.msra.mxu0 0.0
        %883 = vmatpush.msra.mxu0 0.0
        %884 = vmatpush.msra.mxu0 0.0
        %885 = vmatpush.msra.mxu0 0.0
        %886 = vmatpush.msra.mxu0 0.0
        %887 = vmatpush.msra.mxu0 0.0
        %888 = vmatpush.msra.mxu0 0.0
        %889 = vmatpush.msra.mxu0 0.0
        %890 = vmatpush.msra.mxu0 0.0
        %891 = vmatpush.msra.mxu0 0.0
        %892 = vmatpush.msra.mxu0 %v872
        %893 = vmatmul.f32.gmra.mxu0 %v875
        %v894 = vpop.f32.mrf.mxu0
        %v895 = vadd.f32 0.0, %v894
        %896 = vdwg.mxu0
        %899 = vrot.lane.b32.xlu0 %v869, 16
        %v900 = vpop.permute.xlu0 %899
        %901 = vrot.lane.b32.xlu0 %v895, 16
        %v902 = vpop.permute.xlu0 %901
        %vm905 = vcmask 195712
        %906 = vst.msk [vmem:[#allocation2] sm:$0xff] %vm905, %v900
        %907 = vst.msk [vmem:[#allocation2 + $0x8] sm:$0xff] %vm905, %v902
        %908 = vrot.lane.b32.xlu0 %v477, 104
        %v909 = vpop.permute.xlu0 %908
        %910 = vrot.lane.b32.xlu0 %v477, 72
        %v911 = vpop.permute.xlu0 %910
        %v912 = vsel %vm490, %v909, 0
        %v914 = vsel %vm490, %v911, 0
        %916 = vmatpush.xpose.msra.mxu0 0.0
        %917 = vmatpush.xpose.msra.mxu0 0.0
        %918 = vmatpush.xpose.msra.mxu0 0.0
        %919 = vmatpush.xpose.msra.mxu0 0.0
        %920 = vmatpush.xpose.msra.mxu0 0.0
        %921 = vmatpush.xpose.msra.mxu0 0.0
        %922 = vmatpush.xpose.msra.mxu0 0.0
        %923 = vmatpush.xpose.msra.mxu0 0.0
        %924 = vmatpush.xpose.msra.mxu0 0.0
        %925 = vmatpush.xpose.msra.mxu0 0.0
        %926 = vmatpush.xpose.msra.mxu0 0.0
        %927 = vmatpush.xpose.msra.mxu0 0.0
        %928 = vmatpush.xpose.msra.mxu0 0.0
        %929 = vmatpush.xpose.msra.mxu0 0.0
        %930 = vmatpush.xpose.msra.mxu0 0.0
        %931 = vmatpush.xpose.msra.mxu0 %v914
        %932 = vmatmul.f32.gmra.mxu0 %v912
        %v933 = vpop.f32.mrf.mxu0
        %v934 = vadd.f32 0.0, %v933
        %935 = vdwg.mxu0
        %936 = vrot.lane.b32.xlu0 %v480, 104
        %v937 = vpop.permute.xlu0 %936
        %938 = vrot.lane.b32.xlu0 %v480, 72
        %v939 = vpop.permute.xlu0 %938
        %v940 = vsel %vm490, %v937, 0
        %v942 = vsel %vm490, %v939, 0
        %944 = vmatpush.xpose.msra.mxu0 0.0
        %945 = vmatpush.xpose.msra.mxu0 0.0
        %946 = vmatpush.xpose.msra.mxu0 0.0
        %947 = vmatpush.xpose.msra.mxu0 0.0
        %948 = vmatpush.xpose.msra.mxu0 0.0
        %949 = vmatpush.xpose.msra.mxu0 0.0
        %950 = vmatpush.xpose.msra.mxu0 0.0
        %951 = vmatpush.xpose.msra.mxu0 0.0
        %952 = vmatpush.xpose.msra.mxu0 0.0
        %953 = vmatpush.xpose.msra.mxu0 0.0
        %954 = vmatpush.xpose.msra.mxu0 0.0
        %955 = vmatpush.xpose.msra.mxu0 0.0
        %956 = vmatpush.xpose.msra.mxu0 0.0
        %957 = vmatpush.xpose.msra.mxu0 0.0
        %958 = vmatpush.xpose.msra.mxu0 0.0
        %959 = vmatpush.xpose.msra.mxu0 %v942
        %960 = vmatmul.f32.gmra.mxu0 %v940
        %v961 = vpop.f32.mrf.mxu0
        %v962 = vadd.f32 0.0, %v961
        %963 = vdwg.mxu0
        %v964 = vsel %vm543, %v934, -1e+30
        %v965 = vsel %vm543, %v962, -1e+30
        %v966 = vsel %vm490, %v964, -inf
        %967 = vmax.xlane.f32.xlu0 %v966
        %v968 = vpop.xlane.xlu0 %967
        %v969 = vsel %vm490, %v965, -inf
        %970 = vmax.xlane.f32.xlu0 %v969
        %v971 = vpop.xlane.xlu0 %970
        %v972 = vsub.f32 %v964, %v968
        %v973 = vsub.f32 %v965, %v971
        %v974 = vmul.f32 %v972, 1.442695
        %v975 = vpow.pop %v974
        %v976 = vmul.f32 %v973, 1.442695
        %v977 = vpow.pop %v976
        %v978 = vsel %vm490, %v975, 0.0
        %979 = vadd.xlane.f32.xlu0 %v978
        %v980 = vpop.xlane.xlu0 %979
        %v981 = vsel %vm490, %v977, 0.0
        %982 = vadd.xlane.f32.xlu0 %v981
        %v983 = vpop.xlane.xlu0 %982
        %v984 = vrcp.pop %v980
        %v985 = vrcp.pop %v983
        %v986 = vmul.f32 %v975, %v984
        %v987 = vmul.f32 %v977, %v985
        %988 = vrot.lane.b32.xlu0 %v477, 40
        %v989 = vpop.permute.xlu0 %988
        %v992 = vsel %vm490, %v986, 0
        %994 = vmatpush.msra.mxu0 0.0
        %995 = vmatpush.msra.mxu0 0.0
        %996 = vmatpush.msra.mxu0 0.0
        %997 = vmatpush.msra.mxu0 0.0
        %998 = vmatpush.msra.mxu0 0.0
        %999 = vmatpush.msra.mxu0 0.0
        %1000 = vmatpush.msra.mxu0 0.0
        %1001 = vmatpush.msra.mxu0 0.0
        %1002 = vmatpush.msra.mxu0 0.0
        %1003 = vmatpush.msra.mxu0 0.0
        %1004 = vmatpush.msra.mxu0 0.0
        %1005 = vmatpush.msra.mxu0 0.0
        %1006 = vmatpush.msra.mxu0 0.0
        %1007 = vmatpush.msra.mxu0 0.0
        %1008 = vmatpush.msra.mxu0 0.0
        %1009 = vmatpush.msra.mxu0 %v989
        %1010 = vmatmul.f32.gmra.mxu0 %v992
        %v1011 = vpop.f32.mrf.mxu0
        %v1012 = vadd.f32 0.0, %v1011
        %1013 = vdwg.mxu0
        %1014 = vrot.lane.b32.xlu0 %v480, 40
        %v1015 = vpop.permute.xlu0 %1014
        %v1018 = vsel %vm490, %v987, 0
        %1020 = vmatpush.msra.mxu0 0.0
        %1021 = vmatpush.msra.mxu0 0.0
        %1022 = vmatpush.msra.mxu0 0.0
        %1023 = vmatpush.msra.mxu0 0.0
        %1024 = vmatpush.msra.mxu0 0.0
        %1025 = vmatpush.msra.mxu0 0.0
        %1026 = vmatpush.msra.mxu0 0.0
        %1027 = vmatpush.msra.mxu0 0.0
        %1028 = vmatpush.msra.mxu0 0.0
        %1029 = vmatpush.msra.mxu0 0.0
        %1030 = vmatpush.msra.mxu0 0.0
        %1031 = vmatpush.msra.mxu0 0.0
        %1032 = vmatpush.msra.mxu0 0.0
        %1033 = vmatpush.msra.mxu0 0.0
        %1034 = vmatpush.msra.mxu0 0.0
        %1035 = vmatpush.msra.mxu0 %v1015
        %1036 = vmatmul.f32.gmra.mxu0 %v1018
        %v1037 = vpop.f32.mrf.mxu0
        %v1038 = vadd.f32 0.0, %v1037
        %1039 = vdwg.mxu0
        %1042 = vrot.lane.b32.xlu0 %v1012, 24
        %v1043 = vpop.permute.xlu0 %1042
        %1044 = vrot.lane.b32.xlu0 %v1038, 24
        %v1045 = vpop.permute.xlu0 %1044
        %vm1048 = vcmask 261312
        %1049 = vst.msk [vmem:[#allocation2] sm:$0xff] %vm1048, %v1043
        %1050 = vst.msk [vmem:[#allocation2 + $0x8] sm:$0xff] %vm1048, %v1045
        %v1051 = vld [vmem:[#allocation2] sm:$0xff]
        %v1052 = vld [vmem:[#allocation2 + $0x8] sm:$0xff]
        %v1053 = vld [vmem:[%s3] sm:$0xff]
        %v1054 = vld [vmem:[%s3 + $0x8] sm:$0xff]
        %v1055 = vld [vmem:[%s3 + $0x10] sm:$0xff]
        %v1056 = vld [vmem:[%s3 + $0x18] sm:$0xff]
        %v1057 = vld [vmem:[%s4] sm:$0x1]
        %v1059 = vperm.slane %v1057, 0
        %v1062 = vsel %vm452, %v1051, 0
        %v1065 = vsel %vm452, %v1052, 0
        %1067 = vmatpush.msra.mxu0 0.0
        %1068 = vmatpush.msra.mxu0 0.0
        %1069 = vmatpush.msra.mxu0 0.0
        %1070 = vmatpush.msra.mxu0 0.0
        %1071 = vmatpush.msra.mxu0 0.0
        %1072 = vmatpush.msra.mxu0 0.0
        %1073 = vmatpush.msra.mxu0 0.0
        %1074 = vmatpush.msra.mxu0 0.0
        %1075 = vmatpush.msra.mxu0 0.0
        %1076 = vmatpush.msra.mxu0 0.0
        %1077 = vmatpush.msra.mxu0 0.0
        %1078 = vmatpush.msra.mxu0 0.0
        %1079 = vmatpush.msra.mxu0 %v1056
        %1080 = vmatpush.msra.mxu0 %v1055
        %1081 = vmatpush.msra.mxu0 %v1054
        %1082 = vmatpush.msra.mxu0 %v1053
        %1083 = vmatmul.f32.gmra.mxu0 %v1062
        %v1084 = vpop.f32.mrf.mxu0
        %v1085 = vadd.f32 %v1059, %v1084
        %1086 = vmatmul.f32.gmra.mxu0 %v1065
        %v1087 = vpop.f32.mrf.mxu0
        %v1088 = vadd.f32 %v1059, %v1087
        %1089 = vdwg.mxu0
        %v1090 = vld [vmem:[%s5] sm:$0x1]
        %v1092 = vperm.slane %v1090, 0
        %v1094 = vmul.f32 %v1085, %v1092
        %v1095 = vmul.f32 %v1088, %v1092
        %v1096 = vld [vmem:[%s6] sm:$0x1]
        %v1098 = vperm.slane %v1096, 0
        %v1100 = vadd.f32 %v1094, %v1098
        %v1101 = vadd.f32 %v1095, %v1098
        %v1102 = vadd.f32 %v1100, %v442
        %v1103 = vadd.f32 %v1101, %v443
        %v1104 = vld [vmem:[%s7] sm:$0xff]
        %v1105 = vld [vmem:[%s7 + $0x8] sm:$0xff]
        %v1106 = vld [vmem:[%s7 + $0x10] sm:$0xff]
        %v1107 = vld [vmem:[%s7 + $0x18] sm:$0xff]
        %v1108 = vld [vmem:[%s8] sm:$0x1]
        %v1110 = vperm.slane %v1108, 0
        %v1113 = vsel %vm452, %v1102, 0
        %v1116 = vsel %vm452, %v1103, 0
        %1118 = vmatpush.msra.mxu0 0.0
        %1119 = vmatpush.msra.mxu0 0.0
        %1120 = vmatpush.msra.mxu0 0.0
        %1121 = vmatpush.msra.mxu0 0.0
        %1122 = vmatpush.msra.mxu0 0.0
        %1123 = vmatpush.msra.mxu0 0.0
        %1124 = vmatpush.msra.mxu0 0.0
        %1125 = vmatpush.msra.mxu0 0.0
        %1126 = vmatpush.msra.mxu0 0.0
        %1127 = vmatpush.msra.mxu0 0.0
        %1128 = vmatpush.msra.mxu0 0.0
        %1129 = vmatpush.msra.mxu0 0.0
        %1130 = vmatpush.msra.mxu0 %v1107
        %1131 = vmatpush.msra.mxu0 %v1106
        %1132 = vmatpush.msra.mxu0 %v1105
        %1133 = vmatpush.msra.mxu0 %v1104
        %1134 = vmatmul.f32.gmra.mxu0 %v1113
        %v1135 = vpop.f32.mrf.mxu0
        %v1136 = vadd.f32 %v1110, %v1135
        %1137 = vmatmul.f32.gmra.mxu0 %v1116
        %v1138 = vpop.f32.mrf.mxu0
        %v1139 = vadd.f32 %v1110, %v1138
        %1140 = vdwg.mxu0
        %v1141 = vmax.f32 %v1136, 0.0
        %v1142 = vmax.f32 %v1139, 0.0
        %v1143 = vld [vmem:[%s9] sm:$0xff]
        %v1144 = vld [vmem:[%s9 + $0x8] sm:$0xff]
        %v1145 = vld [vmem:[%s9 + $0x10] sm:$0xff]
        %v1146 = vld [vmem:[%s9 + $0x18] sm:$0xff]
        %v1147 = vld [vmem:[%s9 + $0x20] sm:$0xff]
        %v1148 = vld [vmem:[%s9 + $0x28] sm:$0xff]
        %v1149 = vld [vmem:[%s9 + $0x30] sm:$0xff]
        %v1150 = vld [vmem:[%s9 + $0x38] sm:$0xff]
        %v1151 = vld [vmem:[%s9 + $0x40] sm:$0xff]
        %v1152 = vld [vmem:[%s9 + $0x48] sm:$0xff]
        %v1153 = vld [vmem:[%s9 + $0x50] sm:$0xff]
        %v1154 = vld [vmem:[%s9 + $0x58] sm:$0xff]
        %v1155 = vld [vmem:[%s9 + $0x60] sm:$0xff]
        %v1156 = vld [vmem:[%s9 + $0x68] sm:$0xff]
        %v1157 = vld [vmem:[%s9 + $0x70] sm:$0xff]
        %v1158 = vld [vmem:[%s9 + $0x78] sm:$0xff]
        %v1159 = vld [vmem:[%s10] sm:$0x1]
        %v1161 = vperm.slane %v1159, 0
        %1163 = vmatpush.msra.mxu0 %v1158
        %1164 = vmatpush.msra.mxu0 %v1157
        %1165 = vmatpush.msra.mxu0 %v1156
        %1166 = vmatpush.msra.mxu0 %v1155
        %1167 = vmatpush.msra.mxu0 %v1154
        %1168 = vmatpush.msra.mxu0 %v1153
        %1169 = vmatpush.msra.mxu0 %v1152
        %1170 = vmatpush.msra.mxu0 %v1151
        %1171 = vmatpush.msra.mxu0 %v1150
        %1172 = vmatpush.msra.mxu0 %v1149
        %1173 = vmatpush.msra.mxu0 %v1148
        %1174 = vmatpush.msra.mxu0 %v1147
        %1175 = vmatpush.msra.mxu0 %v1146
        %1176 = vmatpush.msra.mxu0 %v1145
        %1177 = vmatpush.msra.mxu0 %v1144
        %1178 = vmatpush.msra.mxu0 %v1143
        %1179 = vmatmul.f32.gmra.mxu0 %v1141
        %v1180 = vpop.f32.mrf.mxu0
        %v1181 = vadd.f32 %v1161, %v1180
        %1182 = vmatmul.f32.gmra.mxu0 %v1142
        %v1183 = vpop.f32.mrf.mxu0
        %v1184 = vadd.f32 %v1161, %v1183
        %1185 = vdwg.mxu0
        %v1186 = vld [vmem:[%s11] sm:$0x1]
        %v1188 = vperm.slane %v1186, 0
        %v1190 = vmul.f32 %v1181, %v1188
        %v1191 = vmul.f32 %v1184, %v1188
        %v1192 = vld [vmem:[%s12] sm:$0x1]
        %v1194 = vperm.slane %v1192, 0
        %v1196 = vadd.f32 %v1190, %v1194
        %v1197 = vadd.f32 %v1191, %v1194
        %v1198 = vadd.f32 %v1196, %v1102
        %v1199 = vadd.f32 %v1197, %v1103
        %1200 = vst.msk [vmem:[%s434] sm:$0xff] %vm452, %v1198
        %1201 = vst.msk [vmem:[%s434 + $0x8] sm:$0xff] %vm452, %v1199
        %s1202 = sand.u32 %s313, 1
        %s1203 = scalar_lea.sflag [#allocation4], %s1202
        %s1204 = sand.u32 %s313, 1
        %s1205 = smul.addr %s1204, 16
        %s1206 = scalar_lea.vmem [#allocation3], %s1205
        // Predicated region
        $region73: #{tpu_custom_call.1} parent=71 // pred_check
          %p1207 = pneg %p323
        $region74: #{tpu_custom_call.1} parent=71 // pred_check_branch
          %1209 = sbr.rel (%p1207) target = $region76
        $region75: #{tpu_custom_call.1} parent=71 // pred_region
          %s1210 = smul.u32 2, %s27
          %1212 = vsyncadd %s1203, 0
          %s1213 = smul.addr %s1210, 8
          %s1214 = scalar_lea.hbm %s13, %s1213
          %s1215 = sshll.u32 %s1206, 4
          %s1216 = int_to_ptr.vmem [resolvable:$true] %s1215
          %s1217 = sshll.u32 %s1214, 4
          %s1218 = int_to_ptr.hbm [resolvable:$true] %s1217
          %1223 = dma.vmem_to_hbm [thread:$0]  %s1216, 256, %s1218, %s1203, 128, 128, 8
        $region76: #{tpu_custom_call.1} parent=71 // pred_fallthru
          _
      $region72: #{tpu_custom_call.1} parent=5 // pred_fallthru
        _
      %p1224 = scmp.le.s32.totalorder 2, %s22
      // Predicated region
      $region77: #{tpu_custom_call.1} parent=5 // pred_check
        %p1225 = pneg %p1224
      $region78: #{tpu_custom_call.1} parent=5 // pred_check_branch
        %1227 = sbr.rel (%p1225) target = $region80
      $region79: #{tpu_custom_call.1} parent=5 // pred_region
        %s1228 = ssub.s32 %s22, 2
        // Predicated region
        $region81: #{tpu_custom_call.1} parent=79 // pred_check
          %p1229 = pneg %p329
        $region82: #{tpu_custom_call.1} parent=79 // pred_check_branch
          %1231 = sbr.rel (%p1229) target = $region84
        $region83: #{tpu_custom_call.1} parent=79 // pred_region
          %s1232 = sand.u32 %s314, 1
          %s1233 = scalar_lea.sflag [#allocation4], %s1232
          %s1234 = sand.u32 %s314, 1
          %s1235 = smul.addr %s1234, 16
          %s1236 = scalar_lea.vmem [#allocation3], %s1235
          %1238 = dma.done %s1233, 256
        $region84: #{tpu_custom_call.1} parent=79 // pred_fallthru
          _
      $region80: #{tpu_custom_call.1} parent=5 // pred_fallthru
        _
    $region6: #{tpu_custom_call.1} parent=1 // loop_footer
      %s26 = sadd.s32 1, %s22
    $region7: #{tpu_custom_call.1} parent=1 // loop_footer_branch
      %21 = sbr.rel target = $region3
    $region8: #{tpu_custom_call.1} parent=1 // loop_exit
      _
    %1239 = vsyncpa [#allocation4], 1
    %s1240 = scalar_lea.sflag [#allocation4], 1
    %1241 = vsyncpa %s1240, 1

// kernel: tpu_custom_call.1
$region0: #{tpu_custom_call.1}
  #allocation0 [shape = 'u32[]', space=smem, size = 0x4, offset = 0x4, fixed_abs, tag = 'smem constant byte address 0x4 - core index']
  #allocation1 [shape = 'u32[72,128]{1,0:T(1,128)}', space=vmem, size = 0x9000, scoped, tag = 'internal scratch']
  #allocation2 [shape = 'f32[16,32]{1,0:T(8,128)}', space=vmem, size = 0x2000, scoped, tag = 'scratch operand']
  %s0 = inlined_call_operand.vmem [shape: f32[6,8,32], index: 0, kind: input, shape index: {}]
  %s1 = inlined_call_operand.vmem [shape: f32[32,96], index: 1, kind: input, shape index: {}]
  %s2 = inlined_call_operand.vmem [shape: f32[1,96], index: 2, kind: input, shape index: {}]
  %s3 = inlined_call_operand.vmem [shape: f32[32,32], index: 3, kind: input, shape index: {}]
  %s4 = inlined_call_operand.vmem [shape: f32[1,32], index: 4, kind: input, shape index: {}]
  %s5 = inlined_call_operand.vmem [shape: f32[1,32], index: 5, kind: input, shape index: {}]
  %s6 = inlined_call_operand.vmem [shape: f32[1,32], index: 6, kind: input, shape index: {}]
  %s7 = inlined_call_operand.vmem [shape: f32[32,128], index: 7, kind: input, shape index: {}]
  %s8 = inlined_call_operand.vmem [shape: f32[1,128], index: 8, kind: input, shape index: {}]
  %s9 = inlined_call_operand.vmem [shape: f32[128,32], index: 9, kind: input, shape index: {}]
  %s10 = inlined_call_operand.vmem [shape: f32[1,32], index: 10, kind: input, shape index: {}]
  %s11 = inlined_call_operand.vmem [shape: f32[1,32], index: 11, kind: input, shape index: {}]
  %s12 = inlined_call_operand.vmem [shape: f32[1,32], index: 12, kind: input, shape index: {}]
  %s13 = inlined_call_operand.hbm [shape: f32[6,8,32], index: 13, kind: output, shape index: {}]
  %s14 = sld [smem:[#allocation0]]
  $region85: #{tpu_custom_call.1} parent=0
    _
  %s16 = ssub.s32 1, %s14
  %s17 = scalar_select 0, %s16, %s14
  $region1: #{tpu_custom_call.1} parent=0
    #allocation3 [shape = 'u8[16384]{0}', space=vmem, size = 0x4000, scoped, tag = 'output window, operand 0']
    #allocation4 [shape = 's32[2]{0}', space=sflag, size = 0x8, scoped, tag = 'scoped memory for tpu_custom_call.1']
    %18 = vsyncpa [#allocation4], 0
    %s19 = scalar_lea.sflag [#allocation4], 1
    %20 = vsyncpa %s19, 0
    loop: start=0, step=1, limit=5
    $region2: #{tpu_custom_call.1} parent=1 // loop_pre_header
      _
    $region3: #{tpu_custom_call.1} parent=1 // loop_header
      %s22 = sphi 0, %s26
      %p23 = scmp.ge.s32.totalorder %s22, 5
      %s32 = sphi 0, %s34
      %s35 = sphi 0, %s32
      %s36 = sphi 0, %s35
      %s52 = sphi 0, %s36
      %s56 = sphi 0, %s56
      %s58 = sphi 0, %s56
      %s59 = sphi 0, %s58
      %s73 = sphi 0, %s59
      %s77 = sphi 0, %s77
      %s79 = sphi 0, %s77
      %s80 = sphi 0, %s79
      %s94 = sphi 0, %s80
      %s98 = sphi 0, %s98
      %s100 = sphi 0, %s98
      %s101 = sphi 0, %s100
      %s115 = sphi 0, %s101
      %s119 = sphi 0, %s119
      %s121 = sphi 0, %s119
      %s122 = sphi 0, %s121
      %s136 = sphi 0, %s122
      %s140 = sphi 0, %s140
      %s142 = sphi 0, %s140
      %s143 = sphi 0, %s142
      %s157 = sphi 0, %s143
      %s161 = sphi 0, %s161
      %s163 = sphi 0, %s161
      %s164 = sphi 0, %s163
      %s178 = sphi 0, %s164
      %s182 = sphi 0, %s182
      %s184 = sphi 0, %s182
      %s185 = sphi 0, %s184
      %s199 = sphi 0, %s185
      %s203 = sphi 0, %s203
      %s205 = sphi 0, %s203
      %s206 = sphi 0, %s205
      %s220 = sphi 0, %s206
      %s224 = sphi 0, %s224
      %s226 = sphi 0, %s224
      %s227 = sphi 0, %s226
      %s241 = sphi 0, %s227
      %s245 = sphi 0, %s245
      %s247 = sphi 0, %s245
      %s248 = sphi 0, %s247
      %s262 = sphi 0, %s248
      %s266 = sphi 0, %s266
      %s268 = sphi 0, %s266
      %s269 = sphi 0, %s268
      %s283 = sphi 0, %s269
      %s287 = sphi 0, %s287
      %s289 = sphi 0, %s287
      %s290 = sphi 0, %s289
      %s304 = sphi 0, %s290
      %s310 = sphi 0, %s312
      %s313 = sphi 0, %s310
      %s314 = sphi 0, %s313
      %s330 = sphi 0, %s314
    $region4: #{tpu_custom_call.1} parent=1 // loop_header_branch
      %25 = sbr.rel (%p23) target = $region8
    $region5: #{tpu_custom_call.1} parent=1 // loop_body
      %s27 = ssub.s32 %s22, 1
      %s28 = ssub.s32 %s22, 2
      %s29 = sadd.s32 %s22, 1
      %s30 = ssub.s32 %s22, %s29
      %p31 = scmp.eq.s32.totalorder %s30, 0
      %s33 = sadd.s32 %s32, 1
      %s34 = scalar_select %p31, %s32, %s33
      %p37 = pneg %p31
      %p38 = scmp.eq.s32.totalorder %s22, 2
      %p39 = por %p37, %p38
      %p40 = scmp.ne.s32.totalorder %s32, %s35
      %p41 = scmp.eq.s32.totalorder %s22, 0
      %p42 = por %p40, %p41
      %p43 = scmp.ne.s32.totalorder %s32, %s35
      %p44 = scmp.eq.s32.totalorder %s27, 2
      %p45 = por %p43, %p44
      %p46 = scmp.ne.s32.totalorder %s35, %s36
      %p47 = scmp.eq.s32.totalorder %s27, 0
      %p48 = por %p46, %p47
      %p49 = scmp.ne.s32.totalorder %s35, %s36
      %p50 = scmp.eq.s32.totalorder %s28, 2
      %p51 = por %p49, %p50
      %p53 = scmp.ne.s32.totalorder %s36, %s52
      %p54 = scmp.eq.s32.totalorder %s28, 0
      %p55 = por %p53, %p54
      %s57 = sadd.s32 %s56, 1
      %p60 = scmp.eq.s32.totalorder %s22, 2
      %p61 = scmp.ne.s32.totalorder %s56, %s58
      %p62 = scmp.eq.s32.totalorder %s22, 0
      %p63 = por %p61, %p62
      %p64 = scmp.ne.s32.totalorder %s56, %s58
      %p65 = scmp.eq.s32.totalorder %s27, 2
      %p66 = por %p64, %p65
      %p67 = scmp.ne.s32.totalorder %s58, %s59
      %p68 = scmp.eq.s32.totalorder %s27, 0
      %p69 = por %p67, %p68
      %p70 = scmp.ne.s32.totalorder %s58, %s59
      %p71 = scmp.eq.s32.totalorder %s28, 2
      %p72 = por %p70, %p71
      %p74 = scmp.ne.s32.totalorder %s59, %s73
      %p75 = scmp.eq.s32.totalorder %s28, 0
      %p76 = por %p74, %p75
      %s78 = sadd.s32 %s77, 1
      %p81 = scmp.eq.s32.totalorder %s22, 2
      %p82 = scmp.ne.s32.totalorder %s77, %s79
      %p83 = scmp.eq.s32.totalorder %s22, 0
      %p84 = por %p82, %p83
      %p85 = scmp.ne.s32.totalorder %s77, %s79
      %p86 = scmp.eq.s32.totalorder %s27, 2
      %p87 = por %p85, %p86
      %p88 = scmp.ne.s32.totalorder %s79, %s80
      %p89 = scmp.eq.s32.totalorder %s27, 0
      %p90 = por %p88, %p89
      %p91 = scmp.ne.s32.totalorder %s79, %s80
      %p92 = scmp.eq.s32.totalorder %s28, 2
      %p93 = por %p91, %p92
      %p95 = scmp.ne.s32.totalorder %s80, %s94
      %p96 = scmp.eq.s32.totalorder %s28, 0
      %p97 = por %p95, %p96
      %s99 = sadd.s32 %s98, 1
      %p102 = scmp.eq.s32.totalorder %s22, 2
      %p103 = scmp.ne.s32.totalorder %s98, %s100
      %p104 = scmp.eq.s32.totalorder %s22, 0
      %p105 = por %p103, %p104
      %p106 = scmp.ne.s32.totalorder %s98, %s100
      %p107 = scmp.eq.s32.totalorder %s27, 2
      %p108 = por %p106, %p107
      %p109 = scmp.ne.s32.totalorder %s100, %s101
      %p110 = scmp.eq.s32.totalorder %s27, 0
      %p111 = por %p109, %p110
      %p112 = scmp.ne.s32.totalorder %s100, %s101
      %p113 = scmp.eq.s32.totalorder %s28, 2
      %p114 = por %p112, %p113
      %p116 = scmp.ne.s32.totalorder %s101, %s115
      %p117 = scmp.eq.s32.totalorder %s28, 0
      %p118 = por %p116, %p117
      %s120 = sadd.s32 %s119, 1
      %p123 = scmp.eq.s32.totalorder %s22, 2
      %p124 = scmp.ne.s32.totalorder %s119, %s121
      %p125 = scmp.eq.s32.totalorder %s22, 0
      %p126 = por %p124, %p125
      %p127 = scmp.ne.s32.totalorder %s119, %s121
      %p128 = scmp.eq.s32.totalorder %s27, 2
      %p129 = por %p127, %p128
      %p130 = scmp.ne.s32.totalorder %s121, %s122
      %p131 = scmp.eq.s32.totalorder %s27, 0
      %p132 = por %p130, %p131
      %p133 = scmp.ne.s32.totalorder %s121, %s122
      %p134 = scmp.eq.s32.totalorder %s28, 2
      %p135 = por %p133, %p134
      %p137 = scmp.ne.s32.totalorder %s122, %s136
      %p138 = scmp.eq.s32.totalorder %s28, 0
      %p139 = por %p137, %p138
      %s141 = sadd.s32 %s140, 1
      %p144 = scmp.eq.s32.totalorder %s22, 2
      %p145 = scmp.ne.s32.totalorder %s140, %s142
      %p146 = scmp.eq.s32.totalorder %s22, 0
      %p147 = por %p145, %p146
      %p148 = scmp.ne.s32.totalorder %s140, %s142
      %p149 = scmp.eq.s32.totalorder %s27, 2
      %p150 = por %p148, %p149
      %p151 = scmp.ne.s32.totalorder %s142, %s143
      %p152 = scmp.eq.s32.totalorder %s27, 0
      %p153 = por %p151, %p152
      %p154 = scmp.ne.s32.totalorder %s142, %s143
      %p155 = scmp.eq.s32.totalorder %s28, 2
      %p156 = por %p154, %p155
      %p158 = scmp.ne.s32.totalorder %s143, %s157
      %p159 = scmp.eq.s32.totalorder %s28, 0
      %p160 = por %p158, %p159
      %s162 = sadd.s32 %s161, 1
      %p165 = scmp.eq.s32.totalorder %s22, 2
      %p166 = scmp.ne.s32.totalorder %s161, %s163
      %p167 = scmp.eq.s32.totalorder %s22, 0
      %p168 = por %p166, %p167
      %p169 = scmp.ne.s32.totalorder %s161, %s163
      %p170 = scmp.eq.s32.totalorder %s27, 2
      %p171 = por %p169, %p170
      %p172 = scmp.ne.s32.totalorder %s163, %s164
      %p173 = scmp.eq.s32.totalorder %s27, 0
      %p174 = por %p172, %p173
      %p175 = scmp.ne.s32.totalorder %s163, %s164
      %p176 = scmp.eq.s32.totalorder %s28, 2
      %p177 = por %p175, %p176
      %p179 = scmp.ne.s32.totalorder %s164, %s178
      %p180 = scmp.eq.s32.totalorder %s28, 0
      %p181 = por %p179, %p180
      %s183 = sadd.s32 %s182, 1
      %p186 = scmp.eq.s32.totalorder %s22, 2
      %p187 = scmp.ne.s32.totalorder %s182, %s184
      %p188 = scmp.eq.s32.totalorder %s22, 0
      %p189 = por %p187, %p188
      %p190 = scmp.ne.s32.totalorder %s182, %s184
      %p191 = scmp.eq.s32.totalorder %s27, 2
      %p192 = por %p190, %p191
      %p193 = scmp.ne.s32.totalorder %s184, %s185
      %p194 = scmp.eq.s32.totalorder %s27, 0
      %p195 = por %p193, %p194
      %p196 = scmp.ne.s32.totalorder %s184, %s185
      %p197 = scmp.eq.s32.totalorder %s28, 2
      %p198 = por %p196, %p197
      %p200 = scmp.ne.s32.totalorder %s185, %s199
      %p201 = scmp.eq.s32.totalorder %s28, 0
      %p202 = por %p200, %p201
      %s204 = sadd.s32 %s203, 1
      %p207 = scmp.eq.s32.totalorder %s22, 2
      %p208 = scmp.ne.s32.totalorder %s203, %s205
      %p209 = scmp.eq.s32.totalorder %s22, 0
      %p210 = por %p208, %p209
      %p211 = scmp.ne.s32.totalorder %s203, %s205
      %p212 = scmp.eq.s32.totalorder %s27, 2
      %p213 = por %p211, %p212
      %p214 = scmp.ne.s32.totalorder %s205, %s206
      %p215 = scmp.eq.s32.totalorder %s27, 0
      %p216 = por %p214, %p215
      %p217 = scmp.ne.s32.totalorder %s205, %s206
      %p218 = scmp.eq.s32.totalorder %s28, 2
      %p219 = por %p217, %p218
      %p221 = scmp.ne.s32.totalorder %s206, %s220
      %p222 = scmp.eq.s32.totalorder %s28, 0
      %p223 = por %p221, %p222
      %s225 = sadd.s32 %s224, 1
      %p228 = scmp.eq.s32.totalorder %s22, 2
      %p229 = scmp.ne.s32.totalorder %s224, %s226
      %p230 = scmp.eq.s32.totalorder %s22, 0
      %p231 = por %p229, %p230
      %p232 = scmp.ne.s32.totalorder %s224, %s226
      %p233 = scmp.eq.s32.totalorder %s27, 2
      %p234 = por %p232, %p233
      %p235 = scmp.ne.s32.totalorder %s226, %s227
      %p236 = scmp.eq.s32.totalorder %s27, 0
      %p237 = por %p235, %p236
      %p238 = scmp.ne.s32.totalorder %s226, %s227
      %p239 = scmp.eq.s32.totalorder %s28, 2
      %p240 = por %p238, %p239
      %p242 = scmp.ne.s32.totalorder %s227, %s241
      %p243 = scmp.eq.s32.totalorder %s28, 0
      %p244 = por %p242, %p243
      %s246 = sadd.s32 %s245, 1
      %p249 = scmp.eq.s32.totalorder %s22, 2
      %p250 = scmp.ne.s32.totalorder %s245, %s247
      %p251 = scmp.eq.s32.totalorder %s22, 0
      %p252 = por %p250, %p251
      %p253 = scmp.ne.s32.totalorder %s245, %s247
      %p254 = scmp.eq.s32.totalorder %s27, 2
      %p255 = por %p253, %p254
      %p256 = scmp.ne.s32.totalorder %s247, %s248
      %p257 = scmp.eq.s32.totalorder %s27, 0
      %p258 = por %p256, %p257
      %p259 = scmp.ne.s32.totalorder %s247, %s248
      %p260 = scmp.eq.s32.totalorder %s28, 2
      %p261 = por %p259, %p260
      %p263 = scmp.ne.s32.totalorder %s248, %s262
      %p264 = scmp.eq.s32.totalorder %s28, 0
      %p265 = por %p263, %p264
      %s267 = sadd.s32 %s266, 1
      %p270 = scmp.eq.s32.totalorder %s22, 2
      %p271 = scmp.ne.s32.totalorder %s266, %s268
      %p272 = scmp.eq.s32.totalorder %s22, 0
      %p273 = por %p271, %p272
      %p274 = scmp.ne.s32.totalorder %s266, %s268
      %p275 = scmp.eq.s32.totalorder %s27, 2
      %p276 = por %p274, %p275
      %p277 = scmp.ne.s32.totalorder %s268, %s269
      %p278 = scmp.eq.s32.totalorder %s27, 0
      %p279 = por %p277, %p278
      %p280 = scmp.ne.s32.totalorder %s268, %s269
      %p281 = scmp.eq.s32.totalorder %s28, 2
      %p282 = por %p280, %p281
      %p284 = scmp.ne.s32.totalorder %s269, %s283
      %p285 = scmp.eq.s32.totalorder %s28, 0
      %p286 = por %p284, %p285
      %s288 = sadd.s32 %s287, 1
      %p291 = scmp.eq.s32.totalorder %s22, 2
      %p292 = scmp.ne.s32.totalorder %s287, %s289
      %p293 = scmp.eq.s32.totalorder %s22, 0
      %p294 = por %p292, %p293
      %p295 = scmp.ne.s32.totalorder %s287, %s289
      %p296 = scmp.eq.s32.totalorder %s27, 2
      %p297 = por %p295, %p296
      %p298 = scmp.ne.s32.totalorder %s289, %s290
      %p299 = scmp.eq.s32.totalorder %s27, 0
      %p300 = por %p298, %p299
      %p301 = scmp.ne.s32.totalorder %s289, %s290
      %p302 = scmp.eq.s32.totalorder %s28, 2
      %p303 = por %p301, %p302
      %p305 = scmp.ne.s32.totalorder %s290, %s304
      %p306 = scmp.eq.s32.totalorder %s28, 0
      %p307 = por %p305, %p306
      %s308 = ssub.s32 %s22, %s29
      %p309 = scmp.eq.s32.totalorder %s308, 0
      %s311 = sadd.s32 %s310, 1
      %s312 = scalar_select %p309, %s310, %s311
      %p315 = pneg %p309
      %p316 = scmp.eq.s32.totalorder %s22, 2
      %p317 = por %p315, %p316
      %p318 = scmp.ne.s32.totalorder %s310, %s313
      %p319 = scmp.eq.s32.totalorder %s22, 0
      %p320 = por %p318, %p319
      %p321 = scmp.ne.s32.totalorder %s310, %s313
      %p322 = scmp.eq.s32.totalorder %s27, 2
      %p323 = por %p321, %p322
      %p324 = scmp.ne.s32.totalorder %s313, %s314
      %p325 = scmp.eq.s32.totalorder %s27, 0
      %p326 = por %p324, %p325
      %p327 = scmp.ne.s32.totalorder %s313, %s314
      %p328 = scmp.eq.s32.totalorder %s28, 2
      %p329 = por %p327, %p328
      %p331 = scmp.ne.s32.totalorder %s314, %s330
      %p332 = scmp.eq.s32.totalorder %s28, 0
      %p333 = por %p331, %p332
      %p334 = scmp.le.s32.totalorder 1, %s22
      %p335 = scmp.lt.s32.totalorder %s22, 4
      %p336 = pnand %p334, %p335
      %p337 = pneg %p336
      // Predicated region
      $region9: #{tpu_custom_call.1} parent=5 // pred_check
        _
      $region10: #{tpu_custom_call.1} parent=5 // pred_check_branch
        %339 = sbr.rel (%p336) target = $region12
      $region11: #{tpu_custom_call.1} parent=5 // pred_region
        %s340 = ssub.s32 %s22, 1
        // Predicated region
        $region13: #{tpu_custom_call.1} parent=11 // pred_check
          %p341 = pneg %p69
        $region14: #{tpu_custom_call.1} parent=11 // pred_check_branch
          %343 = sbr.rel (%p341) target = $region16
        $region15: #{tpu_custom_call.1} parent=11 // pred_region
          _
        $region16: #{tpu_custom_call.1} parent=11 // pred_fallthru
          _
        // Predicated region
        $region17: #{tpu_custom_call.1} parent=11 // pred_check
          %p344 = pneg %p90
        $region18: #{tpu_custom_call.1} parent=11 // pred_check_branch
          %346 = sbr.rel (%p344) target = $region20
        $region19: #{tpu_custom_call.1} parent=11 // pred_region
          _
        $region20: #{tpu_custom_call.1} parent=11 // pred_fallthru
          _
        // Predicated region
        $region21: #{tpu_custom_call.1} parent=11 // pred_check
          %p347 = pneg %p111
        $region22: #{tpu_custom_call.1} parent=11 // pred_check_branch
          %349 = sbr.rel (%p347) target = $region24
        $region23: #{tpu_custom_call.1} parent=11 // pred_region
          _
        $region24: #{tpu_custom_call.1} parent=11 // pred_fallthru
          _
        // Predicated region
        $region25: #{tpu_custom_call.1} parent=11 // pred_check
          %p350 = pneg %p132
        $region26: #{tpu_custom_call.1} parent=11 // pred_check_branch
          %352 = sbr.rel (%p350) target = $region28
        $region27: #{tpu_custom_call.1} parent=11 // pred_region
          _
        $region28: #{tpu_custom_call.1} parent=11 // pred_fallthru
          _
        // Predicated region
        $region29: #{tpu_custom_call.1} parent=11 // pred_check
          %p353 = pneg %p153
        $region30: #{tpu_custom_call.1} parent=11 // pred_check_branch
          %355 = sbr.rel (%p353) target = $region32
        $region31: #{tpu_custom_call.1} parent=11 // pred_region
          _
        $region32: #{tpu_custom_call.1} parent=11 // pred_fallthru
          _
        // Predicated region
        $region33: #{tpu_custom_call.1} parent=11 // pred_check
          %p356 = pneg %p174
        $region34: #{tpu_custom_call.1} parent=11 // pred_check_branch
          %358 = sbr.rel (%p356) target = $region36
        $region35: #{tpu_custom_call.1} parent=11 // pred_region
          _
        $region36: #{tpu_custom_call.1} parent=11 // pred_fallthru
          _
        // Predicated region
        $region37: #{tpu_custom_call.1} parent=11 // pred_check
          %p359 = pneg %p195
        $region38: #{tpu_custom_call.1} parent=11 // pred_check_branch
          %361 = sbr.rel (%p359) target = $region40
        $region39: #{tpu_custom_call.1} parent=11 // pred_region
          _
        $region40: #{tpu_custom_call.1} parent=11 // pred_fallthru
          _
        // Predicated region
        $region41: #{tpu_custom_call.1} parent=11 // pred_check
          %p362 = pneg %p216
        $region42: #{tpu_custom_call.1} parent=11 // pred_check_branch
          %364 = sbr.rel (%p362) target = $region44
        $region43: #{tpu_custom_call.1} parent=11 // pred_region
          _
        $region44: #{tpu_custom_call.1} parent=11 // pred_fallthru
          _
        // Predicated region
        $region45: #{tpu_custom_call.1} parent=11 // pred_check
          %p365 = pneg %p237
        $region46: #{tpu_custom_call.1} parent=11 // pred_check_branch
          %367 = sbr.rel (%p365) target = $region48
        $region47: #{tpu_custom_call.1} parent=11 // pred_region
          _
        $region48: #{tpu_custom_call.1} parent=11 // pred_fallthru
          _
        // Predicated region
        $region49: #{tpu_custom_call.1} parent=11 // pred_check
          %p368 = pneg %p258
        $region50: #{tpu_custom_call.1} parent=11 // pred_check_branch
          %370 = sbr.rel (%p368) target = $region52
        $region51: #{tpu_custom_call.1} parent=11 // pred_region
          _
        $region52: #{tpu_custom_call.1} parent=11 // pred_fallthru
          _
        // Predicated region
        $region53: #{tpu_custom_call.1} parent=11 // pred_check
          %p371 = pneg %p279
        $region54: #{tpu_custom_call.1} parent=11 // pred_check_branch
          %373 = sbr.rel (%p371) target = $region56
        $region55: #{tpu_custom_call.1} parent=11 // pred_region
          _
        $region56: #{tpu_custom_call.1} parent=11 // pred_fallthru
          _
        // Predicated region
        $region57: #{tpu_custom_call.1} parent=11 // pred_check
          %p374 = pneg %p300
        $region58: #{tpu_custom_call.1} parent=11 // pred_check_branch
          %376 = sbr.rel (%p374) target = $region60
        $region59: #{tpu_custom_call.1} parent=11 // pred_region
          _
        $region60: #{tpu_custom_call.1} parent=11 // pred_fallthru
          _
      $region12: #{tpu_custom_call.1} parent=5 // pred_fallthru
        _
      %p377 = scmp.lt.s32.totalorder %s22, 3
      // Predicated region
      $region61: #{tpu_custom_call.1} parent=5 // pred_check
        %p378 = pneg %p377
      $region62: #{tpu_custom_call.1} parent=5 // pred_check_branch
        %380 = sbr.rel (%p378) target = $region64
      $region63: #{tpu_custom_call.1} parent=5 // pred_region
        // Predicated region
        $region65: #{tpu_custom_call.1} parent=63 // pred_check
          %p381 = pneg %p42
        $region66: #{tpu_custom_call.1} parent=63 // pred_check_branch
          %383 = sbr.rel (%p381) target = $region68
        $region67: #{tpu_custom_call.1} parent=63 // pred_region
          %s384 = smul.u32 2, %s22
          %p385 = scmp.lt.s32.totalorder %s384, 5
          %s386 = scalar_select %p385, %s384, 5
          %s387 = smul.addr %s386, 8
          %s388 = scalar_lea.vmem %s0, %s387
          %s389 = smul.u32 2, %s22
        $region68: #{tpu_custom_call.1} parent=63 // pred_fallthru
          _
      $region64: #{tpu_custom_call.1} parent=5 // pred_fallthru
        _
      %p390 = scmp.le.s32.totalorder 1, %s22
      %p391 = scmp.lt.s32.totalorder %s22, 4
      %p392 = pnand %p390, %p391
      %p393 = pneg %p392
      // Predicated region
      $region69: #{tpu_custom_call.1} parent=5 // pred_check
        _
      $region70: #{tpu_custom_call.1} parent=5 // pred_check_branch
        %395 = sbr.rel (%p392) target = $region72
      $region71: #{tpu_custom_call.1} parent=5 // pred_region
        %s396 = ssub.s32 %s22, 1
        %s397 = smul.u32 2, %s27
        %p398 = scmp.lt.s32.totalorder %s397, 5
        %s399 = scalar_select %p398, %s397, 5
        %s400 = smul.addr %s399, 8
        %s401 = scalar_lea.vmem %s0, %s400
        %p402 = pneg %p48
        %p403 = pneg %p45
        %p404 = pneg %p69
        %p405 = pneg %p66
        %p406 = pneg %p90
        %p407 = pneg %p87
        %p408 = pneg %p111
        %p409 = pneg %p108
        %p410 = pneg %p132
        %p411 = pneg %p129
        %p412 = pneg %p153
        %p413 = pneg %p150
        %p414 = pneg %p174
        %p415 = pneg %p171
        %p416 = pneg %p195
        %p417 = pneg %p192
        %p418 = pneg %p216
        %p419 = pneg %p213
        %p420 = pneg %p237
        %p421 = pneg %p234
        %p422 = pneg %p258
        %p423 = pneg %p255
        %p424 = pneg %p279
        %p425 = pneg %p276
        %p426 = pneg %p300
        %p427 = pneg %p297
        %p428 = pneg %p326
        %p429 = pneg %p323
        %s430 = sand.u32 %s313, 1
        %s431 = scalar_lea.sflag [#allocation4], %s430
        %s432 = sand.u32 %s313, 1
        %s433 = smul.addr %s432, 16
        %s434 = scalar_lea.vmem [#allocation3], %s433
        %s435 = smul.u32 2, %s27
        %p436 = scmp.lt.s32.totalorder %s435, 5
        %s437 = scalar_select %p436, %s435, 5
        %s438 = smul.addr %s437, 8
        %s439 = scalar_lea.vmem %s0, %s438
        %s440 = smul.u32 2, %s27
        %s441 = smul.u32 2, %s27
        %v442 = vld [vmem:[%s439] sm:$0xff]
        %v443 = vld [vmem:[%s439 + $0x8] sm:$0xff]
        %v444 = vld [vmem:[%s1] sm:$0xff]
        %v445 = vld [vmem:[%s1 + $0x8] sm:$0xff]
        %v446 = vld [vmem:[%s1 + $0x10] sm:$0xff]
        %v447 = vld [vmem:[%s1 + $0x18] sm:$0xff]
        %v448 = vld [vmem:[%s2] sm:$0x1]
        %v450 = vperm.slane %v448, 0
        %vm452 = vcmask 261120
        %v454 = vsel %vm452, %v442, 0
        %v457 = vsel %vm452, %v443, 0
        %459 = vmatpush.msra.mxu0 0.0
        %460 = vmatpush.msra.mxu0 0.0
        %461 = vmatpush.msra.mxu0 0.0
        %462 = vmatpush.msra.mxu0 0.0
        %463 = vmatpush.msra.mxu0 0.0
        %464 = vmatpush.msra.mxu0 0.0
        %465 = vmatpush.msra.mxu0 0.0
        %466 = vmatpush.msra.mxu0 0.0
        %467 = vmatpush.msra.mxu0 0.0
        %468 = vmatpush.msra.mxu0 0.0
        %469 = vmatpush.msra.mxu0 0.0
        %470 = vmatpush.msra.mxu0 0.0
        %471 = vmatpush.msra.mxu0 %v447
        %472 = vmatpush.msra.mxu0 %v446
        %473 = vmatpush.msra.mxu0 %v445
        %474 = vmatpush.msra.mxu0 %v444
        %475 = vmatmul.f32.gmra.mxu0 %v454
        %v476 = vpop.f32.mrf.mxu0
        %v477 = vadd.f32 %v450, %v476
        %478 = vmatmul.f32.gmra.mxu0 %v457
        %v479 = vpop.f32.mrf.mxu0
        %v480 = vadd.f32 %v450, %v479
        %481 = vdwg.mxu0
        %v482 = vlaneseq
        %v483 = vshrl.u32 %v482, 7
        %v484 = vlaneseq
        %v485 = vand.u32 %v484, 127
        %vm486 = vcmp.le.s32.totalorder %v485, %v483
        %488 = vrot.lane.b32.xlu0 %v477, 96
        %v489 = vpop.permute.xlu0 %488
        %vm490 = vcmask 64512
        %v491 = vsel %vm490, %v477, 0
        %v493 = vsel %vm490, %v489, 0
        %495 = vmatpush.xpose.msra.mxu0 0.0
        %496 = vmatpush.xpose.msra.mxu0 0.0
        %497 = vmatpush.xpose.msra.mxu0 0.0
        %498 = vmatpush.xpose.msra.mxu0 0.0
        %499 = vmatpush.xpose.msra.mxu0 0.0
        %500 = vmatpush.xpose.msra.mxu0 0.0
        %501 = vmatpush.xpose.msra.mxu0 0.0
        %502 = vmatpush.xpose.msra.mxu0 0.0
        %503 = vmatpush.xpose.msra.mxu0 0.0
        %504 = vmatpush.xpose.msra.mxu0 0.0
        %505 = vmatpush.xpose.msra.mxu0 0.0
        %506 = vmatpush.xpose.msra.mxu0 0.0
        %507 = vmatpush.xpose.msra.mxu0 0.0
        %508 = vmatpush.xpose.msra.mxu0 0.0
        %509 = vmatpush.xpose.msra.mxu0 0.0
        %510 = vmatpush.xpose.msra.mxu0 %v493
        %511 = vmatmul.f32.gmra.mxu0 %v491
        %v512 = vpop.f32.mrf.mxu0
        %v513 = vadd.f32 0.0, %v512
        %514 = vdwg.mxu0
        %516 = vrot.lane.b32.xlu0 %v480, 96
        %v517 = vpop.permute.xlu0 %516
        %v518 = vsel %vm490, %v480, 0
        %v520 = vsel %vm490, %v517, 0
        %522 = vmatpush.xpose.msra.mxu0 0.0
        %523 = vmatpush.xpose.msra.mxu0 0.0
        %524 = vmatpush.xpose.msra.mxu0 0.0
        %525 = vmatpush.xpose.msra.mxu0 0.0
        %526 = vmatpush.xpose.msra.mxu0 0.0
        %527 = vmatpush.xpose.msra.mxu0 0.0
        %528 = vmatpush.xpose.msra.mxu0 0.0
        %529 = vmatpush.xpose.msra.mxu0 0.0
        %530 = vmatpush.xpose.msra.mxu0 0.0
        %531 = vmatpush.xpose.msra.mxu0 0.0
        %532 = vmatpush.xpose.msra.mxu0 0.0
        %533 = vmatpush.xpose.msra.mxu0 0.0
        %534 = vmatpush.xpose.msra.mxu0 0.0
        %535 = vmatpush.xpose.msra.mxu0 0.0
        %536 = vmatpush.xpose.msra.mxu0 0.0
        %537 = vmatpush.xpose.msra.mxu0 %v520
        %538 = vmatmul.f32.gmra.mxu0 %v518
        %v539 = vpop.f32.mrf.mxu0
        %v540 = vadd.f32 0.0, %v539
        %541 = vdwg.mxu0
        %v542 = vsel %vm486, 1, 0
        %vm543 = vcmp.eq.s32.totalorder %v542, 1
        %v544 = vsel %vm543, %v513, -1e+30
        %v545 = vsel %vm543, %v540, -1e+30
        %v546 = vsel %vm490, %v544, -inf
        %547 = vmax.xlane.f32.xlu0 %v546
        %v548 = vpop.xlane.xlu0 %547
        %v549 = vsel %vm490, %v545, -inf
        %550 = vmax.xlane.f32.xlu0 %v549
        %v551 = vpop.xlane.xlu0 %550
        %v552 = vsub.f32 %v544, %v548
        %v553 = vsub.f32 %v545, %v551
        %v554 = vmul.f32 %v552, 1.442695
        %v555 = vpow.pop %v554
        %v556 = vmul.f32 %v553, 1.442695
        %v557 = vpow.pop %v556
        %v558 = vsel %vm490, %v555, 0.0
        %559 = vadd.xlane.f32.xlu0 %v558
        %v560 = vpop.xlane.xlu0 %559
        %v561 = vsel %vm490, %v557, 0.0
        %562 = vadd.xlane.f32.xlu0 %v561
        %v563 = vpop.xlane.xlu0 %562
        %v564 = vrcp.pop %v560
        %v565 = vrcp.pop %v563
        %v566 = vmul.f32 %v555, %v564
        %v567 = vmul.f32 %v557, %v565
        %568 = vrot.lane.b32.xlu0 %v477, 64
        %v569 = vpop.permute.xlu0 %568
        %v572 = vsel %vm490, %v566, 0
        %574 = vmatpush.msra.mxu0 0.0
        %575 = vmatpush.msra.mxu0 0.0
        %576 = vmatpush.msra.mxu0 0.0
        %577 = vmatpush.msra.mxu0 0.0
        %578 = vmatpush.msra.mxu0 0.0
        %579 = vmatpush.msra.mxu0 0.0
        %580 = vmatpush.msra.mxu0 0.0
        %581 = vmatpush.msra.mxu0 0.0
        %582 = vmatpush.msra.mxu0 0.0
        %583 = vmatpush.msra.mxu0 0.0
        %584 = vmatpush.msra.mxu0 0.0
        %585 = vmatpush.msra.mxu0 0.0
        %586 = vmatpush.msra.mxu0 0.0
        %587 = vmatpush.msra.mxu0 0.0
        %588 = vmatpush.msra.mxu0 0.0
        %589 = vmatpush.msra.mxu0 %v569
        %590 = vmatmul.f32.gmra.mxu0 %v572
        %v591 = vpop.f32.mrf.mxu0
        %v592 = vadd.f32 0.0, %v591
        %593 = vdwg.mxu0
        %594 = vrot.lane.b32.xlu0 %v480, 64
        %v595 = vpop.permute.xlu0 %594
        %v598 = vsel %vm490, %v567, 0
        %600 = vmatpush.msra.mxu0 0.0
        %601 = vmatpush.msra.mxu0 0.0
        %602 = vmatpush.msra.mxu0 0.0
        %603 = vmatpush.msra.mxu0 0.0
        %604 = vmatpush.msra.mxu0 0.0
        %605 = vmatpush.msra.mxu0 0.0
        %606 = vmatpush.msra.mxu0 0.0
        %607 = vmatpush.msra.mxu0 0.0
        %608 = vmatpush.msra.mxu0 0.0
        %609 = vmatpush.msra.mxu0 0.0
        %610 = vmatpush.msra.mxu0 0.0
        %611 = vmatpush.msra.mxu0 0.0
        %612 = vmatpush.msra.mxu0 0.0
        %613 = vmatpush.msra.mxu0 0.0
        %614 = vmatpush.msra.mxu0 0.0
        %615 = vmatpush.msra.mxu0 %v595
        %616 = vmatmul.f32.gmra.mxu0 %v598
        %v617 = vpop.f32.mrf.mxu0
        %v618 = vadd.f32 0.0, %v617
        %619 = vdwg.mxu0
        %620 = vst.msk [vmem:[#allocation2] sm:$0xff] %vm490, %v592
        %621 = vst.msk [vmem:[#allocation2 + $0x8] sm:$0xff] %vm490, %v618
        %622 = vrot.lane.b32.xlu0 %v477, 120
        %v623 = vpop.permute.xlu0 %622
        %624 = vrot.lane.b32.xlu0 %v477, 88
        %v625 = vpop.permute.xlu0 %624
        %v626 = vsel %vm490, %v623, 0
        %v628 = vsel %vm490, %v625, 0
        %630 = vmatpush.xpose.msra.mxu0 0.0
        %631 = vmatpush.xpose.msra.mxu0 0.0
        %632 = vmatpush.xpose.msra.mxu0 0.0
        %633 = vmatpush.xpose.msra.mxu0 0.0
        %634 = vmatpush.xpose.msra.mxu0 0.0
        %635 = vmatpush.xpose.msra.mxu0 0.0
        %636 = vmatpush.xpose.msra.mxu0 0.0
        %637 = vmatpush.xpose.msra.mxu0 0.0
        %638 = vmatpush.xpose.msra.mxu0 0.0
        %639 = vmatpush.xpose.msra.mxu0 0.0
        %640 = vmatpush.xpose.msra.mxu0 0.0
        %641 = vmatpush.xpose.msra.mxu0 0.0
        %642 = vmatpush.xpose.msra.mxu0 0.0
        %643 = vmatpush.xpose.msra.mxu0 0.0
        %644 = vmatpush.xpose.msra.mxu0 0.0
        %645 = vmatpush.xpose.msra.mxu0 %v628
        %646 = vmatmul.f32.gmra.mxu0 %v626
        %v647 = vpop.f32.mrf.mxu0
        %v648 = vadd.f32 0.0, %v647
        %649 = vdwg.mxu0
        %650 = vrot.lane.b32.xlu0 %v480, 120
        %v651 = vpop.permute.xlu0 %650
        %652 = vrot.lane.b32.xlu0 %v480, 88
        %v653 = vpop.permute.xlu0 %652
        %v654 = vsel %vm490, %v651, 0
        %v656 = vsel %vm490, %v653, 0
        %658 = vmatpush.xpose.msra.mxu0 0.0
        %659 = vmatpush.xpose.msra.mxu0 0.0
        %660 = vmatpush.xpose.msra.mxu0 0.0
        %661 = vmatpush.xpose.msra.mxu0 0.0
        %662 = vmatpush.xpose.msra.mxu0 0.0
        %663 = vmatpush.xpose.msra.mxu0 0.0
        %664 = vmatpush.xpose.msra.mxu0 0.0
        %665 = vmatpush.xpose.msra.mxu0 0.0
        %666 = vmatpush.xpose.msra.mxu0 0.0
        %667 = vmatpush.xpose.msra.mxu0 0.0
        %668 = vmatpush.xpose.msra.mxu0 0.0
        %669 = vmatpush.xpose.msra.mxu0 0.0
        %670 = vmatpush.xpose.msra.mxu0 0.0
        %671 = vmatpush.xpose.msra.mxu0 0.0
        %672 = vmatpush.xpose.msra.mxu0 0.0
        %673 = vmatpush.xpose.msra.mxu0 %v656
        %674 = vmatmul.f32.gmra.mxu0 %v654
        %v675 = vpop.f32.mrf.mxu0
        %v676 = vadd.f32 0.0, %v675
        %677 = vdwg.mxu0
        %v678 = vsel %vm543, %v648, -1e+30
        %v679 = vsel %vm543, %v676, -1e+30
        %v680 = vsel %vm490, %v678, -inf
        %681 = vmax.xlane.f32.xlu0 %v680
        %v682 = vpop.xlane.xlu0 %681
        %v683 = vsel %vm490, %v679, -inf
        %684 = vmax.xlane.f32.xlu0 %v683
        %v685 = vpop.xlane.xlu0 %684
        %v686 = vsub.f32 %v678, %v682
        %v687 = vsub.f32 %v679, %v685
        %v688 = vmul.f32 %v686, 1.442695
        %v689 = vpow.pop %v688
        %v690 = vmul.f32 %v687, 1.442695
        %v691 = vpow.pop %v690
        %v692 = vsel %vm490, %v689, 0.0
        %693 = vadd.xlane.f32.xlu0 %v692
        %v694 = vpop.xlane.xlu0 %693
        %v695 = vsel %vm490, %v691, 0.0
        %696 = vadd.xlane.f32.xlu0 %v695
        %v697 = vpop.xlane.xlu0 %696
        %v698 = vrcp.pop %v694
        %v699 = vrcp.pop %v697
        %v700 = vmul.f32 %v689, %v698
        %v701 = vmul.f32 %v691, %v699
        %702 = vrot.lane.b32.xlu0 %v477, 56
        %v703 = vpop.permute.xlu0 %702
        %v706 = vsel %vm490, %v700, 0
        %708 = vmatpush.msra.mxu0 0.0
        %709 = vmatpush.msra.mxu0 0.0
        %710 = vmatpush.msra.mxu0 0.0
        %711 = vmatpush.msra.mxu0 0.0
        %712 = vmatpush.msra.mxu0 0.0
        %713 = vmatpush.msra.mxu0 0.0
        %714 = vmatpush.msra.mxu0 0.0
        %715 = vmatpush.msra.mxu0 0.0
        %716 = vmatpush.msra.mxu0 0.0
        %717 = vmatpush.msra.mxu0 0.0
        %718 = vmatpush.msra.mxu0 0.0
        %719 = vmatpush.msra.mxu0 0.0
        %720 = vmatpush.msra.mxu0 0.0
        %721 = vmatpush.msra.mxu0 0.0
        %722 = vmatpush.msra.mxu0 0.0
        %723 = vmatpush.msra.mxu0 %v703
        %724 = vmatmul.f32.gmra.mxu0 %v706
        %v725 = vpop.f32.mrf.mxu0
        %v726 = vadd.f32 0.0, %v725
        %727 = vdwg.mxu0
        %728 = vrot.lane.b32.xlu0 %v480, 56
        %v729 = vpop.permute.xlu0 %728
        %v732 = vsel %vm490, %v701, 0
        %734 = vmatpush.msra.mxu0 0.0
        %735 = vmatpush.msra.mxu0 0.0
        %736 = vmatpush.msra.mxu0 0.0
        %737 = vmatpush.msra.mxu0 0.0
        %738 = vmatpush.msra.mxu0 0.0
        %739 = vmatpush.msra.mxu0 0.0
        %740 = vmatpush.msra.mxu0 0.0
        %741 = vmatpush.msra.mxu0 0.0
        %742 = vmatpush.msra.mxu0 0.0
        %743 = vmatpush.msra.mxu0 0.0
        %744 = vmatpush.msra.mxu0 0.0
        %745 = vmatpush.msra.mxu0 0.0
        %746 = vmatpush.msra.mxu0 0.0
        %747 = vmatpush.msra.mxu0 0.0
        %748 = vmatpush.msra.mxu0 0.0
        %749 = vmatpush.msra.mxu0 %v729
        %750 = vmatmul.f32.gmra.mxu0 %v732
        %v751 = vpop.f32.mrf.mxu0
        %v752 = vadd.f32 0.0, %v751
        %753 = vdwg.mxu0
        %756 = vrot.lane.b32.xlu0 %v726, 8
        %v757 = vpop.permute.xlu0 %756
        %758 = vrot.lane.b32.xlu0 %v752, 8
        %v759 = vpop.permute.xlu0 %758
        %vm762 = vcmask 130112
        %763 = vst.msk [vmem:[#allocation2] sm:$0xff] %vm762, %v757
        %764 = vst.msk [vmem:[#allocation2 + $0x8] sm:$0xff] %vm762, %v759
        %765 = vrot.lane.b32.xlu0 %v477, 112
        %v766 = vpop.permute.xlu0 %765
        %767 = vrot.lane.b32.xlu0 %v477, 80
        %v768 = vpop.permute.xlu0 %767
        %v769 = vsel %vm490, %v766, 0
        %v771 = vsel %vm490, %v768, 0
        %773 = vmatpush.xpose.msra.mxu0 0.0
        %774 = vmatpush.xpose.msra.mxu0 0.0
        %775 = vmatpush.xpose.msra.mxu0 0.0
        %776 = vmatpush.xpose.msra.mxu0 0.0
        %777 = vmatpush.xpose.msra.mxu0 0.0
        %778 = vmatpush.xpose.msra.mxu0 0.0
        %779 = vmatpush.xpose.msra.mxu0 0.0
        %780 = vmatpush.xpose.msra.mxu0 0.0
        %781 = vmatpush.xpose.msra.mxu0 0.0
        %782 = vmatpush.xpose.msra.mxu0 0.0
        %783 = vmatpush.xpose.msra.mxu0 0.0
        %784 = vmatpush.xpose.msra.mxu0 0.0
        %785 = vmatpush.xpose.msra.mxu0 0.0
        %786 = vmatpush.xpose.msra.mxu0 0.0
        %787 = vmatpush.xpose.msra.mxu0 0.0
        %788 = vmatpush.xpose.msra.mxu0 %v771
        %789 = vmatmul.f32.gmra.mxu0 %v769
        %v790 = vpop.f32.mrf.mxu0
        %v791 = vadd.f32 0.0, %v790
        %792 = vdwg.mxu0
        %793 = vrot.lane.b32.xlu0 %v480, 112
        %v794 = vpop.permute.xlu0 %793
        %795 = vrot.lane.b32.xlu0 %v480, 80
        %v796 = vpop.permute.xlu0 %795
        %v797 = vsel %vm490, %v794, 0
        %v799 = vsel %vm490, %v796, 0
        %801 = vmatpush.xpose.msra.mxu0 0.0
        %802 = vmatpush.xpose.msra.mxu0 0.0
        %803 = vmatpush.xpose.msra.mxu0 0.0
        %804 = vmatpush.xpose.msra.mxu0 0.0
        %805 = vmatpush.xpose.msra.mxu0 0.0
        %806 = vmatpush.xpose.msra.mxu0 0.0
        %807 = vmatpush.xpose.msra.mxu0 0.0
        %808 = vmatpush.xpose.msra.mxu0 0.0
        %809 = vmatpush.xpose.msra.mxu0 0.0
        %810 = vmatpush.xpose.msra.mxu0 0.0
        %811 = vmatpush.xpose.msra.mxu0 0.0
        %812 = vmatpush.xpose.msra.mxu0 0.0
        %813 = vmatpush.xpose.msra.mxu0 0.0
        %814 = vmatpush.xpose.msra.mxu0 0.0
        %815 = vmatpush.xpose.msra.mxu0 0.0
        %816 = vmatpush.xpose.msra.mxu0 %v799
        %817 = vmatmul.f32.gmra.mxu0 %v797
        %v818 = vpop.f32.mrf.mxu0
        %v819 = vadd.f32 0.0, %v818
        %820 = vdwg.mxu0
        %v821 = vsel %vm543, %v791, -1e+30
        %v822 = vsel %vm543, %v819, -1e+30
        %v823 = vsel %vm490, %v821, -inf
        %824 = vmax.xlane.f32.xlu0 %v823
        %v825 = vpop.xlane.xlu0 %824
        %v826 = vsel %vm490, %v822, -inf
        %827 = vmax.xlane.f32.xlu0 %v826
        %v828 = vpop.xlane.xlu0 %827
        %v829 = vsub.f32 %v821, %v825
        %v830 = vsub.f32 %v822, %v828
        %v831 = vmul.f32 %v829, 1.442695
        %v832 = vpow.pop %v831
        %v833 = vmul.f32 %v830, 1.442695
        %v834 = vpow.pop %v833
        %v835 = vsel %vm490, %v832, 0.0
        %836 = vadd.xlane.f32.xlu0 %v835
        %v837 = vpop.xlane.xlu0 %836
        %v838 = vsel %vm490, %v834, 0.0
        %839 = vadd.xlane.f32.xlu0 %v838
        %v840 = vpop.xlane.xlu0 %839
        %v841 = vrcp.pop %v837
        %v842 = vrcp.pop %v840
        %v843 = vmul.f32 %v832, %v841
        %v844 = vmul.f32 %v834, %v842
        %845 = vrot.lane.b32.xlu0 %v477, 48
        %v846 = vpop.permute.xlu0 %845
        %v849 = vsel %vm490, %v843, 0
        %851 = vmatpush.msra.mxu0 0.0
        %852 = vmatpush.msra.mxu0 0.0
        %853 = vmatpush.msra.mxu0 0.0
        %854 = vmatpush.msra.mxu0 0.0
        %855 = vmatpush.msra.mxu0 0.0
        %856 = vmatpush.msra.mxu0 0.0
        %857 = vmatpush.msra.mxu0 0.0
        %858 = vmatpush.msra.mxu0 0.0
        %859 = vmatpush.msra.mxu0 0.0
        %860 = vmatpush.msra.mxu0 0.0
        %861 = vmatpush.msra.mxu0 0.0
        %862 = vmatpush.msra.mxu0 0.0
        %863 = vmatpush.msra.mxu0 0.0
        %864 = vmatpush.msra.mxu0 0.0
        %865 = vmatpush.msra.mxu0 0.0
        %866 = vmatpush.msra.mxu0 %v846
        %867 = vmatmul.f32.gmra.mxu0 %v849
        %v868 = vpop.f32.mrf.mxu0
        %v869 = vadd.f32 0.0, %v868
        %870 = vdwg.mxu0
        %871 = vrot.lane.b32.xlu0 %v480, 48
        %v872 = vpop.permute.xlu0 %871
        %v875 = vsel %vm490, %v844, 0
        %877 = vmatpush.msra.mxu0 0.0
        %878 = vmatpush.msra.mxu0 0.0
        %879 = vmatpush.msra.mxu0 0.0
        %880 = vmatpush.msra.mxu0 0.0
        %881 = vmatpush.msra.mxu0 0.0
        %882 = vmatpush.msra.mxu0 0.0
        %883 = vmatpush.msra.mxu0 0.0
        %884 = vmatpush.msra.mxu0 0.0
        %885 = vmatpush.msra.mxu0 0.0
        %886 = vmatpush.msra.mxu0 0.0
        %887 = vmatpush.msra.mxu0 0.0
        %888 = vmatpush.msra.mxu0 0.0
        %889 = vmatpush.msra.mxu0 0.0
        %890 = vmatpush.msra.mxu0 0.0
        %891 = vmatpush.msra.mxu0 0.0
        %892 = vmatpush.msra.mxu0 %v872
        %893 = vmatmul.f32.gmra.mxu0 %v875
        %v894 = vpop.f32.mrf.mxu0
        %v895 = vadd.f32 0.0, %v894
        %896 = vdwg.mxu0
        %899 = vrot.lane.b32.xlu0 %v869, 16
        %v900 = vpop.permute.xlu0 %899
        %901 = vrot.lane.b32.xlu0 %v895, 16
        %v902 = vpop.permute.xlu0 %901
        %vm905 = vcmask 195712
        %906 = vst.msk [vmem:[#allocation2] sm:$0xff] %vm905, %v900
        %907 = vst.msk [vmem:[#allocation2 + $0x8] sm:$0xff] %vm905, %v902
        %908 = vrot.lane.b32.xlu0 %v477, 104
        %v909 = vpop.permute.xlu0 %908
        %910 = vrot.lane.b32.xlu0 %v477, 72
        %v911 = vpop.permute.xlu0 %910
        %v912 = vsel %vm490, %v909, 0
        %v914 = vsel %vm490, %v911, 0
        %916 = vmatpush.xpose.msra.mxu0 0.0
        %917 = vmatpush.xpose.msra.mxu0 0.0
        %918 = vmatpush.xpose.msra.mxu0 0.0
        %919 = vmatpush.xpose.msra.mxu0 0.0
        %920 = vmatpush.xpose.msra.mxu0 0.0
        %921 = vmatpush.xpose.msra.mxu0 0.0
        %922 = vmatpush.xpose.msra.mxu0 0.0
        %923 = vmatpush.xpose.msra.mxu0 0.0
        %924 = vmatpush.xpose.msra.mxu0 0.0
        %925 = vmatpush.xpose.msra.mxu0 0.0
        %926 = vmatpush.xpose.msra.mxu0 0.0
        %927 = vmatpush.xpose.msra.mxu0 0.0
        %928 = vmatpush.xpose.msra.mxu0 0.0
        %929 = vmatpush.xpose.msra.mxu0 0.0
        %930 = vmatpush.xpose.msra.mxu0 0.0
        %931 = vmatpush.xpose.msra.mxu0 %v914
        %932 = vmatmul.f32.gmra.mxu0 %v912
        %v933 = vpop.f32.mrf.mxu0
        %v934 = vadd.f32 0.0, %v933
        %935 = vdwg.mxu0
        %936 = vrot.lane.b32.xlu0 %v480, 104
        %v937 = vpop.permute.xlu0 %936
        %938 = vrot.lane.b32.xlu0 %v480, 72
        %v939 = vpop.permute.xlu0 %938
        %v940 = vsel %vm490, %v937, 0
        %v942 = vsel %vm490, %v939, 0
        %944 = vmatpush.xpose.msra.mxu0 0.0
        %945 = vmatpush.xpose.msra.mxu0 0.0
        %946 = vmatpush.xpose.msra.mxu0 0.0
        %947 = vmatpush.xpose.msra.mxu0 0.0
        %948 = vmatpush.xpose.msra.mxu0 0.0
        %949 = vmatpush.xpose.msra.mxu0 0.0
        %950 = vmatpush.xpose.msra.mxu0 0.0
        %951 = vmatpush.xpose.msra.mxu0 0.0
        %952 = vmatpush.xpose.msra.mxu0 0.0
        %953 = vmatpush.xpose.msra.mxu0 0.0
        %954 = vmatpush.xpose.msra.mxu0 0.0
        %955 = vmatpush.xpose.msra.mxu0 0.0
        %956 = vmatpush.xpose.msra.mxu0 0.0
        %957 = vmatpush.xpose.msra.mxu0 0.0
        %958 = vmatpush.xpose.msra.mxu0 0.0
        %959 = vmatpush.xpose.msra.mxu0 %v942
        %960 = vmatmul.f32.gmra.mxu0 %v940
        %v961 = vpop.f32.mrf.mxu0
        %v962 = vadd.f32 0.0, %v961
        %963 = vdwg.mxu0
        %v964 = vsel %vm543, %v934, -1e+30
        %v965 = vsel %vm543, %v962, -1e+30
        %v966 = vsel %vm490, %v964, -inf
        %967 = vmax.xlane.f32.xlu0 %v966
        %v968 = vpop.xlane.xlu0 %967
        %v969 = vsel %vm490, %v965, -inf
        %970 = vmax.xlane.f32.xlu0 %v969
        %v971 = vpop.xlane.xlu0 %970
        %v972 = vsub.f32 %v964, %v968
        %v973 = vsub.f32 %v965, %v971
        %v974 = vmul.f32 %v972, 1.442695
        %v975 = vpow.pop %v974
        %v976 = vmul.f32 %v973, 1.442695
        %v977 = vpow.pop %v976
        %v978 = vsel %vm490, %v975, 0.0
        %979 = vadd.xlane.f32.xlu0 %v978
        %v980 = vpop.xlane.xlu0 %979
        %v981 = vsel %vm490, %v977, 0.0
        %982 = vadd.xlane.f32.xlu0 %v981
        %v983 = vpop.xlane.xlu0 %982
        %v984 = vrcp.pop %v980
        %v985 = vrcp.pop %v983
        %v986 = vmul.f32 %v975, %v984
        %v987 = vmul.f32 %v977, %v985
        %988 = vrot.lane.b32.xlu0 %v477, 40
        %v989 = vpop.permute.xlu0 %988
        %v992 = vsel %vm490, %v986, 0
        %994 = vmatpush.msra.mxu0 0.0
        %995 = vmatpush.msra.mxu0 0.0
        %996 = vmatpush.msra.mxu0 0.0
        %997 = vmatpush.msra.mxu0 0.0
        %998 = vmatpush.msra.mxu0 0.0
        %999 = vmatpush.msra.mxu0 0.0
        %1000 = vmatpush.msra.mxu0 0.0
        %1001 = vmatpush.msra.mxu0 0.0
        %1002 = vmatpush.msra.mxu0 0.0
        %1003 = vmatpush.msra.mxu0 0.0
        %1004 = vmatpush.msra.mxu0 0.0
        %1005 = vmatpush.msra.mxu0 0.0
        %1006 = vmatpush.msra.mxu0 0.0
        %1007 = vmatpush.msra.mxu0 0.0
        %1008 = vmatpush.msra.mxu0 0.0
        %1009 = vmatpush.msra.mxu0 %v989
        %1010 = vmatmul.f32.gmra.mxu0 %v992
        %v1011 = vpop.f32.mrf.mxu0
        %v1012 = vadd.f32 0.0, %v1011
        %1013 = vdwg.mxu0
        %1014 = vrot.lane.b32.xlu0 %v480, 40
        %v1015 = vpop.permute.xlu0 %1014
        %v1018 = vsel %vm490, %v987, 0
        %1020 = vmatpush.msra.mxu0 0.0
        %1021 = vmatpush.msra.mxu0 0.0
        %1022 = vmatpush.msra.mxu0 0.0
        %1023 = vmatpush.msra.mxu0 0.0
        %1024 = vmatpush.msra.mxu0 0.0
        %1025 = vmatpush.msra.mxu0 0.0
        %1026 = vmatpush.msra.mxu0 0.0
        %1027 = vmatpush.msra.mxu0 0.0
        %1028 = vmatpush.msra.mxu0 0.0
        %1029 = vmatpush.msra.mxu0 0.0
        %1030 = vmatpush.msra.mxu0 0.0
        %1031 = vmatpush.msra.mxu0 0.0
        %1032 = vmatpush.msra.mxu0 0.0
        %1033 = vmatpush.msra.mxu0 0.0
        %1034 = vmatpush.msra.mxu0 0.0
        %1035 = vmatpush.msra.mxu0 %v1015
        %1036 = vmatmul.f32.gmra.mxu0 %v1018
        %v1037 = vpop.f32.mrf.mxu0
        %v1038 = vadd.f32 0.0, %v1037
        %1039 = vdwg.mxu0
        %1042 = vrot.lane.b32.xlu0 %v1012, 24
        %v1043 = vpop.permute.xlu0 %1042
        %1044 = vrot.lane.b32.xlu0 %v1038, 24
        %v1045 = vpop.permute.xlu0 %1044
        %vm1048 = vcmask 261312
        %1049 = vst.msk [vmem:[#allocation2] sm:$0xff] %vm1048, %v1043
        %1050 = vst.msk [vmem:[#allocation2 + $0x8] sm:$0xff] %vm1048, %v1045
        %v1051 = vld [vmem:[#allocation2] sm:$0xff]
        %v1052 = vld [vmem:[#allocation2 + $0x8] sm:$0xff]
        %v1053 = vld [vmem:[%s3] sm:$0xff]
        %v1054 = vld [vmem:[%s3 + $0x8] sm:$0xff]
        %v1055 = vld [vmem:[%s3 + $0x10] sm:$0xff]
        %v1056 = vld [vmem:[%s3 + $0x18] sm:$0xff]
        %v1057 = vld [vmem:[%s4] sm:$0x1]
        %v1059 = vperm.slane %v1057, 0
        %v1062 = vsel %vm452, %v1051, 0
        %v1065 = vsel %vm452, %v1052, 0
        %1067 = vmatpush.msra.mxu0 0.0
        %1068 = vmatpush.msra.mxu0 0.0
        %1069 = vmatpush.msra.mxu0 0.0
        %1070 = vmatpush.msra.mxu0 0.0
        %1071 = vmatpush.msra.mxu0 0.0
        %1072 = vmatpush.msra.mxu0 0.0
        %1073 = vmatpush.msra.mxu0 0.0
        %1074 = vmatpush.msra.mxu0 0.0
        %1075 = vmatpush.msra.mxu0 0.0
        %1076 = vmatpush.msra.mxu0 0.0
        %1077 = vmatpush.msra.mxu0 0.0
        %1078 = vmatpush.msra.mxu0 0.0
        %1079 = vmatpush.msra.mxu0 %v1056
        %1080 = vmatpush.msra.mxu0 %v1055
        %1081 = vmatpush.msra.mxu0 %v1054
        %1082 = vmatpush.msra.mxu0 %v1053
        %1083 = vmatmul.f32.gmra.mxu0 %v1062
        %v1084 = vpop.f32.mrf.mxu0
        %v1085 = vadd.f32 %v1059, %v1084
        %1086 = vmatmul.f32.gmra.mxu0 %v1065
        %v1087 = vpop.f32.mrf.mxu0
        %v1088 = vadd.f32 %v1059, %v1087
        %1089 = vdwg.mxu0
        %v1090 = vld [vmem:[%s5] sm:$0x1]
        %v1092 = vperm.slane %v1090, 0
        %v1094 = vmul.f32 %v1085, %v1092
        %v1095 = vmul.f32 %v1088, %v1092
        %v1096 = vld [vmem:[%s6] sm:$0x1]
        %v1098 = vperm.slane %v1096, 0
        %v1100 = vadd.f32 %v1094, %v1098
        %v1101 = vadd.f32 %v1095, %v1098
        %v1102 = vadd.f32 %v1100, %v442
        %v1103 = vadd.f32 %v1101, %v443
        %v1104 = vld [vmem:[%s7] sm:$0xff]
        %v1105 = vld [vmem:[%s7 + $0x8] sm:$0xff]
        %v1106 = vld [vmem:[%s7 + $0x10] sm:$0xff]
        %v1107 = vld [vmem:[%s7 + $0x18] sm:$0xff]
        %v1108 = vld [vmem:[%s8] sm:$0x1]
        %v1110 = vperm.slane %v1108, 0
        %v1113 = vsel %vm452, %v1102, 0
        %v1116 = vsel %vm452, %v1103, 0
        %1118 = vmatpush.msra.mxu0 0.0
        %1119 = vmatpush.msra.mxu0 0.0
        %1120 = vmatpush.msra.mxu0 0.0
        %1121 = vmatpush.msra.mxu0 0.0
        %1122 = vmatpush.msra.mxu0 0.0
        %1123 = vmatpush.msra.mxu0 0.0
        %1124 = vmatpush.msra.mxu0 0.0
        %1125 = vmatpush.msra.mxu0 0.0
        %1126 = vmatpush.msra.mxu0 0.0
        %1127 = vmatpush.msra.mxu0 0.0
        %1128 = vmatpush.msra.mxu0 0.0
        %1129 = vmatpush.msra.mxu0 0.0
        %1130 = vmatpush.msra.mxu0 %v1107
        %1131 = vmatpush.msra.mxu0 %v1106
        %1132 = vmatpush.msra.mxu0 %v1105
        %1133 = vmatpush.msra.mxu0 %v1104
        %1134 = vmatmul.f32.gmra.mxu0 %v1113
        %v1135 = vpop.f32.mrf.mxu0
        %v1136 = vadd.f32 %v1110, %v1135
        %1137 = vmatmul.f32.gmra.mxu0 %v1116
        %v1138 = vpop.f32.mrf.mxu0
        %v1139 = vadd.f32 %v1110, %v1138
        %1140 = vdwg.mxu0
        %v1141 = vmax.f32 %v1136, 0.0
        %v1142 = vmax.f32 %v1139, 0.0
        %v1143 = vld [vmem:[%s9] sm:$0xff]
        %v1144 = vld [vmem:[%s9 + $0x8] sm:$0xff]
        %v1145 = vld [vmem:[%s9 + $0x10] sm:$0xff]
        %v1146 = vld [vmem:[%s9 + $0x18] sm:$0xff]
        %v1147 = vld [vmem:[%s9 + $0x20] sm:$0xff]
        %v1148 = vld [vmem:[%s9 + $0x28] sm:$0xff]
        %v1149 = vld [vmem:[%s9 + $0x30] sm:$0xff]
        %v1150 = vld [vmem:[%s9 + $0x38] sm:$0xff]
        %v1151 = vld [vmem:[%s9 + $0x40] sm:$0xff]
        %v1152 = vld [vmem:[%s9 + $0x48] sm:$0xff]
        %v1153 = vld [vmem:[%s9 + $0x50] sm:$0xff]
        %v1154 = vld [vmem:[%s9 + $0x58] sm:$0xff]
        %v1155 = vld [vmem:[%s9 + $0x60] sm:$0xff]
        %v1156 = vld [vmem:[%s9 + $0x68] sm:$0xff]
        %v1157 = vld [vmem:[%s9 + $0x70] sm:$0xff]
        %v1158 = vld [vmem:[%s9 + $0x78] sm:$0xff]
        %v1159 = vld [vmem:[%s10] sm:$0x1]
        %v1161 = vperm.slane %v1159, 0
        %1163 = vmatpush.msra.mxu0 %v1158
        %1164 = vmatpush.msra.mxu0 %v1157
        %1165 = vmatpush.msra.mxu0 %v1156
        %1166 = vmatpush.msra.mxu0 %v1155
        %1167 = vmatpush.msra.mxu0 %v1154
        %1168 = vmatpush.msra.mxu0 %v1153
        %1169 = vmatpush.msra.mxu0 %v1152
        %1170 = vmatpush.msra.mxu0 %v1151
        %1171 = vmatpush.msra.mxu0 %v1150
        %1172 = vmatpush.msra.mxu0 %v1149
        %1173 = vmatpush.msra.mxu0 %v1148
        %1174 = vmatpush.msra.mxu0 %v1147
        %1175 = vmatpush.msra.mxu0 %v1146
        %1176 = vmatpush.msra.mxu0 %v1145
        %1177 = vmatpush.msra.mxu0 %v1144
        %1178 = vmatpush.msra.mxu0 %v1143
        %1179 = vmatmul.f32.gmra.mxu0 %v1141
        %v1180 = vpop.f32.mrf.mxu0
        %v1181 = vadd.f32 %v1161, %v1180
        %1182 = vmatmul.f32.gmra.mxu0 %v1142
        %v1183 = vpop.f32.mrf.mxu0
        %v1184 = vadd.f32 %v1161, %v1183
        %1185 = vdwg.mxu0
        %v1186 = vld [vmem:[%s11] sm:$0x1]
        %v1188 = vperm.slane %v1186, 0
        %v1190 = vmul.f32 %v1181, %v1188
        %v1191 = vmul.f32 %v1184, %v1188
        %v1192 = vld [vmem:[%s12] sm:$0x1]
        %v1194 = vperm.slane %v1192, 0
        %v1196 = vadd.f32 %v1190, %v1194
        %v1197 = vadd.f32 %v1191, %v1194
        %v1198 = vadd.f32 %v1196, %v1102
        %v1199 = vadd.f32 %v1197, %v1103
        %1200 = vst.msk [vmem:[%s434] sm:$0xff] %vm452, %v1198
        %1201 = vst.msk [vmem:[%s434 + $0x8] sm:$0xff] %vm452, %v1199
        %s1202 = sand.u32 %s313, 1
        %s1203 = scalar_lea.sflag [#allocation4], %s1202
        %s1204 = sand.u32 %s313, 1
        %s1205 = smul.addr %s1204, 16
        %s1206 = scalar_lea.vmem [#allocation3], %s1205
        // Predicated region
        $region73: #{tpu_custom_call.1} parent=71 // pred_check
          %p1207 = pneg %p323
        $region74: #{tpu_custom_call.1} parent=71 // pred_check_branch
          %1209 = sbr.rel (%p1207) target = $region76
        $region75: #{tpu_custom_call.1} parent=71 // pred_region
          %s1210 = smul.u32 2, %s27
          %1212 = vsyncadd %s1203, 0
          %s1213 = smul.addr %s1210, 8
          %s1214 = scalar_lea.hbm %s13, %s1213
          %s1215 = sshll.u32 %s1206, 4
          %s1216 = int_to_ptr.vmem [resolvable:$true] %s1215
          %s1217 = sshll.u32 %s1214, 4
          %s1218 = int_to_ptr.hbm [resolvable:$true] %s1217
          %1223 = dma.vmem_to_hbm [thread:$0]  %s1216, 256, %s1218, %s1203, 128, 128, 8
        $region76: #{tpu_custom_call.1} parent=71 // pred_fallthru
          _
      $region72: #{tpu_custom_call.1} parent=5 // pred_fallthru
        _
      %p1224 = scmp.le.s32.totalorder 2, %s22
      // Predicated region
      $region77: #{tpu_custom_call.1} parent=5 // pred_check
        %p1225 = pneg %p1224
      $region78: #{tpu_custom_call.1} parent=5 // pred_check_branch
        %1227 = sbr.rel (%p1225) target = $region80
      $region79: #{tpu_custom_call.1} parent=5 // pred_region
        %s1228 = ssub.s32 %s22, 2
        // Predicated region
        $region81: #{tpu_custom_call.1} parent=79 // pred_check
          %p1229 = pneg %p329
        $region82: #{tpu_custom_call.1} parent=79 // pred_check_branch
          %1231 = sbr.rel (%p1229) target = $region84
        $region83: #{tpu_custom_call.1} parent=79 // pred_region
          %s1232 = sand.u32 %s314, 1
          %s1233 = scalar_lea.sflag [#allocation4], %s1232
          %s1234 = sand.u32 %s314, 1
          %s1235 = smul.addr %s1234, 16
          %s1236 = scalar_lea.vmem [#allocation3], %s1235
          %1238 = dma.done %s1233, 256
        $region84: #{tpu_custom_call.1} parent=79 // pred_fallthru
          _
      $region80: #{tpu_custom_call.1} parent=5 // pred_fallthru
        _
    $region6: #{tpu_custom_call.1} parent=1 // loop_footer
      %s26 = sadd.s32 1, %s22
    $region7: #{tpu_custom_call.1} parent=1 // loop_footer_branch
      %21 = sbr.rel target = $region3
    $region8: #{tpu_custom_call.1} parent=1 // loop_exit
      _
    %1239 = vsyncpa [#allocation4], 1
    %s1240 = scalar_lea.sflag [#allocation4], 1
    %1241 = vsyncpa %s1240, 1

</llo_original>
